<compile_context>
chip_gen: v7x
topology: tpu7x:2x2x1
jax: 0.10.0
libtpu: 0.0.40
codegen_flags: <defaults>
</compile_context>

<pallas_src>
import functools
import math

import jax
import jax.numpy as jnp
import numpy as np
from jax import lax
from jax.experimental import pallas as pl
from jax.experimental.pallas import tpu as pltpu

LEAK = 0.1
BN_EPS = 1e-5


def _leaky(x):
    # LeakyReLU(0.1) == max(x, 0.1 * x) for slope in (0, 1)
    return jnp.maximum(x, LEAK * x)


def tinyvgg_kernel(xu_ref,    # (TB, 30, 8, 6) bf16  column-window-unrolled padded image
                   w1_ref,    # (18, 64)  bf16  banded conv1 weight (BN folded, pool-x in N)
                   b1_ref,    # (1, 64)   f32
                   w2_ref,    # (192, 64) bf16  banded conv2 weight (BN folded, pool-x in N)
                   b2_ref,    # (1, 64)   f32
                   w3_ref,    # (1152, 128) bf16  fc1 weight, rows = (y3*6+x3)*32 + c
                   b3_ref,    # (1, 128)  f32
                   w4_ref,    # (128, 128) bf16  fc2 weight, lane-padded 26 -> 128
                   b4_ref,    # (1, 128)  f32
                   o_ref,     # (1, TB, 128) f32  padded logits
                   feat_ref,  # (TB, 1152) f32    VMEM scratch for the flatten relayout
                   *, tb):
    xu = xu_ref[...]                                                       # (TB,30,8,6)

    # ---- conv1 (3x3, pad 1) + BN1, one matmul -------------------------------------------------
    # rows = (b, y, x_half); contraction index = kh*6 + m with m = 2*x_par + dx + kw
    p1 = jnp.concatenate([xu[:, kh:kh + 28, :, :] for kh in range(3)], axis=-1)  # (TB,28,8,18)
    p1 = p1.reshape(tb * 28 * 8, 18)
    z1 = jnp.dot(p1, w1_ref[...], preferred_element_type=jnp.float32) + b1_ref[...]
    a1 = _leaky(z1).reshape(tb, 28, 8, 64)        # minor = (x_par*2 + dx)*16 + c

    # ---- maxpool1 (2,2): rows via reshape+max over a major axis, cols via lane-slice max ------
    a1 = jnp.max(a1.reshape(tb, 14, 2, 8, 64), axis=2)                      # (TB,14,8,64)
    pool1 = jnp.concatenate(
        [jnp.maximum(a1[..., 0:16], a1[..., 16:32]),                        # x_par = 0
         jnp.maximum(a1[..., 32:48], a1[..., 48:64])], axis=-1)             # x_par = 1
    pool1 = pool1.astype(jnp.bfloat16)            # (TB,14,8,32): (b, yo, x_half, x_par*16 + c)

    # ---- conv2 (3x3, valid) + BN2, one matmul --------------------------------------------------
    # contraction index = (kh*4 + j)*16 + ci with j = x_lo2 + kw
    pieces = []
    for kh in range(3):
        for j in range(4):
            pieces.append(pool1[:, kh:kh + 12, j // 2:j // 2 + 6,
                                (j % 2) * 16:(j % 2) * 16 + 16])            # (TB,12,6,16)
    p2 = jnp.concatenate(pieces, axis=-1).reshape(tb * 12 * 6, 192)
    z2 = jnp.dot(p2, w2_ref[...], preferred_element_type=jnp.float32) + b2_ref[...]
    a2 = _leaky(z2).reshape(tb, 12, 6, 64)        # minor = x_lo2*32 + co

    # ---- maxpool2 (2,2) -------------------------------------------------------------------------
    a2 = jnp.max(a2.reshape(tb, 6, 2, 6, 64), axis=2)                       # (TB,6,6,64)
    pool2 = jnp.maximum(a2[..., 0:32], a2[..., 32:64])                      # (TB,6,6,32) f32

    # ---- flatten (b, y3, x3, c) -> (b, (y3*6+x3)*32 + c) through VMEM scratch ------------------
    for y3 in range(6):
        for x3 in range(6):
            r = y3 * 6 + x3
            feat_ref[:, r * 32:(r + 1) * 32] = pool2[:, y3, x3, :]
    feat = feat_ref[...].astype(jnp.bfloat16)                               # (TB,1152)

    # ---- classifier head: single K=1152 fc1 matmul, lane-padded fc2 ----------------------------
    h = jnp.dot(feat, w3_ref[...], preferred_element_type=jnp.float32) + b3_ref[...]
    h = _leaky(h)
    logits = jnp.dot(h.astype(jnp.bfloat16), w4_ref[...],
                     preferred_element_type=jnp.float32) + b4_ref[...]
    o_ref[0, :, :] = logits


@jax.jit
def tinyvgg_forward(x, params):
    """x: (B, 1, 28, 28) float32 -> logits (B, 26). Eval-mode forward."""
    f32, bf16 = jnp.float32, jnp.bfloat16
    B = x.shape[0]
    TB = 2 if B % 2 == 0 else 1            # batch tile; grid axis is "parallel"
    nb = pl.cdiv(B, TB)
    B_pad = nb * TB

    # ---- fold eval-mode BatchNorm into the conv weights / biases -------------------------------
    s1 = params["bn1_gamma"] / jnp.sqrt(params["bn1_var"] + BN_EPS)               # (16,)
    w1f = params["conv1_w"].reshape(16, 9) * s1[:, None]                          # (c, kh*3+kw)
    b1f = (params["conv1_b"] - params["bn1_mean"]) * s1 + params["bn1_beta"]

    s2 = params["bn2_gamma"] / jnp.sqrt(params["bn2_var"] + BN_EPS)               # (32,)
    w2f = params["conv2_w"] * s2[:, None, None, None]                             # (co,ci,kh,kw)
    b2f = (params["conv2_b"] - params["bn2_mean"]) * s2 + params["bn2_beta"]

    # ---- banded conv matrices: fold the horizontal pool offsets into the matmul N --------------
    # conv1: rows kh*6 + m (m = 2*x_par + dx + kw), cols (x_par*2 + dx)*16 + c
    w1e = jnp.zeros((18, 64), f32)
    for kh in range(3):
        for xp in range(2):
            for dx in range(2):
                for kw in range(3):
                    m = 2 * xp + dx + kw
                    col = (xp * 2 + dx) * 16
                    w1e = w1e.at[kh * 6 + m, col:col + 16].set(w1f[:, kh * 3 + kw])
    b1e = jnp.tile(b1f, 4).reshape(1, 64)

    # conv2: rows (kh*4 + j)*16 + ci (j = x_lo2 + kw), cols x_lo2*32 + co
    w2e = jnp.zeros((192, 64), f32)
    for kh in range(3):
        for j in range(4):
            for xl in range(2):
                kw = j - xl
                if 0 <= kw <= 2:
                    row = (kh * 4 + j) * 16
                    w2e = w2e.at[row:row + 16, xl * 32:xl * 32 + 32].set(w2f[:, :, kh, kw].T)
    b2e = jnp.tile(b2f, 2).reshape(1, 64)

    # fc1: permute torch's (c, y, x) flatten order to the kernel's ((y*6+x)*32 + c)
    w3 = jnp.transpose(params["fc1_w"].reshape(128, 32, 6, 6), (2, 3, 1, 0)).reshape(1152, 128)
    b3 = params["fc1_b"].reshape(1, 128)

    # fc2: lane-pad 26 -> 128 columns for a dense store
    w4 = jnp.zeros((128, 128), f32).at[:, :26].set(params["fc2_w"].T)
    b4 = jnp.zeros((1, 128), f32).at[:, :26].set(params["fc2_b"][None, :])

    # ---- input: zero-pad (conv "same" + alignment) and unroll the 6-wide column window ---------
    # xu[b, Y, xh, m] = xpad[b, Y, 4*xh + m]   (pure data movement, ~2.5 KB/image in bf16)
    xpad = jnp.pad(x[:, 0].astype(f32), ((0, B_pad - B), (1, 1), (1, 5)))         # (B_pad,30,34)
    xu = jnp.stack([xpad[:, :, 4 * xh:4 * xh + 6] for xh in range(8)], axis=2)    # (B_pad,30,8,6)

    out = pl.pallas_call(
        functools.partial(tinyvgg_kernel, tb=TB),
        out_shape=jax.ShapeDtypeStruct((nb, TB, 128), f32),
        grid=(nb,),
        in_specs=[
            pl.BlockSpec((TB, 30, 8, 6), lambda i: (i, 0, 0, 0)),
            pl.BlockSpec((18, 64), lambda i: (0, 0)),
            pl.BlockSpec((1, 64), lambda i: (0, 0)),
            pl.BlockSpec((192, 64), lambda i: (0, 0)),
            pl.BlockSpec((1, 64), lambda i: (0, 0)),
            pl.BlockSpec((1152, 128), lambda i: (0, 0)),
            pl.BlockSpec((1, 128), lambda i: (0, 0)),
            pl.BlockSpec((128, 128), lambda i: (0, 0)),
            pl.BlockSpec((1, 128), lambda i: (0, 0)),
        ],
        out_specs=pl.BlockSpec((1, TB, 128), lambda i: (i, 0, 0)),
        scratch_shapes=[pltpu.VMEM((TB, 1152), jnp.float32)],
        compiler_params=pltpu.CompilerParams(dimension_semantics=("parallel",)),
    )(xu.astype(bf16), w1e.astype(bf16), b1e, w2e.astype(bf16), b2e,
      w3.astype(bf16), b3, w4.astype(bf16), b4)

    return out.reshape(B_pad, 128)[:B, :26]


# ---- pure-JAX reference (same eval-mode semantics) for a sanity check ---------------------------
def tinyvgg_reference(x, params):
    def bn(y, g, b, m, v):
        return (y - m[None, :, None, None]) / jnp.sqrt(v[None, :, None, None] + BN_EPS) \
               * g[None, :, None, None] + b[None, :, None, None]

    y = lax.conv_general_dilated(x, params["conv1_w"], (1, 1), ((1, 1), (1, 1)),
                                 dimension_numbers=("NCHW", "OIHW", "NCHW"),
                                 precision=lax.Precision.HIGHEST)
    y = y + params["conv1_b"][None, :, None, None]
    y = bn(y, params["bn1_gamma"], params["bn1_beta"], params["bn1_mean"], params["bn1_var"])
    y = jnp.where(y > 0, y, LEAK * y)
    y = lax.reduce_window(y, -jnp.inf, lax.max, (1, 1, 2, 2), (1, 1, 2, 2), "VALID")

    y = lax.conv_general_dilated(y, params["conv2_w"], (1, 1), "VALID",
                                 dimension_numbers=("NCHW", "OIHW", "NCHW"),
                                 precision=lax.Precision.HIGHEST)
    y = y + params["conv2_b"][None, :, None, None]
    y = bn(y, params["bn2_gamma"], params["bn2_beta"], params["bn2_mean"], params["bn2_var"])
    y = jnp.where(y > 0, y, LEAK * y)
    y = lax.reduce_window(y, -jnp.inf, lax.max, (1, 1, 2, 2), (1, 1, 2, 2), "VALID")

    y = y.reshape(y.shape[0], -1)                                          # torch view order
    y = jnp.dot(y, params["fc1_w"].T, precision=lax.Precision.HIGHEST) + params["fc1_b"]
    y = jnp.where(y > 0, y, LEAK * y)
    return jnp.dot(y, params["fc2_w"].T, precision=lax.Precision.HIGHEST) + params["fc2_b"]


def init_params(seed):
    key = jax.random.PRNGKey(seed)
    k1, k2, k3, k4 = jax.random.split(key, 4)

    def xavier(k, shape, fan_in, fan_out):
        bound = math.sqrt(6.0 / (fan_in + fan_out))
        return jax.random.uniform(k, shape, jnp.float32, -bound, bound)

    return {
        "conv1_w": xavier(k1, (16, 1, 3, 3), 1 * 9, 16 * 9),
        "conv1_b": jnp.full((16,), 0.01, jnp.float32),
        "bn1_gamma": jnp.ones((16,), jnp.float32), "bn1_beta": jnp.zeros((16,), jnp.float32),
        "bn1_mean": jnp.zeros((16,), jnp.float32), "bn1_var": jnp.ones((16,), jnp.float32),
        "conv2_w": xavier(k2, (32, 16, 3, 3), 16 * 9, 32 * 9),
        "conv2_b": jnp.full((32,), 0.01, jnp.float32),
        "bn2_gamma": jnp.ones((32,), jnp.float32), "bn2_beta": jnp.zeros((32,), jnp.float32),
        "bn2_mean": jnp.zeros((32,), jnp.float32), "bn2_var": jnp.ones((32,), jnp.float32),
        "fc1_w": xavier(k3, (128, 32 * 6 * 6), 32 * 6 * 6, 128),
        "fc1_b": jnp.full((128,), 0.01, jnp.float32),
        "fc2_w": xavier(k4, (26, 128), 128, 26),
        "fc2_b": jnp.full((26,), 0.01, jnp.float32),
    }


if __name__ == "__main__":
    SEED = 0
    B = 4
    params = init_params(SEED)
    x = jax.random.normal(jax.random.PRNGKey(0), (B, 1, 28, 28), jnp.float32)

    out = jax.block_until_ready(tinyvgg_forward(x, params))
    assert out.shape == (B, 26)

    ref = jax.block_until_ready(tinyvgg_reference(x, params))
    # bf16 matmul operands (f32 accumulation) -> slightly looser tolerance than pure-f32.
    np.testing.assert_allclose(np.asarray(out), np.asarray(ref), rtol=3e-2, atol=3e-2)
    print("KERNEL_OK")
</pallas_src>

<mosaic_0001>
module attributes {stable_mosaic.version = 11 : i64} {
  func.func @tinyvgg_kernel(%arg0: i32, %arg1: memref<2x30x8x6xbf16, #tpu.memory_space<vmem>>, %arg2: memref<18x64xbf16, #tpu.memory_space<vmem>>, %arg3: memref<1x64xf32, #tpu.memory_space<vmem>>, %arg4: memref<192x64xbf16, #tpu.memory_space<vmem>>, %arg5: memref<1x64xf32, #tpu.memory_space<vmem>>, %arg6: memref<1152x128xbf16, #tpu.memory_space<vmem>>, %arg7: memref<1x128xf32, #tpu.memory_space<vmem>>, %arg8: memref<128x128xbf16, #tpu.memory_space<vmem>>, %arg9: memref<1x128xf32, #tpu.memory_space<vmem>>, %arg10: memref<1x2x128xf32, #tpu.memory_space<vmem>>, %arg11: memref<2x1152xf32, #tpu.memory_space<vmem>>) attributes {dimension_semantics = [#tpu.dimension_semantics<parallel>], iteration_bounds = array<i64: 2>, scalar_prefetch = 0 : i64, scratch_operands = 1 : i64, tpu.core_type = #tpu.core_type<tc>, window_params = [{transform_indices = @transform_0, window_bounds = array<i64: 2, 30, 8, 6>}, {pipeline_mode = #tpu.pipeline_mode<synchronous>, transform_indices = @transform_1, window_bounds = array<i64: 18, 64>}, {pipeline_mode = #tpu.pipeline_mode<synchronous>, transform_indices = @transform_2, window_bounds = array<i64: 1, 64>}, {pipeline_mode = #tpu.pipeline_mode<synchronous>, transform_indices = @transform_3, window_bounds = array<i64: 192, 64>}, {pipeline_mode = #tpu.pipeline_mode<synchronous>, transform_indices = @transform_4, window_bounds = array<i64: 1, 64>}, {pipeline_mode = #tpu.pipeline_mode<synchronous>, transform_indices = @transform_5, window_bounds = array<i64: 1152, 128>}, {pipeline_mode = #tpu.pipeline_mode<synchronous>, transform_indices = @transform_6, window_bounds = array<i64: 1, 128>}, {pipeline_mode = #tpu.pipeline_mode<synchronous>, transform_indices = @transform_7, window_bounds = array<i64: 128, 128>}, {pipeline_mode = #tpu.pipeline_mode<synchronous>, transform_indices = @transform_8, window_bounds = array<i64: 1, 128>}, {transform_indices = @transform_9, window_bounds = array<i64: 1, 2, 128>}]} {
    %c0 = arith.constant 0 : index
    %c0_0 = arith.constant 0 : index
    %c0_1 = arith.constant 0 : index
    %c0_2 = arith.constant 0 : index
    %0 = vector.load %arg1[%c0, %c0_0, %c0_1, %c0_2] : memref<2x30x8x6xbf16, #tpu.memory_space<vmem>>, vector<2x30x8x6xbf16>
    %1 = vector.extract_strided_slice %0 {offsets = [0, 0, 0, 0], sizes = [2, 28, 8, 6], strides = [1, 1, 1, 1]} : vector<2x30x8x6xbf16> to vector<2x28x8x6xbf16>
    %2 = vector.extract_strided_slice %0 {offsets = [0, 1, 0, 0], sizes = [2, 28, 8, 6], strides = [1, 1, 1, 1]} : vector<2x30x8x6xbf16> to vector<2x28x8x6xbf16>
    %3 = vector.extract_strided_slice %0 {offsets = [0, 2, 0, 0], sizes = [2, 28, 8, 6], strides = [1, 1, 1, 1]} : vector<2x30x8x6xbf16> to vector<2x28x8x6xbf16>
    %4 = tpu.concatenate %1, %2, %3 in 3 : vector<2x28x8x6xbf16>, vector<2x28x8x6xbf16>, vector<2x28x8x6xbf16> -> vector<2x28x8x18xbf16>
    %5 = vector.shape_cast %4 : vector<2x28x8x18xbf16> to vector<448x18xbf16>
    %c0_3 = arith.constant 0 : index
    %c0_4 = arith.constant 0 : index
    %6 = vector.load %arg2[%c0_3, %c0_4] : memref<18x64xbf16, #tpu.memory_space<vmem>>, vector<18x64xbf16>
    %cst = arith.constant dense<0.000000e+00> : vector<448x64xf32>
    %7 = tpu.matmul %5, %6, %cst {dimension_numbers = #tpu.dot_dimension_numbers<[1], [0], [0], [1], [0, 0, 1, 1], [], []>} : vector<448x18xbf16>, vector<18x64xbf16>, vector<448x64xf32> -> vector<448x64xf32>
    %c0_5 = arith.constant 0 : index
    %c0_6 = arith.constant 0 : index
    %8 = vector.load %arg3[%c0_5, %c0_6] : memref<1x64xf32, #tpu.memory_space<vmem>>, vector<1x64xf32>
    %9 = vector.broadcast %8 : vector<1x64xf32> to vector<448x64xf32>
    %10 = arith.addf %7, %9 : vector<448x64xf32>
    %cst_7 = arith.constant 1.000000e-01 : f32
    %11 = vector.broadcast %cst_7 : f32 to vector<448x64xf32>
    %12 = arith.mulf %11, %10 : vector<448x64xf32>
    %13 = arith.maximumf %10, %12 : vector<448x64xf32>
    %14 = vector.shape_cast %13 : vector<448x64xf32> to vector<2x28x8x64xf32>
    %15 = vector.shape_cast %14 : vector<2x28x8x64xf32> to vector<2x14x2x8x64xf32>
    %cst_8 = arith.constant dense<0xFF800000> : vector<2x14x8x64xf32>
    %16 = vector.multi_reduction <maximumf>, %15, %cst_8 [2] : vector<2x14x2x8x64xf32> to vector<2x14x8x64xf32>
    %17 = vector.extract_strided_slice %16 {offsets = [0, 0, 0, 0], sizes = [2, 14, 8, 16], strides = [1, 1, 1, 1]} : vector<2x14x8x64xf32> to vector<2x14x8x16xf32>
    %18 = vector.extract_strided_slice %16 {offsets = [0, 0, 0, 16], sizes = [2, 14, 8, 16], strides = [1, 1, 1, 1]} : vector<2x14x8x64xf32> to vector<2x14x8x16xf32>
    %19 = arith.maximumf %17, %18 : vector<2x14x8x16xf32>
    %20 = vector.extract_strided_slice %16 {offsets = [0, 0, 0, 32], sizes = [2, 14, 8, 16], strides = [1, 1, 1, 1]} : vector<2x14x8x64xf32> to vector<2x14x8x16xf32>
    %21 = vector.extract_strided_slice %16 {offsets = [0, 0, 0, 48], sizes = [2, 14, 8, 16], strides = [1, 1, 1, 1]} : vector<2x14x8x64xf32> to vector<2x14x8x16xf32>
    %22 = arith.maximumf %20, %21 : vector<2x14x8x16xf32>
    %23 = tpu.concatenate %19, %22 in 3 : vector<2x14x8x16xf32>, vector<2x14x8x16xf32> -> vector<2x14x8x32xf32>
    %24 = arith.truncf %23 : vector<2x14x8x32xf32> to vector<2x14x8x32xbf16>
    %25 = vector.extract_strided_slice %24 {offsets = [0, 0, 0, 0], sizes = [2, 12, 6, 16], strides = [1, 1, 1, 1]} : vector<2x14x8x32xbf16> to vector<2x12x6x16xbf16>
    %26 = vector.extract_strided_slice %24 {offsets = [0, 0, 0, 16], sizes = [2, 12, 6, 16], strides = [1, 1, 1, 1]} : vector<2x14x8x32xbf16> to vector<2x12x6x16xbf16>
    %27 = vector.extract_strided_slice %24 {offsets = [0, 0, 1, 0], sizes = [2, 12, 6, 16], strides = [1, 1, 1, 1]} : vector<2x14x8x32xbf16> to vector<2x12x6x16xbf16>
    %28 = vector.extract_strided_slice %24 {offsets = [0, 0, 1, 16], sizes = [2, 12, 6, 16], strides = [1, 1, 1, 1]} : vector<2x14x8x32xbf16> to vector<2x12x6x16xbf16>
    %29 = vector.extract_strided_slice %24 {offsets = [0, 1, 0, 0], sizes = [2, 12, 6, 16], strides = [1, 1, 1, 1]} : vector<2x14x8x32xbf16> to vector<2x12x6x16xbf16>
    %30 = vector.extract_strided_slice %24 {offsets = [0, 1, 0, 16], sizes = [2, 12, 6, 16], strides = [1, 1, 1, 1]} : vector<2x14x8x32xbf16> to vector<2x12x6x16xbf16>
    %31 = vector.extract_strided_slice %24 {offsets = [0, 1, 1, 0], sizes = [2, 12, 6, 16], strides = [1, 1, 1, 1]} : vector<2x14x8x32xbf16> to vector<2x12x6x16xbf16>
    %32 = vector.extract_strided_slice %24 {offsets = [0, 1, 1, 16], sizes = [2, 12, 6, 16], strides = [1, 1, 1, 1]} : vector<2x14x8x32xbf16> to vector<2x12x6x16xbf16>
    %33 = vector.extract_strided_slice %24 {offsets = [0, 2, 0, 0], sizes = [2, 12, 6, 16], strides = [1, 1, 1, 1]} : vector<2x14x8x32xbf16> to vector<2x12x6x16xbf16>
    %34 = vector.extract_strided_slice %24 {offsets = [0, 2, 0, 16], sizes = [2, 12, 6, 16], strides = [1, 1, 1, 1]} : vector<2x14x8x32xbf16> to vector<2x12x6x16xbf16>
    %35 = vector.extract_strided_slice %24 {offsets = [0, 2, 1, 0], sizes = [2, 12, 6, 16], strides = [1, 1, 1, 1]} : vector<2x14x8x32xbf16> to vector<2x12x6x16xbf16>
    %36 = vector.extract_strided_slice %24 {offsets = [0, 2, 1, 16], sizes = [2, 12, 6, 16], strides = [1, 1, 1, 1]} : vector<2x14x8x32xbf16> to vector<2x12x6x16xbf16>
    %37 = tpu.concatenate %25, %26, %27, %28, %29, %30, %31, %32, %33, %34, %35, %36 in 3 : vector<2x12x6x16xbf16>, vector<2x12x6x16xbf16>, vector<2x12x6x16xbf16>, vector<2x12x6x16xbf16>, vector<2x12x6x16xbf16>, vector<2x12x6x16xbf16>, vector<2x12x6x16xbf16>, vector<2x12x6x16xbf16>, vector<2x12x6x16xbf16>, vector<2x12x6x16xbf16>, vector<2x12x6x16xbf16>, vector<2x12x6x16xbf16> -> vector<2x12x6x192xbf16>
    %38 = vector.shape_cast %37 : vector<2x12x6x192xbf16> to vector<144x192xbf16>
    %c0_9 = arith.constant 0 : index
    %c0_10 = arith.constant 0 : index
    %39 = vector.load %arg4[%c0_9, %c0_10] : memref<192x64xbf16, #tpu.memory_space<vmem>>, vector<192x64xbf16>
    %cst_11 = arith.constant dense<0.000000e+00> : vector<144x64xf32>
    %40 = tpu.matmul %38, %39, %cst_11 {dimension_numbers = #tpu.dot_dimension_numbers<[1], [0], [0], [1], [0, 0, 1, 1], [], []>} : vector<144x192xbf16>, vector<192x64xbf16>, vector<144x64xf32> -> vector<144x64xf32>
    %c0_12 = arith.constant 0 : index
    %c0_13 = arith.constant 0 : index
    %41 = vector.load %arg5[%c0_12, %c0_13] : memref<1x64xf32, #tpu.memory_space<vmem>>, vector<1x64xf32>
    %42 = vector.broadcast %41 : vector<1x64xf32> to vector<144x64xf32>
    %43 = arith.addf %40, %42 : vector<144x64xf32>
    %cst_14 = arith.constant 1.000000e-01 : f32
    %44 = vector.broadcast %cst_14 : f32 to vector<144x64xf32>
    %45 = arith.mulf %44, %43 : vector<144x64xf32>
    %46 = arith.maximumf %43, %45 : vector<144x64xf32>
    %47 = vector.shape_cast %46 : vector<144x64xf32> to vector<2x12x6x64xf32>
    %48 = vector.shape_cast %47 : vector<2x12x6x64xf32> to vector<2x6x2x6x64xf32>
    %cst_15 = arith.constant dense<0xFF800000> : vector<2x6x6x64xf32>
    %49 = vector.multi_reduction <maximumf>, %48, %cst_15 [2] : vector<2x6x2x6x64xf32> to vector<2x6x6x64xf32>
    %50 = vector.extract_strided_slice %49 {offsets = [0, 0, 0, 0], sizes = [2, 6, 6, 32], strides = [1, 1, 1, 1]} : vector<2x6x6x64xf32> to vector<2x6x6x32xf32>
    %51 = vector.extract_strided_slice %49 {offsets = [0, 0, 0, 32], sizes = [2, 6, 6, 32], strides = [1, 1, 1, 1]} : vector<2x6x6x64xf32> to vector<2x6x6x32xf32>
    %52 = arith.maximumf %50, %51 : vector<2x6x6x32xf32>
    %53 = vector.extract_strided_slice %52 {offsets = [0, 0, 0, 0], sizes = [2, 1, 1, 32], strides = [1, 1, 1, 1]} : vector<2x6x6x32xf32> to vector<2x1x1x32xf32>
    %54 = vector.shape_cast %53 : vector<2x1x1x32xf32> to vector<2x32xf32>
    %c0_16 = arith.constant 0 : index
    %c0_17 = arith.constant 0 : index
    %55 = vector.load %arg11[%c0_16, %c0_17] : memref<2x1152xf32, #tpu.memory_space<vmem>>, vector<2x32xf32>
    tpu.vector_store %arg11[%c0_16, %c0_17], %54 {strides = array<i32>} : memref<2x1152xf32, #tpu.memory_space<vmem>>, vector<2x32xf32>,
    %56 = vector.extract_strided_slice %52 {offsets = [0, 0, 1, 0], sizes = [2, 1, 1, 32], strides = [1, 1, 1, 1]} : vector<2x6x6x32xf32> to vector<2x1x1x32xf32>
    %57 = vector.shape_cast %56 : vector<2x1x1x32xf32> to vector<2x32xf32>
    %c0_18 = arith.constant 0 : index
    %c32 = arith.constant 32 : index
    %58 = vector.load %arg11[%c0_18, %c32] : memref<2x1152xf32, #tpu.memory_space<vmem>>, vector<2x32xf32>
    tpu.vector_store %arg11[%c0_18, %c32], %57 {strides = array<i32>} : memref<2x1152xf32, #tpu.memory_space<vmem>>, vector<2x32xf32>,
    %59 = vector.extract_strided_slice %52 {offsets = [0, 0, 2, 0], sizes = [2, 1, 1, 32], strides = [1, 1, 1, 1]} : vector<2x6x6x32xf32> to vector<2x1x1x32xf32>
    %60 = vector.shape_cast %59 : vector<2x1x1x32xf32> to vector<2x32xf32>
    %c0_19 = arith.constant 0 : index
    %c64 = arith.constant 64 : index
    %61 = vector.load %arg11[%c0_19, %c64] : memref<2x1152xf32, #tpu.memory_space<vmem>>, vector<2x32xf32>
    tpu.vector_store %arg11[%c0_19, %c64], %60 {strides = array<i32>} : memref<2x1152xf32, #tpu.memory_space<vmem>>, vector<2x32xf32>,
    %62 = vector.extract_strided_slice %52 {offsets = [0, 0, 3, 0], sizes = [2, 1, 1, 32], strides = [1, 1, 1, 1]} : vector<2x6x6x32xf32> to vector<2x1x1x32xf32>
    %63 = vector.shape_cast %62 : vector<2x1x1x32xf32> to vector<2x32xf32>
    %c0_20 = arith.constant 0 : index
    %c96 = arith.constant 96 : index
    %64 = vector.load %arg11[%c0_20, %c96] : memref<2x1152xf32, #tpu.memory_space<vmem>>, vector<2x32xf32>
    tpu.vector_store %arg11[%c0_20, %c96], %63 {strides = array<i32>} : memref<2x1152xf32, #tpu.memory_space<vmem>>, vector<2x32xf32>,
    %65 = vector.extract_strided_slice %52 {offsets = [0, 0, 4, 0], sizes = [2, 1, 1, 32], strides = [1, 1, 1, 1]} : vector<2x6x6x32xf32> to vector<2x1x1x32xf32>
    %66 = vector.shape_cast %65 : vector<2x1x1x32xf32> to vector<2x32xf32>
    %c0_21 = arith.constant 0 : index
    %c128 = arith.constant 128 : index
    %67 = vector.load %arg11[%c0_21, %c128] : memref<2x1152xf32, #tpu.memory_space<vmem>>, vector<2x32xf32>
    tpu.vector_store %arg11[%c0_21, %c128], %66 {strides = array<i32>} : memref<2x1152xf32, #tpu.memory_space<vmem>>, vector<2x32xf32>,
    %68 = vector.extract_strided_slice %52 {offsets = [0, 0, 5, 0], sizes = [2, 1, 1, 32], strides = [1, 1, 1, 1]} : vector<2x6x6x32xf32> to vector<2x1x1x32xf32>
    %69 = vector.shape_cast %68 : vector<2x1x1x32xf32> to vector<2x32xf32>
    %c0_22 = arith.constant 0 : index
    %c160 = arith.constant 160 : index
    %70 = vector.load %arg11[%c0_22, %c160] : memref<2x1152xf32, #tpu.memory_space<vmem>>, vector<2x32xf32>
    tpu.vector_store %arg11[%c0_22, %c160], %69 {strides = array<i32>} : memref<2x1152xf32, #tpu.memory_space<vmem>>, vector<2x32xf32>,
    %71 = vector.extract_strided_slice %52 {offsets = [0, 1, 0, 0], sizes = [2, 1, 1, 32], strides = [1, 1, 1, 1]} : vector<2x6x6x32xf32> to vector<2x1x1x32xf32>
    %72 = vector.shape_cast %71 : vector<2x1x1x32xf32> to vector<2x32xf32>
    %c0_23 = arith.constant 0 : index
    %c192 = arith.constant 192 : index
    %73 = vector.load %arg11[%c0_23, %c192] : memref<2x1152xf32, #tpu.memory_space<vmem>>, vector<2x32xf32>
    tpu.vector_store %arg11[%c0_23, %c192], %72 {strides = array<i32>} : memref<2x1152xf32, #tpu.memory_space<vmem>>, vector<2x32xf32>,
    %74 = vector.extract_strided_slice %52 {offsets = [0, 1, 1, 0], sizes = [2, 1, 1, 32], strides = [1, 1, 1, 1]} : vector<2x6x6x32xf32> to vector<2x1x1x32xf32>
    %75 = vector.shape_cast %74 : vector<2x1x1x32xf32> to vector<2x32xf32>
    %c0_24 = arith.constant 0 : index
    %c224 = arith.constant 224 : index
    %76 = vector.load %arg11[%c0_24, %c224] : memref<2x1152xf32, #tpu.memory_space<vmem>>, vector<2x32xf32>
    tpu.vector_store %arg11[%c0_24, %c224], %75 {strides = array<i32>} : memref<2x1152xf32, #tpu.memory_space<vmem>>, vector<2x32xf32>,
    %77 = vector.extract_strided_slice %52 {offsets = [0, 1, 2, 0], sizes = [2, 1, 1, 32], strides = [1, 1, 1, 1]} : vector<2x6x6x32xf32> to vector<2x1x1x32xf32>
    %78 = vector.shape_cast %77 : vector<2x1x1x32xf32> to vector<2x32xf32>
    %c0_25 = arith.constant 0 : index
    %c256 = arith.constant 256 : index
    %79 = vector.load %arg11[%c0_25, %c256] : memref<2x1152xf32, #tpu.memory_space<vmem>>, vector<2x32xf32>
    tpu.vector_store %arg11[%c0_25, %c256], %78 {strides = array<i32>} : memref<2x1152xf32, #tpu.memory_space<vmem>>, vector<2x32xf32>,
    %80 = vector.extract_strided_slice %52 {offsets = [0, 1, 3, 0], sizes = [2, 1, 1, 32], strides = [1, 1, 1, 1]} : vector<2x6x6x32xf32> to vector<2x1x1x32xf32>
    %81 = vector.shape_cast %80 : vector<2x1x1x32xf32> to vector<2x32xf32>
    %c0_26 = arith.constant 0 : index
    %c288 = arith.constant 288 : index
    %82 = vector.load %arg11[%c0_26, %c288] : memref<2x1152xf32, #tpu.memory_space<vmem>>, vector<2x32xf32>
    tpu.vector_store %arg11[%c0_26, %c288], %81 {strides = array<i32>} : memref<2x1152xf32, #tpu.memory_space<vmem>>, vector<2x32xf32>,
    %83 = vector.extract_strided_slice %52 {offsets = [0, 1, 4, 0], sizes = [2, 1, 1, 32], strides = [1, 1, 1, 1]} : vector<2x6x6x32xf32> to vector<2x1x1x32xf32>
    %84 = vector.shape_cast %83 : vector<2x1x1x32xf32> to vector<2x32xf32>
    %c0_27 = arith.constant 0 : index
    %c320 = arith.constant 320 : index
    %85 = vector.load %arg11[%c0_27, %c320] : memref<2x1152xf32, #tpu.memory_space<vmem>>, vector<2x32xf32>
    tpu.vector_store %arg11[%c0_27, %c320], %84 {strides = array<i32>} : memref<2x1152xf32, #tpu.memory_space<vmem>>, vector<2x32xf32>,
    %86 = vector.extract_strided_slice %52 {offsets = [0, 1, 5, 0], sizes = [2, 1, 1, 32], strides = [1, 1, 1, 1]} : vector<2x6x6x32xf32> to vector<2x1x1x32xf32>
    %87 = vector.shape_cast %86 : vector<2x1x1x32xf32> to vector<2x32xf32>
    %c0_28 = arith.constant 0 : index
    %c352 = arith.constant 352 : index
    %88 = vector.load %arg11[%c0_28, %c352] : memref<2x1152xf32, #tpu.memory_space<vmem>>, vector<2x32xf32>
    tpu.vector_store %arg11[%c0_28, %c352], %87 {strides = array<i32>} : memref<2x1152xf32, #tpu.memory_space<vmem>>, vector<2x32xf32>,
    %89 = vector.extract_strided_slice %52 {offsets = [0, 2, 0, 0], sizes = [2, 1, 1, 32], strides = [1, 1, 1, 1]} : vector<2x6x6x32xf32> to vector<2x1x1x32xf32>
    %90 = vector.shape_cast %89 : vector<2x1x1x32xf32> to vector<2x32xf32>
    %c0_29 = arith.constant 0 : index
    %c384 = arith.constant 384 : index
    %91 = vector.load %arg11[%c0_29, %c384] : memref<2x1152xf32, #tpu.memory_space<vmem>>, vector<2x32xf32>
    tpu.vector_store %arg11[%c0_29, %c384], %90 {strides = array<i32>} : memref<2x1152xf32, #tpu.memory_space<vmem>>, vector<2x32xf32>,
    %92 = vector.extract_strided_slice %52 {offsets = [0, 2, 1, 0], sizes = [2, 1, 1, 32], strides = [1, 1, 1, 1]} : vector<2x6x6x32xf32> to vector<2x1x1x32xf32>
    %93 = vector.shape_cast %92 : vector<2x1x1x32xf32> to vector<2x32xf32>
    %c0_30 = arith.constant 0 : index
    %c416 = arith.constant 416 : index
    %94 = vector.load %arg11[%c0_30, %c416] : memref<2x1152xf32, #tpu.memory_space<vmem>>, vector<2x32xf32>
    tpu.vector_store %arg11[%c0_30, %c416], %93 {strides = array<i32>} : memref<2x1152xf32, #tpu.memory_space<vmem>>, vector<2x32xf32>,
    %95 = vector.extract_strided_slice %52 {offsets = [0, 2, 2, 0], sizes = [2, 1, 1, 32], strides = [1, 1, 1, 1]} : vector<2x6x6x32xf32> to vector<2x1x1x32xf32>
    %96 = vector.shape_cast %95 : vector<2x1x1x32xf32> to vector<2x32xf32>
    %c0_31 = arith.constant 0 : index
    %c448 = arith.constant 448 : index
    %97 = vector.load %arg11[%c0_31, %c448] : memref<2x1152xf32, #tpu.memory_space<vmem>>, vector<2x32xf32>
    tpu.vector_store %arg11[%c0_31, %c448], %96 {strides = array<i32>} : memref<2x1152xf32, #tpu.memory_space<vmem>>, vector<2x32xf32>,
    %98 = vector.extract_strided_slice %52 {offsets = [0, 2, 3, 0], sizes = [2, 1, 1, 32], strides = [1, 1, 1, 1]} : vector<2x6x6x32xf32> to vector<2x1x1x32xf32>
    %99 = vector.shape_cast %98 : vector<2x1x1x32xf32> to vector<2x32xf32>
    %c0_32 = arith.constant 0 : index
    %c480 = arith.constant 480 : index
    %100 = vector.load %arg11[%c0_32, %c480] : memref<2x1152xf32, #tpu.memory_space<vmem>>, vector<2x32xf32>
    tpu.vector_store %arg11[%c0_32, %c480], %99 {strides = array<i32>} : memref<2x1152xf32, #tpu.memory_space<vmem>>, vector<2x32xf32>,
    %101 = vector.extract_strided_slice %52 {offsets = [0, 2, 4, 0], sizes = [2, 1, 1, 32], strides = [1, 1, 1, 1]} : vector<2x6x6x32xf32> to vector<2x1x1x32xf32>
    %102 = vector.shape_cast %101 : vector<2x1x1x32xf32> to vector<2x32xf32>
    %c0_33 = arith.constant 0 : index
    %c512 = arith.constant 512 : index
    %103 = vector.load %arg11[%c0_33, %c512] : memref<2x1152xf32, #tpu.memory_space<vmem>>, vector<2x32xf32>
    tpu.vector_store %arg11[%c0_33, %c512], %102 {strides = array<i32>} : memref<2x1152xf32, #tpu.memory_space<vmem>>, vector<2x32xf32>,
    %104 = vector.extract_strided_slice %52 {offsets = [0, 2, 5, 0], sizes = [2, 1, 1, 32], strides = [1, 1, 1, 1]} : vector<2x6x6x32xf32> to vector<2x1x1x32xf32>
    %105 = vector.shape_cast %104 : vector<2x1x1x32xf32> to vector<2x32xf32>
    %c0_34 = arith.constant 0 : index
    %c544 = arith.constant 544 : index
    %106 = vector.load %arg11[%c0_34, %c544] : memref<2x1152xf32, #tpu.memory_space<vmem>>, vector<2x32xf32>
    tpu.vector_store %arg11[%c0_34, %c544], %105 {strides = array<i32>} : memref<2x1152xf32, #tpu.memory_space<vmem>>, vector<2x32xf32>,
    %107 = vector.extract_strided_slice %52 {offsets = [0, 3, 0, 0], sizes = [2, 1, 1, 32], strides = [1, 1, 1, 1]} : vector<2x6x6x32xf32> to vector<2x1x1x32xf32>
    %108 = vector.shape_cast %107 : vector<2x1x1x32xf32> to vector<2x32xf32>
    %c0_35 = arith.constant 0 : index
    %c576 = arith.constant 576 : index
    %109 = vector.load %arg11[%c0_35, %c576] : memref<2x1152xf32, #tpu.memory_space<vmem>>, vector<2x32xf32>
    tpu.vector_store %arg11[%c0_35, %c576], %108 {strides = array<i32>} : memref<2x1152xf32, #tpu.memory_space<vmem>>, vector<2x32xf32>,
    %110 = vector.extract_strided_slice %52 {offsets = [0, 3, 1, 0], sizes = [2, 1, 1, 32], strides = [1, 1, 1, 1]} : vector<2x6x6x32xf32> to vector<2x1x1x32xf32>
    %111 = vector.shape_cast %110 : vector<2x1x1x32xf32> to vector<2x32xf32>
    %c0_36 = arith.constant 0 : index
    %c608 = arith.constant 608 : index
    %112 = vector.load %arg11[%c0_36, %c608] : memref<2x1152xf32, #tpu.memory_space<vmem>>, vector<2x32xf32>
    tpu.vector_store %arg11[%c0_36, %c608], %111 {strides = array<i32>} : memref<2x1152xf32, #tpu.memory_space<vmem>>, vector<2x32xf32>,
    %113 = vector.extract_strided_slice %52 {offsets = [0, 3, 2, 0], sizes = [2, 1, 1, 32], strides = [1, 1, 1, 1]} : vector<2x6x6x32xf32> to vector<2x1x1x32xf32>
    %114 = vector.shape_cast %113 : vector<2x1x1x32xf32> to vector<2x32xf32>
    %c0_37 = arith.constant 0 : index
    %c640 = arith.constant 640 : index
    %115 = vector.load %arg11[%c0_37, %c640] : memref<2x1152xf32, #tpu.memory_space<vmem>>, vector<2x32xf32>
    tpu.vector_store %arg11[%c0_37, %c640], %114 {strides = array<i32>} : memref<2x1152xf32, #tpu.memory_space<vmem>>, vector<2x32xf32>,
    %116 = vector.extract_strided_slice %52 {offsets = [0, 3, 3, 0], sizes = [2, 1, 1, 32], strides = [1, 1, 1, 1]} : vector<2x6x6x32xf32> to vector<2x1x1x32xf32>
    %117 = vector.shape_cast %116 : vector<2x1x1x32xf32> to vector<2x32xf32>
    %c0_38 = arith.constant 0 : index
    %c672 = arith.constant 672 : index
    %118 = vector.load %arg11[%c0_38, %c672] : memref<2x1152xf32, #tpu.memory_space<vmem>>, vector<2x32xf32>
    tpu.vector_store %arg11[%c0_38, %c672], %117 {strides = array<i32>} : memref<2x1152xf32, #tpu.memory_space<vmem>>, vector<2x32xf32>,
    %119 = vector.extract_strided_slice %52 {offsets = [0, 3, 4, 0], sizes = [2, 1, 1, 32], strides = [1, 1, 1, 1]} : vector<2x6x6x32xf32> to vector<2x1x1x32xf32>
    %120 = vector.shape_cast %119 : vector<2x1x1x32xf32> to vector<2x32xf32>
    %c0_39 = arith.constant 0 : index
    %c704 = arith.constant 704 : index
    %121 = vector.load %arg11[%c0_39, %c704] : memref<2x1152xf32, #tpu.memory_space<vmem>>, vector<2x32xf32>
    tpu.vector_store %arg11[%c0_39, %c704], %120 {strides = array<i32>} : memref<2x1152xf32, #tpu.memory_space<vmem>>, vector<2x32xf32>,
    %122 = vector.extract_strided_slice %52 {offsets = [0, 3, 5, 0], sizes = [2, 1, 1, 32], strides = [1, 1, 1, 1]} : vector<2x6x6x32xf32> to vector<2x1x1x32xf32>
    %123 = vector.shape_cast %122 : vector<2x1x1x32xf32> to vector<2x32xf32>
    %c0_40 = arith.constant 0 : index
    %c736 = arith.constant 736 : index
    %124 = vector.load %arg11[%c0_40, %c736] : memref<2x1152xf32, #tpu.memory_space<vmem>>, vector<2x32xf32>
    tpu.vector_store %arg11[%c0_40, %c736], %123 {strides = array<i32>} : memref<2x1152xf32, #tpu.memory_space<vmem>>, vector<2x32xf32>,
    %125 = vector.extract_strided_slice %52 {offsets = [0, 4, 0, 0], sizes = [2, 1, 1, 32], strides = [1, 1, 1, 1]} : vector<2x6x6x32xf32> to vector<2x1x1x32xf32>
    %126 = vector.shape_cast %125 : vector<2x1x1x32xf32> to vector<2x32xf32>
    %c0_41 = arith.constant 0 : index
    %c768 = arith.constant 768 : index
    %127 = vector.load %arg11[%c0_41, %c768] : memref<2x1152xf32, #tpu.memory_space<vmem>>, vector<2x32xf32>
    tpu.vector_store %arg11[%c0_41, %c768], %126 {strides = array<i32>} : memref<2x1152xf32, #tpu.memory_space<vmem>>, vector<2x32xf32>,
    %128 = vector.extract_strided_slice %52 {offsets = [0, 4, 1, 0], sizes = [2, 1, 1, 32], strides = [1, 1, 1, 1]} : vector<2x6x6x32xf32> to vector<2x1x1x32xf32>
    %129 = vector.shape_cast %128 : vector<2x1x1x32xf32> to vector<2x32xf32>
    %c0_42 = arith.constant 0 : index
    %c800 = arith.constant 800 : index
    %130 = vector.load %arg11[%c0_42, %c800] : memref<2x1152xf32, #tpu.memory_space<vmem>>, vector<2x32xf32>
    tpu.vector_store %arg11[%c0_42, %c800], %129 {strides = array<i32>} : memref<2x1152xf32, #tpu.memory_space<vmem>>, vector<2x32xf32>,
    %131 = vector.extract_strided_slice %52 {offsets = [0, 4, 2, 0], sizes = [2, 1, 1, 32], strides = [1, 1, 1, 1]} : vector<2x6x6x32xf32> to vector<2x1x1x32xf32>
    %132 = vector.shape_cast %131 : vector<2x1x1x32xf32> to vector<2x32xf32>
    %c0_43 = arith.constant 0 : index
    %c832 = arith.constant 832 : index
    %133 = vector.load %arg11[%c0_43, %c832] : memref<2x1152xf32, #tpu.memory_space<vmem>>, vector<2x32xf32>
    tpu.vector_store %arg11[%c0_43, %c832], %132 {strides = array<i32>} : memref<2x1152xf32, #tpu.memory_space<vmem>>, vector<2x32xf32>,
    %134 = vector.extract_strided_slice %52 {offsets = [0, 4, 3, 0], sizes = [2, 1, 1, 32], strides = [1, 1, 1, 1]} : vector<2x6x6x32xf32> to vector<2x1x1x32xf32>
    %135 = vector.shape_cast %134 : vector<2x1x1x32xf32> to vector<2x32xf32>
    %c0_44 = arith.constant 0 : index
    %c864 = arith.constant 864 : index
    %136 = vector.load %arg11[%c0_44, %c864] : memref<2x1152xf32, #tpu.memory_space<vmem>>, vector<2x32xf32>
    tpu.vector_store %arg11[%c0_44, %c864], %135 {strides = array<i32>} : memref<2x1152xf32, #tpu.memory_space<vmem>>, vector<2x32xf32>,
    %137 = vector.extract_strided_slice %52 {offsets = [0, 4, 4, 0], sizes = [2, 1, 1, 32], strides = [1, 1, 1, 1]} : vector<2x6x6x32xf32> to vector<2x1x1x32xf32>
    %138 = vector.shape_cast %137 : vector<2x1x1x32xf32> to vector<2x32xf32>
    %c0_45 = arith.constant 0 : index
    %c896 = arith.constant 896 : index
    %139 = vector.load %arg11[%c0_45, %c896] : memref<2x1152xf32, #tpu.memory_space<vmem>>, vector<2x32xf32>
    tpu.vector_store %arg11[%c0_45, %c896], %138 {strides = array<i32>} : memref<2x1152xf32, #tpu.memory_space<vmem>>, vector<2x32xf32>,
    %140 = vector.extract_strided_slice %52 {offsets = [0, 4, 5, 0], sizes = [2, 1, 1, 32], strides = [1, 1, 1, 1]} : vector<2x6x6x32xf32> to vector<2x1x1x32xf32>
    %141 = vector.shape_cast %140 : vector<2x1x1x32xf32> to vector<2x32xf32>
    %c0_46 = arith.constant 0 : index
    %c928 = arith.constant 928 : index
    %142 = vector.load %arg11[%c0_46, %c928] : memref<2x1152xf32, #tpu.memory_space<vmem>>, vector<2x32xf32>
    tpu.vector_store %arg11[%c0_46, %c928], %141 {strides = array<i32>} : memref<2x1152xf32, #tpu.memory_space<vmem>>, vector<2x32xf32>,
    %143 = vector.extract_strided_slice %52 {offsets = [0, 5, 0, 0], sizes = [2, 1, 1, 32], strides = [1, 1, 1, 1]} : vector<2x6x6x32xf32> to vector<2x1x1x32xf32>
    %144 = vector.shape_cast %143 : vector<2x1x1x32xf32> to vector<2x32xf32>
    %c0_47 = arith.constant 0 : index
    %c960 = arith.constant 960 : index
    %145 = vector.load %arg11[%c0_47, %c960] : memref<2x1152xf32, #tpu.memory_space<vmem>>, vector<2x32xf32>
    tpu.vector_store %arg11[%c0_47, %c960], %144 {strides = array<i32>} : memref<2x1152xf32, #tpu.memory_space<vmem>>, vector<2x32xf32>,
    %146 = vector.extract_strided_slice %52 {offsets = [0, 5, 1, 0], sizes = [2, 1, 1, 32], strides = [1, 1, 1, 1]} : vector<2x6x6x32xf32> to vector<2x1x1x32xf32>
    %147 = vector.shape_cast %146 : vector<2x1x1x32xf32> to vector<2x32xf32>
    %c0_48 = arith.constant 0 : index
    %c992 = arith.constant 992 : index
    %148 = vector.load %arg11[%c0_48, %c992] : memref<2x1152xf32, #tpu.memory_space<vmem>>, vector<2x32xf32>
    tpu.vector_store %arg11[%c0_48, %c992], %147 {strides = array<i32>} : memref<2x1152xf32, #tpu.memory_space<vmem>>, vector<2x32xf32>,
    %149 = vector.extract_strided_slice %52 {offsets = [0, 5, 2, 0], sizes = [2, 1, 1, 32], strides = [1, 1, 1, 1]} : vector<2x6x6x32xf32> to vector<2x1x1x32xf32>
    %150 = vector.shape_cast %149 : vector<2x1x1x32xf32> to vector<2x32xf32>
    %c0_49 = arith.constant 0 : index
    %c1024 = arith.constant 1024 : index
    %151 = vector.load %arg11[%c0_49, %c1024] : memref<2x1152xf32, #tpu.memory_space<vmem>>, vector<2x32xf32>
    tpu.vector_store %arg11[%c0_49, %c1024], %150 {strides = array<i32>} : memref<2x1152xf32, #tpu.memory_space<vmem>>, vector<2x32xf32>,
    %152 = vector.extract_strided_slice %52 {offsets = [0, 5, 3, 0], sizes = [2, 1, 1, 32], strides = [1, 1, 1, 1]} : vector<2x6x6x32xf32> to vector<2x1x1x32xf32>
    %153 = vector.shape_cast %152 : vector<2x1x1x32xf32> to vector<2x32xf32>
    %c0_50 = arith.constant 0 : index
    %c1056 = arith.constant 1056 : index
    %154 = vector.load %arg11[%c0_50, %c1056] : memref<2x1152xf32, #tpu.memory_space<vmem>>, vector<2x32xf32>
    tpu.vector_store %arg11[%c0_50, %c1056], %153 {strides = array<i32>} : memref<2x1152xf32, #tpu.memory_space<vmem>>, vector<2x32xf32>,
    %155 = vector.extract_strided_slice %52 {offsets = [0, 5, 4, 0], sizes = [2, 1, 1, 32], strides = [1, 1, 1, 1]} : vector<2x6x6x32xf32> to vector<2x1x1x32xf32>
    %156 = vector.shape_cast %155 : vector<2x1x1x32xf32> to vector<2x32xf32>
    %c0_51 = arith.constant 0 : index
    %c1088 = arith.constant 1088 : index
    %157 = vector.load %arg11[%c0_51, %c1088] : memref<2x1152xf32, #tpu.memory_space<vmem>>, vector<2x32xf32>
    tpu.vector_store %arg11[%c0_51, %c1088], %156 {strides = array<i32>} : memref<2x1152xf32, #tpu.memory_space<vmem>>, vector<2x32xf32>,
    %158 = vector.extract_strided_slice %52 {offsets = [0, 5, 5, 0], sizes = [2, 1, 1, 32], strides = [1, 1, 1, 1]} : vector<2x6x6x32xf32> to vector<2x1x1x32xf32>
    %159 = vector.shape_cast %158 : vector<2x1x1x32xf32> to vector<2x32xf32>
    %c0_52 = arith.constant 0 : index
    %c1120 = arith.constant 1120 : index
    %160 = vector.load %arg11[%c0_52, %c1120] : memref<2x1152xf32, #tpu.memory_space<vmem>>, vector<2x32xf32>
    tpu.vector_store %arg11[%c0_52, %c1120], %159 {strides = array<i32>} : memref<2x1152xf32, #tpu.memory_space<vmem>>, vector<2x32xf32>,
    %c0_53 = arith.constant 0 : index
    %c0_54 = arith.constant 0 : index
    %161 = vector.load %arg11[%c0_53, %c0_54] : memref<2x1152xf32, #tpu.memory_space<vmem>>, vector<2x1152xf32>
    %162 = arith.truncf %161 : vector<2x1152xf32> to vector<2x1152xbf16>
    %c0_55 = arith.constant 0 : index
    %c0_56 = arith.constant 0 : index
    %163 = vector.load %arg6[%c0_55, %c0_56] : memref<1152x128xbf16, #tpu.memory_space<vmem>>, vector<1152x128xbf16>
    %cst_57 = arith.constant dense<0.000000e+00> : vector<2x128xf32>
    %164 = tpu.matmul %162, %163, %cst_57 {dimension_numbers = #tpu.dot_dimension_numbers<[1], [0], [0], [1], [0, 0, 1, 1], [], []>} : vector<2x1152xbf16>, vector<1152x128xbf16>, vector<2x128xf32> -> vector<2x128xf32>
    %c0_58 = arith.constant 0 : index
    %c0_59 = arith.constant 0 : index
    %165 = vector.load %arg7[%c0_58, %c0_59] : memref<1x128xf32, #tpu.memory_space<vmem>>, vector<1x128xf32>
    %166 = vector.broadcast %165 : vector<1x128xf32> to vector<2x128xf32>
    %167 = arith.addf %164, %166 : vector<2x128xf32>
    %cst_60 = arith.constant 1.000000e-01 : f32
    %168 = vector.broadcast %cst_60 : f32 to vector<2x128xf32>
    %169 = arith.mulf %168, %167 : vector<2x128xf32>
    %170 = arith.maximumf %167, %169 : vector<2x128xf32>
    %171 = arith.truncf %170 : vector<2x128xf32> to vector<2x128xbf16>
    %c0_61 = arith.constant 0 : index
    %c0_62 = arith.constant 0 : index
    %172 = vector.load %arg8[%c0_61, %c0_62] : memref<128x128xbf16, #tpu.memory_space<vmem>>, vector<128x128xbf16>
    %cst_63 = arith.constant dense<0.000000e+00> : vector<2x128xf32>
    %173 = tpu.matmul %171, %172, %cst_63 {dimension_numbers = #tpu.dot_dimension_numbers<[1], [0], [0], [1], [0, 0, 1, 1], [], []>} : vector<2x128xbf16>, vector<128x128xbf16>, vector<2x128xf32> -> vector<2x128xf32>
    %c0_64 = arith.constant 0 : index
    %c0_65 = arith.constant 0 : index
    %174 = vector.load %arg9[%c0_64, %c0_65] : memref<1x128xf32, #tpu.memory_space<vmem>>, vector<1x128xf32>
    %175 = vector.broadcast %174 : vector<1x128xf32> to vector<2x128xf32>
    %176 = arith.addf %173, %175 : vector<2x128xf32>
    %c0_66 = arith.constant 0 : index
    %c0_67 = arith.constant 0 : index
    %c0_68 = arith.constant 0 : index
    %177 = vector.load %arg10[%c0_66, %c0_67, %c0_68] : memref<1x2x128xf32, #tpu.memory_space<vmem>>, vector<1x2x128xf32>
    %178 = vector.shape_cast %177 : vector<1x2x128xf32> to vector<2x128xf32>
    %179 = vector.shape_cast %176 : vector<2x128xf32> to vector<1x2x128xf32>
    tpu.vector_store %arg10[%c0_66, %c0_67, %c0_68], %179 {strides = array<i32>} : memref<1x2x128xf32, #tpu.memory_space<vmem>>, vector<1x2x128xf32>,
    return
  }
  func.func @transform_0(%arg0: i32) -> (i32, i32, i32, i32) {
    %c0_i32 = arith.constant 0 : i32
    %c0_i32_0 = arith.constant 0 : i32
    %c0_i32_1 = arith.constant 0 : i32
    %c0_i32_2 = arith.constant 0 : i32
    return %arg0, %c0_i32, %c0_i32_0, %c0_i32_1 : i32, i32, i32, i32
  }
  func.func @transform_1(%arg0: i32) -> (i32, i32) {
    %c0_i32 = arith.constant 0 : i32
    %c0_i32_0 = arith.constant 0 : i32
    %c0_i32_1 = arith.constant 0 : i32
    return %c0_i32, %c0_i32_0 : i32, i32
  }
  func.func @transform_2(%arg0: i32) -> (i32, i32) {
    %c0_i32 = arith.constant 0 : i32
    %c0_i32_0 = arith.constant 0 : i32
    %c0_i32_1 = arith.constant 0 : i32
    return %c0_i32, %c0_i32_0 : i32, i32
  }
  func.func @transform_3(%arg0: i32) -> (i32, i32) {
    %c0_i32 = arith.constant 0 : i32
    %c0_i32_0 = arith.constant 0 : i32
    %c0_i32_1 = arith.constant 0 : i32
    return %c0_i32, %c0_i32_0 : i32, i32
  }
  func.func @transform_4(%arg0: i32) -> (i32, i32) {
    %c0_i32 = arith.constant 0 : i32
    %c0_i32_0 = arith.constant 0 : i32
    %c0_i32_1 = arith.constant 0 : i32
    return %c0_i32, %c0_i32_0 : i32, i32
  }
  func.func @transform_5(%arg0: i32) -> (i32, i32) {
    %c0_i32 = arith.constant 0 : i32
    %c0_i32_0 = arith.constant 0 : i32
    %c0_i32_1 = arith.constant 0 : i32
    return %c0_i32, %c0_i32_0 : i32, i32
  }
  func.func @transform_6(%arg0: i32) -> (i32, i32) {
    %c0_i32 = arith.constant 0 : i32
    %c0_i32_0 = arith.constant 0 : i32
    %c0_i32_1 = arith.constant 0 : i32
    return %c0_i32, %c0_i32_0 : i32, i32
  }
  func.func @transform_7(%arg0: i32) -> (i32, i32) {
    %c0_i32 = arith.constant 0 : i32
    %c0_i32_0 = arith.constant 0 : i32
    %c0_i32_1 = arith.constant 0 : i32
    return %c0_i32, %c0_i32_0 : i32, i32
  }
  func.func @transform_8(%arg0: i32) -> (i32, i32) {
    %c0_i32 = arith.constant 0 : i32
    %c0_i32_0 = arith.constant 0 : i32
    %c0_i32_1 = arith.constant 0 : i32
    return %c0_i32, %c0_i32_0 : i32, i32
  }
  func.func @transform_9(%arg0: i32) -> (i32, i32, i32) {
    %c0_i32 = arith.constant 0 : i32
    %c0_i32_0 = arith.constant 0 : i32
    %c0_i32_1 = arith.constant 0 : i32
    return %arg0, %c0_i32, %c0_i32_0 : i32, i32, i32
  }
}

</mosaic_0001>

<llo_original>
// kernel: tile.13
$region0: #{tile.13}
  #allocation0 [shape = 's32[1]{0}', space=sflag, size = 0x4, scoped, tag = 'scoped memory for tile.13']
  %s0 = inlined_call_operand.vmem [shape: f32[16], index: 0, kind: input, shape index: {}]
  %s1 = inlined_call_operand.vmem [shape: f32[4,16], index: 1, kind: output, shape index: {}]
  // Predicated region
  $region2: #{tile.13} parent=0 // pred_check
    _
  $region3: #{tile.13} parent=0 // pred_check_branch
    %3 = sbr.rel (0) target = $region5
  $region4: #{tile.13} parent=0 // pred_region
    _
  $region5: #{tile.13} parent=0 // pred_fallthru
    _
  %v4 = vld [vmem:[%s0] ss:$0 sm:$0xff]
  %5 = vst [vmem:[%s1] sm:$0xf] %v4

// kernel: tile.14
$region0: #{tile.14}
  %s0 = inlined_call_operand.vmem [shape: f32[4,16], index: 0, kind: input, shape index: {}]
  %s1 = inlined_call_operand.vmem [shape: f32[1,64], index: 1, kind: output, shape index: {}]
  $region1: #{tile.14} parent=0
    #allocation0 [shape = 'u8[4096]{0}', space=vmem, size = 0x1000, scoped, tag = 'scoped mem for output reshape']
    #allocation1 [shape = 'u8[4096]{0}', space=vmem, size = 0x1000, scoped, tag = 'scoped mem for input reshape']
    %s3 = sshllo.u32 0, 4
    %v4 = vld [vmem:[%s0] sm:%s3]
    %5 = vst [vmem:[#allocation1] sm:%s3] %v4
    %v6 = vld [vmem:[#allocation1] sm:$0x1]
    %vm7 = vcmask 130048
    %8 = vst.msk [vmem:[#allocation0] sm:$0x1] %vm7, %v6
    %s9 = scalar_lea.vmem [#allocation1], 3
    %v10 = vld [vmem:[%s9] sm:$0x1]
    %11 = vrot.lane.b32.xlu0 %v10, 48
    %v12 = vpop.permute.xlu0 %11
    %vm13 = vcmask 523648
    %14 = vst.msk [vmem:[#allocation0] sm:$0x1] %vm13, %v12
    %s15 = scalar_lea.vmem [#allocation1], 2
    %v16 = vld [vmem:[%s15] sm:$0x1]
    %17 = vrot.lane.b32.xlu0 %v16, 32
    %v18 = vpop.permute.xlu0 %17
    %vm19 = vcmask 392448
    %20 = vst.msk [vmem:[#allocation0] sm:$0x1] %vm19, %v18
    %s21 = scalar_lea.vmem [#allocation1], 1
    %v22 = vld [vmem:[%s21] sm:$0x1]
    %23 = vrot.lane.b32.xlu0 %v22, 16
    %v24 = vpop.permute.xlu0 %23
    %vm25 = vcmask 261248
    %26 = vst.msk [vmem:[#allocation0] sm:$0x1] %vm25, %v24
    %s28 = sshllo.u32 0, 1
    %v30 = vld [vmem:[#allocation0] sm:%s28]
    %s31 = sshllo.u32 0, 1
    %32 = vst [vmem:[%s1] sm:%s31] %v30

// kernel: tile.18
$region0: #{tile.18}
  #allocation0 [shape = 's32[1]{0}', space=sflag, size = 0x4, scoped, tag = 'scoped memory for tile.18']
  %s0 = inlined_call_operand.vmem [shape: f32[32], index: 0, kind: input, shape index: {}]
  %s1 = inlined_call_operand.vmem [shape: f32[2,32], index: 1, kind: output, shape index: {}]
  // Predicated region
  $region2: #{tile.18} parent=0 // pred_check
    _
  $region3: #{tile.18} parent=0 // pred_check_branch
    %3 = sbr.rel (0) target = $region5
  $region4: #{tile.18} parent=0 // pred_region
    _
  $region5: #{tile.18} parent=0 // pred_fallthru
    _
  %v4 = vld [vmem:[%s0] ss:$0 sm:$0xff]
  %5 = vst [vmem:[%s1] sm:$0x3] %v4

// kernel: tile.19
$region0: #{tile.19}
  %s0 = inlined_call_operand.vmem [shape: f32[2,32], index: 0, kind: input, shape index: {}]
  %s1 = inlined_call_operand.vmem [shape: f32[1,64], index: 1, kind: output, shape index: {}]
  $region1: #{tile.19} parent=0
    #allocation0 [shape = 'u8[4096]{0}', space=vmem, size = 0x1000, scoped, tag = 'scoped mem for output reshape']
    #allocation1 [shape = 'u8[4096]{0}', space=vmem, size = 0x1000, scoped, tag = 'scoped mem for input reshape']
    %s3 = sshllo.u32 0, 2
    %v4 = vld [vmem:[%s0] sm:%s3]
    %5 = vst [vmem:[#allocation1] sm:%s3] %v4
    %v6 = vld [vmem:[#allocation1] sm:$0x1]
    %vm7 = vcmask 261120
    %8 = vst.msk [vmem:[#allocation0] sm:$0x1] %vm7, %v6
    %s9 = scalar_lea.vmem [#allocation1], 1
    %v10 = vld [vmem:[%s9] sm:$0x1]
    %11 = vrot.lane.b32.xlu0 %v10, 32
    %v12 = vpop.permute.xlu0 %11
    %vm13 = vcmask 523520
    %14 = vst.msk [vmem:[#allocation0] sm:$0x1] %vm13, %v12
    %s16 = sshllo.u32 0, 1
    %v18 = vld [vmem:[#allocation0] sm:%s16]
    %s19 = sshllo.u32 0, 1
    %20 = vst [vmem:[%s1] sm:%s19] %v18

// kernel: tinyvgg_forward.1
$region0: #{tinyvgg_forward.1}
  #allocation0 [shape = 'u32[]', space=smem, size = 0x4, offset = 0x4, fixed_abs, tag = 'smem constant byte address 0x4 - core index']
  #allocation1 [shape = 'u32[144,128]{1,0:T(1,128)}', space=vmem, size = 0x12000, scoped, tag = 'internal scratch']
  #allocation2 [shape = 'f32[2,1152]{1,0:T(2,128)}', space=vmem, size = 0x2400, scoped, tag = 'scratch operand']
  %s0 = inlined_call_operand.vmem [shape: bf16[4,30,8,6], index: 0, kind: input, shape index: {}]
  %s1 = inlined_call_operand.vmem [shape: bf16[18,64], index: 1, kind: input, shape index: {}]
  %s2 = inlined_call_operand.vmem [shape: f32[1,64], index: 2, kind: input, shape index: {}]
  %s3 = inlined_call_operand.vmem [shape: bf16[192,64], index: 3, kind: input, shape index: {}]
  %s4 = inlined_call_operand.vmem [shape: f32[1,64], index: 4, kind: input, shape index: {}]
  %s5 = inlined_call_operand.vmem [shape: bf16[1152,128], index: 5, kind: input, shape index: {}]
  %s6 = inlined_call_operand.vmem [shape: f32[1,128], index: 6, kind: input, shape index: {}]
  %s7 = inlined_call_operand.vmem [shape: bf16[128,128], index: 7, kind: input, shape index: {}]
  %s8 = inlined_call_operand.vmem [shape: f32[1,128], index: 8, kind: input, shape index: {}]
  %s9 = inlined_call_operand.hbm [shape: f32[2,2,128], index: 9, kind: output, shape index: {}]
  %s10 = sld [smem:[#allocation0]]
  $region69: #{tinyvgg_forward.1} parent=0
    _
  %s12 = ssub.s32 1, %s10
  %s13 = scalar_select 0, %s12, %s10
  $region1: #{tinyvgg_forward.1} parent=0
    #allocation3 [shape = 'u8[2048]{0}', space=vmem, size = 0x800, scoped, tag = 'output window, operand 0']
    #allocation4 [shape = 's32[2]{0}', space=sflag, size = 0x8, scoped, tag = 'scoped memory for tinyvgg_forward.1']
    %14 = vsyncpa [#allocation4], 0
    %s15 = scalar_lea.sflag [#allocation4], 1
    %16 = vsyncpa %s15, 0
    loop: start=0, step=1, limit=4
    $region2: #{tinyvgg_forward.1} parent=1 // loop_pre_header
      _
    $region3: #{tinyvgg_forward.1} parent=1 // loop_header
      %s18 = sphi 0, %s22
      %p19 = scmp.ge.s32.totalorder %s18, 4
      %s28 = sphi 0, %s30
      %s31 = sphi 0, %s28
      %s32 = sphi 0, %s31
      %s48 = sphi 0, %s32
      %s52 = sphi 0, %s52
      %s54 = sphi 0, %s52
      %s55 = sphi 0, %s54
      %s69 = sphi 0, %s55
      %s73 = sphi 0, %s73
      %s75 = sphi 0, %s73
      %s76 = sphi 0, %s75
      %s90 = sphi 0, %s76
      %s94 = sphi 0, %s94
      %s96 = sphi 0, %s94
      %s97 = sphi 0, %s96
      %s111 = sphi 0, %s97
      %s115 = sphi 0, %s115
      %s117 = sphi 0, %s115
      %s118 = sphi 0, %s117
      %s132 = sphi 0, %s118
      %s136 = sphi 0, %s136
      %s138 = sphi 0, %s136
      %s139 = sphi 0, %s138
      %s153 = sphi 0, %s139
      %s157 = sphi 0, %s157
      %s159 = sphi 0, %s157
      %s160 = sphi 0, %s159
      %s174 = sphi 0, %s160
      %s178 = sphi 0, %s178
      %s180 = sphi 0, %s178
      %s181 = sphi 0, %s180
      %s195 = sphi 0, %s181
      %s199 = sphi 0, %s199
      %s201 = sphi 0, %s199
      %s202 = sphi 0, %s201
      %s216 = sphi 0, %s202
      %s222 = sphi 0, %s224
      %s225 = sphi 0, %s222
      %s226 = sphi 0, %s225
      %s242 = sphi 0, %s226
    $region4: #{tinyvgg_forward.1} parent=1 // loop_header_branch
      %21 = sbr.rel (%p19) target = $region8
    $region5: #{tinyvgg_forward.1} parent=1 // loop_body
      %s23 = ssub.s32 %s18, 1
      %s24 = ssub.s32 %s18, 2
      %s25 = sadd.s32 %s18, 1
      %s26 = ssub.s32 %s18, %s25
      %p27 = scmp.eq.s32.totalorder %s26, 0
      %s29 = sadd.s32 %s28, 1
      %s30 = scalar_select %p27, %s28, %s29
      %p33 = pneg %p27
      %p34 = scmp.eq.s32.totalorder %s18, 1
      %p35 = por %p33, %p34
      %p36 = scmp.ne.s32.totalorder %s28, %s31
      %p37 = scmp.eq.s32.totalorder %s18, 0
      %p38 = por %p36, %p37
      %p39 = scmp.ne.s32.totalorder %s28, %s31
      %p40 = scmp.eq.s32.totalorder %s23, 1
      %p41 = por %p39, %p40
      %p42 = scmp.ne.s32.totalorder %s31, %s32
      %p43 = scmp.eq.s32.totalorder %s23, 0
      %p44 = por %p42, %p43
      %p45 = scmp.ne.s32.totalorder %s31, %s32
      %p46 = scmp.eq.s32.totalorder %s24, 1
      %p47 = por %p45, %p46
      %p49 = scmp.ne.s32.totalorder %s32, %s48
      %p50 = scmp.eq.s32.totalorder %s24, 0
      %p51 = por %p49, %p50
      %s53 = sadd.s32 %s52, 1
      %p56 = scmp.eq.s32.totalorder %s18, 1
      %p57 = scmp.ne.s32.totalorder %s52, %s54
      %p58 = scmp.eq.s32.totalorder %s18, 0
      %p59 = por %p57, %p58
      %p60 = scmp.ne.s32.totalorder %s52, %s54
      %p61 = scmp.eq.s32.totalorder %s23, 1
      %p62 = por %p60, %p61
      %p63 = scmp.ne.s32.totalorder %s54, %s55
      %p64 = scmp.eq.s32.totalorder %s23, 0
      %p65 = por %p63, %p64
      %p66 = scmp.ne.s32.totalorder %s54, %s55
      %p67 = scmp.eq.s32.totalorder %s24, 1
      %p68 = por %p66, %p67
      %p70 = scmp.ne.s32.totalorder %s55, %s69
      %p71 = scmp.eq.s32.totalorder %s24, 0
      %p72 = por %p70, %p71
      %s74 = sadd.s32 %s73, 1
      %p77 = scmp.eq.s32.totalorder %s18, 1
      %p78 = scmp.ne.s32.totalorder %s73, %s75
      %p79 = scmp.eq.s32.totalorder %s18, 0
      %p80 = por %p78, %p79
      %p81 = scmp.ne.s32.totalorder %s73, %s75
      %p82 = scmp.eq.s32.totalorder %s23, 1
      %p83 = por %p81, %p82
      %p84 = scmp.ne.s32.totalorder %s75, %s76
      %p85 = scmp.eq.s32.totalorder %s23, 0
      %p86 = por %p84, %p85
      %p87 = scmp.ne.s32.totalorder %s75, %s76
      %p88 = scmp.eq.s32.totalorder %s24, 1
      %p89 = por %p87, %p88
      %p91 = scmp.ne.s32.totalorder %s76, %s90
      %p92 = scmp.eq.s32.totalorder %s24, 0
      %p93 = por %p91, %p92
      %s95 = sadd.s32 %s94, 1
      %p98 = scmp.eq.s32.totalorder %s18, 1
      %p99 = scmp.ne.s32.totalorder %s94, %s96
      %p100 = scmp.eq.s32.totalorder %s18, 0
      %p101 = por %p99, %p100
      %p102 = scmp.ne.s32.totalorder %s94, %s96
      %p103 = scmp.eq.s32.totalorder %s23, 1
      %p104 = por %p102, %p103
      %p105 = scmp.ne.s32.totalorder %s96, %s97
      %p106 = scmp.eq.s32.totalorder %s23, 0
      %p107 = por %p105, %p106
      %p108 = scmp.ne.s32.totalorder %s96, %s97
      %p109 = scmp.eq.s32.totalorder %s24, 1
      %p110 = por %p108, %p109
      %p112 = scmp.ne.s32.totalorder %s97, %s111
      %p113 = scmp.eq.s32.totalorder %s24, 0
      %p114 = por %p112, %p113
      %s116 = sadd.s32 %s115, 1
      %p119 = scmp.eq.s32.totalorder %s18, 1
      %p120 = scmp.ne.s32.totalorder %s115, %s117
      %p121 = scmp.eq.s32.totalorder %s18, 0
      %p122 = por %p120, %p121
      %p123 = scmp.ne.s32.totalorder %s115, %s117
      %p124 = scmp.eq.s32.totalorder %s23, 1
      %p125 = por %p123, %p124
      %p126 = scmp.ne.s32.totalorder %s117, %s118
      %p127 = scmp.eq.s32.totalorder %s23, 0
      %p128 = por %p126, %p127
      %p129 = scmp.ne.s32.totalorder %s117, %s118
      %p130 = scmp.eq.s32.totalorder %s24, 1
      %p131 = por %p129, %p130
      %p133 = scmp.ne.s32.totalorder %s118, %s132
      %p134 = scmp.eq.s32.totalorder %s24, 0
      %p135 = por %p133, %p134
      %s137 = sadd.s32 %s136, 1
      %p140 = scmp.eq.s32.totalorder %s18, 1
      %p141 = scmp.ne.s32.totalorder %s136, %s138
      %p142 = scmp.eq.s32.totalorder %s18, 0
      %p143 = por %p141, %p142
      %p144 = scmp.ne.s32.totalorder %s136, %s138
      %p145 = scmp.eq.s32.totalorder %s23, 1
      %p146 = por %p144, %p145
      %p147 = scmp.ne.s32.totalorder %s138, %s139
      %p148 = scmp.eq.s32.totalorder %s23, 0
      %p149 = por %p147, %p148
      %p150 = scmp.ne.s32.totalorder %s138, %s139
      %p151 = scmp.eq.s32.totalorder %s24, 1
      %p152 = por %p150, %p151
      %p154 = scmp.ne.s32.totalorder %s139, %s153
      %p155 = scmp.eq.s32.totalorder %s24, 0
      %p156 = por %p154, %p155
      %s158 = sadd.s32 %s157, 1
      %p161 = scmp.eq.s32.totalorder %s18, 1
      %p162 = scmp.ne.s32.totalorder %s157, %s159
      %p163 = scmp.eq.s32.totalorder %s18, 0
      %p164 = por %p162, %p163
      %p165 = scmp.ne.s32.totalorder %s157, %s159
      %p166 = scmp.eq.s32.totalorder %s23, 1
      %p167 = por %p165, %p166
      %p168 = scmp.ne.s32.totalorder %s159, %s160
      %p169 = scmp.eq.s32.totalorder %s23, 0
      %p170 = por %p168, %p169
      %p171 = scmp.ne.s32.totalorder %s159, %s160
      %p172 = scmp.eq.s32.totalorder %s24, 1
      %p173 = por %p171, %p172
      %p175 = scmp.ne.s32.totalorder %s160, %s174
      %p176 = scmp.eq.s32.totalorder %s24, 0
      %p177 = por %p175, %p176
      %s179 = sadd.s32 %s178, 1
      %p182 = scmp.eq.s32.totalorder %s18, 1
      %p183 = scmp.ne.s32.totalorder %s178, %s180
      %p184 = scmp.eq.s32.totalorder %s18, 0
      %p185 = por %p183, %p184
      %p186 = scmp.ne.s32.totalorder %s178, %s180
      %p187 = scmp.eq.s32.totalorder %s23, 1
      %p188 = por %p186, %p187
      %p189 = scmp.ne.s32.totalorder %s180, %s181
      %p190 = scmp.eq.s32.totalorder %s23, 0
      %p191 = por %p189, %p190
      %p192 = scmp.ne.s32.totalorder %s180, %s181
      %p193 = scmp.eq.s32.totalorder %s24, 1
      %p194 = por %p192, %p193
      %p196 = scmp.ne.s32.totalorder %s181, %s195
      %p197 = scmp.eq.s32.totalorder %s24, 0
      %p198 = por %p196, %p197
      %s200 = sadd.s32 %s199, 1
      %p203 = scmp.eq.s32.totalorder %s18, 1
      %p204 = scmp.ne.s32.totalorder %s199, %s201
      %p205 = scmp.eq.s32.totalorder %s18, 0
      %p206 = por %p204, %p205
      %p207 = scmp.ne.s32.totalorder %s199, %s201
      %p208 = scmp.eq.s32.totalorder %s23, 1
      %p209 = por %p207, %p208
      %p210 = scmp.ne.s32.totalorder %s201, %s202
      %p211 = scmp.eq.s32.totalorder %s23, 0
      %p212 = por %p210, %p211
      %p213 = scmp.ne.s32.totalorder %s201, %s202
      %p214 = scmp.eq.s32.totalorder %s24, 1
      %p215 = por %p213, %p214
      %p217 = scmp.ne.s32.totalorder %s202, %s216
      %p218 = scmp.eq.s32.totalorder %s24, 0
      %p219 = por %p217, %p218
      %s220 = ssub.s32 %s18, %s25
      %p221 = scmp.eq.s32.totalorder %s220, 0
      %s223 = sadd.s32 %s222, 1
      %s224 = scalar_select %p221, %s222, %s223
      %p227 = pneg %p221
      %p228 = scmp.eq.s32.totalorder %s18, 1
      %p229 = por %p227, %p228
      %p230 = scmp.ne.s32.totalorder %s222, %s225
      %p231 = scmp.eq.s32.totalorder %s18, 0
      %p232 = por %p230, %p231
      %p233 = scmp.ne.s32.totalorder %s222, %s225
      %p234 = scmp.eq.s32.totalorder %s23, 1
      %p235 = por %p233, %p234
      %p236 = scmp.ne.s32.totalorder %s225, %s226
      %p237 = scmp.eq.s32.totalorder %s23, 0
      %p238 = por %p236, %p237
      %p239 = scmp.ne.s32.totalorder %s225, %s226
      %p240 = scmp.eq.s32.totalorder %s24, 1
      %p241 = por %p239, %p240
      %p243 = scmp.ne.s32.totalorder %s226, %s242
      %p244 = scmp.eq.s32.totalorder %s24, 0
      %p245 = por %p243, %p244
      %p246 = scmp.le.s32.totalorder 1, %s18
      %p247 = scmp.lt.s32.totalorder %s18, 3
      %p248 = pnand %p246, %p247
      %p249 = pneg %p248
      // Predicated region
      $region9: #{tinyvgg_forward.1} parent=5 // pred_check
        _
      $region10: #{tinyvgg_forward.1} parent=5 // pred_check_branch
        %251 = sbr.rel (%p248) target = $region12
      $region11: #{tinyvgg_forward.1} parent=5 // pred_region
        %s252 = ssub.s32 %s18, 1
        // Predicated region
        $region13: #{tinyvgg_forward.1} parent=11 // pred_check
          %p253 = pneg %p65
        $region14: #{tinyvgg_forward.1} parent=11 // pred_check_branch
          %255 = sbr.rel (%p253) target = $region16
        $region15: #{tinyvgg_forward.1} parent=11 // pred_region
          _
        $region16: #{tinyvgg_forward.1} parent=11 // pred_fallthru
          _
        // Predicated region
        $region17: #{tinyvgg_forward.1} parent=11 // pred_check
          %p256 = pneg %p86
        $region18: #{tinyvgg_forward.1} parent=11 // pred_check_branch
          %258 = sbr.rel (%p256) target = $region20
        $region19: #{tinyvgg_forward.1} parent=11 // pred_region
          _
        $region20: #{tinyvgg_forward.1} parent=11 // pred_fallthru
          _
        // Predicated region
        $region21: #{tinyvgg_forward.1} parent=11 // pred_check
          %p259 = pneg %p107
        $region22: #{tinyvgg_forward.1} parent=11 // pred_check_branch
          %261 = sbr.rel (%p259) target = $region24
        $region23: #{tinyvgg_forward.1} parent=11 // pred_region
          _
        $region24: #{tinyvgg_forward.1} parent=11 // pred_fallthru
          _
        // Predicated region
        $region25: #{tinyvgg_forward.1} parent=11 // pred_check
          %p262 = pneg %p128
        $region26: #{tinyvgg_forward.1} parent=11 // pred_check_branch
          %264 = sbr.rel (%p262) target = $region28
        $region27: #{tinyvgg_forward.1} parent=11 // pred_region
          _
        $region28: #{tinyvgg_forward.1} parent=11 // pred_fallthru
          _
        // Predicated region
        $region29: #{tinyvgg_forward.1} parent=11 // pred_check
          %p265 = pneg %p149
        $region30: #{tinyvgg_forward.1} parent=11 // pred_check_branch
          %267 = sbr.rel (%p265) target = $region32
        $region31: #{tinyvgg_forward.1} parent=11 // pred_region
          _
        $region32: #{tinyvgg_forward.1} parent=11 // pred_fallthru
          _
        // Predicated region
        $region33: #{tinyvgg_forward.1} parent=11 // pred_check
          %p268 = pneg %p170
        $region34: #{tinyvgg_forward.1} parent=11 // pred_check_branch
          %270 = sbr.rel (%p268) target = $region36
        $region35: #{tinyvgg_forward.1} parent=11 // pred_region
          _
        $region36: #{tinyvgg_forward.1} parent=11 // pred_fallthru
          _
        // Predicated region
        $region37: #{tinyvgg_forward.1} parent=11 // pred_check
          %p271 = pneg %p191
        $region38: #{tinyvgg_forward.1} parent=11 // pred_check_branch
          %273 = sbr.rel (%p271) target = $region40
        $region39: #{tinyvgg_forward.1} parent=11 // pred_region
          _
        $region40: #{tinyvgg_forward.1} parent=11 // pred_fallthru
          _
        // Predicated region
        $region41: #{tinyvgg_forward.1} parent=11 // pred_check
          %p274 = pneg %p212
        $region42: #{tinyvgg_forward.1} parent=11 // pred_check_branch
          %276 = sbr.rel (%p274) target = $region44
        $region43: #{tinyvgg_forward.1} parent=11 // pred_region
          _
        $region44: #{tinyvgg_forward.1} parent=11 // pred_fallthru
          _
      $region12: #{tinyvgg_forward.1} parent=5 // pred_fallthru
        _
      %p277 = scmp.lt.s32.totalorder %s18, 2
      // Predicated region
      $region45: #{tinyvgg_forward.1} parent=5 // pred_check
        %p278 = pneg %p277
      $region46: #{tinyvgg_forward.1} parent=5 // pred_check_branch
        %280 = sbr.rel (%p278) target = $region48
      $region47: #{tinyvgg_forward.1} parent=5 // pred_region
        // Predicated region
        $region49: #{tinyvgg_forward.1} parent=47 // pred_check
          %p281 = pneg %p38
        $region50: #{tinyvgg_forward.1} parent=47 // pred_check_branch
          %283 = sbr.rel (%p281) target = $region52
        $region51: #{tinyvgg_forward.1} parent=47 // pred_region
          %s284 = smul.u32 2, %s18
          %p285 = scmp.lt.s32.totalorder %s284, 3
          %s286 = scalar_select %p285, %s284, 3
          %s287 = smul.addr %s286, 30
          %s288 = smul.addr %s287, 4
          %s289 = scalar_lea.vmem %s0, %s288
          %s290 = smul.u32 2, %s18
        $region52: #{tinyvgg_forward.1} parent=47 // pred_fallthru
          _
      $region48: #{tinyvgg_forward.1} parent=5 // pred_fallthru
        _
      %p291 = scmp.le.s32.totalorder 1, %s18
      %p292 = scmp.lt.s32.totalorder %s18, 3
      %p293 = pnand %p291, %p292
      %p294 = pneg %p293
      // Predicated region
      $region53: #{tinyvgg_forward.1} parent=5 // pred_check
        _
      $region54: #{tinyvgg_forward.1} parent=5 // pred_check_branch
        %296 = sbr.rel (%p293) target = $region56
      $region55: #{tinyvgg_forward.1} parent=5 // pred_region
        %s297 = ssub.s32 %s18, 1
        %s298 = smul.u32 2, %s23
        %p299 = scmp.lt.s32.totalorder %s298, 3
        %s300 = scalar_select %p299, %s298, 3
        %s301 = smul.addr %s300, 30
        %s302 = smul.addr %s301, 4
        %s303 = scalar_lea.vmem %s0, %s302
        %p304 = pneg %p44
        %p305 = pneg %p41
        %p306 = pneg %p65
        %p307 = pneg %p62
        %p308 = pneg %p86
        %p309 = pneg %p83
        %p310 = pneg %p107
        %p311 = pneg %p104
        %p312 = pneg %p128
        %p313 = pneg %p125
        %p314 = pneg %p149
        %p315 = pneg %p146
        %p316 = pneg %p170
        %p317 = pneg %p167
        %p318 = pneg %p191
        %p319 = pneg %p188
        %p320 = pneg %p212
        %p321 = pneg %p209
        %p322 = pneg %p238
        %p323 = pneg %p235
        %s324 = sand.u32 %s225, 1
        %s325 = scalar_lea.sflag [#allocation4], %s324
        %s326 = sand.u32 %s225, 1
        %s327 = smul.addr %s326, 2
        %s328 = scalar_lea.vmem [#allocation3], %s327
        %s329 = smul.u32 2, %s23
        %p330 = scmp.lt.s32.totalorder %s329, 3
        %s331 = scalar_select %p330, %s329, 3
        %s332 = smul.addr %s331, 30
        %s333 = smul.addr %s332, 4
        %s334 = scalar_lea.vmem %s0, %s333
        %s335 = smul.u32 2, %s23
        %v337 = vld [vmem:[%s334] sm:$0xf]
        %v338 = vld [vmem:[%s334 + $0x4] sm:$0xf]
        %v339 = vld [vmem:[%s334 + $0x8] sm:$0xf]
        %v340 = vld [vmem:[%s334 + $0xc] sm:$0xf]
        %v341 = vld [vmem:[%s334 + $0x10] sm:$0xf]
        %v342 = vld [vmem:[%s334 + $0x14] sm:$0xf]
        %v343 = vld [vmem:[%s334 + $0x18] sm:$0xf]
        %v344 = vld [vmem:[%s334 + $0x1c] sm:$0xf]
        %v345 = vld [vmem:[%s334 + $0x20] sm:$0xf]
        %v346 = vld [vmem:[%s334 + $0x24] sm:$0xf]
        %v347 = vld [vmem:[%s334 + $0x28] sm:$0xf]
        %v348 = vld [vmem:[%s334 + $0x2c] sm:$0xf]
        %v349 = vld [vmem:[%s334 + $0x30] sm:$0xf]
        %v350 = vld [vmem:[%s334 + $0x34] sm:$0xf]
        %v351 = vld [vmem:[%s334 + $0x38] sm:$0xf]
        %v352 = vld [vmem:[%s334 + $0x3c] sm:$0xf]
        %v353 = vld [vmem:[%s334 + $0x40] sm:$0xf]
        %v354 = vld [vmem:[%s334 + $0x44] sm:$0xf]
        %v355 = vld [vmem:[%s334 + $0x48] sm:$0xf]
        %v356 = vld [vmem:[%s334 + $0x4c] sm:$0xf]
        %v357 = vld [vmem:[%s334 + $0x50] sm:$0xf]
        %v358 = vld [vmem:[%s334 + $0x54] sm:$0xf]
        %v359 = vld [vmem:[%s334 + $0x58] sm:$0xf]
        %v360 = vld [vmem:[%s334 + $0x5c] sm:$0xf]
        %v361 = vld [vmem:[%s334 + $0x60] sm:$0xf]
        %v362 = vld [vmem:[%s334 + $0x64] sm:$0xf]
        %v363 = vld [vmem:[%s334 + $0x68] sm:$0xf]
        %v364 = vld [vmem:[%s334 + $0x6c] sm:$0xf]
        %v365 = vld [vmem:[%s334 + $0x70] sm:$0xf]
        %v366 = vld [vmem:[%s334 + $0x74] sm:$0xf]
        %v367 = vld [vmem:[%s334 + $0x78] sm:$0xf]
        %v368 = vld [vmem:[%s334 + $0x7c] sm:$0xf]
        %v369 = vld [vmem:[%s334 + $0x80] sm:$0xf]
        %v370 = vld [vmem:[%s334 + $0x84] sm:$0xf]
        %v371 = vld [vmem:[%s334 + $0x88] sm:$0xf]
        %v372 = vld [vmem:[%s334 + $0x8c] sm:$0xf]
        %v373 = vld [vmem:[%s334 + $0x90] sm:$0xf]
        %v374 = vld [vmem:[%s334 + $0x94] sm:$0xf]
        %v375 = vld [vmem:[%s334 + $0x98] sm:$0xf]
        %v376 = vld [vmem:[%s334 + $0x9c] sm:$0xf]
        %v377 = vld [vmem:[%s334 + $0xa0] sm:$0xf]
        %v378 = vld [vmem:[%s334 + $0xa4] sm:$0xf]
        %v379 = vld [vmem:[%s334 + $0xa8] sm:$0xf]
        %v380 = vld [vmem:[%s334 + $0xac] sm:$0xf]
        %v381 = vld [vmem:[%s334 + $0xb0] sm:$0xf]
        %v382 = vld [vmem:[%s334 + $0xb4] sm:$0xf]
        %v383 = vld [vmem:[%s334 + $0xb8] sm:$0xf]
        %v384 = vld [vmem:[%s334 + $0xbc] sm:$0xf]
        %v385 = vld [vmem:[%s334 + $0xc0] sm:$0xf]
        %v386 = vld [vmem:[%s334 + $0xc4] sm:$0xf]
        %v387 = vld [vmem:[%s334 + $0xc8] sm:$0xf]
        %v388 = vld [vmem:[%s334 + $0xcc] sm:$0xf]
        %v389 = vld [vmem:[%s334 + $0xd0] sm:$0xf]
        %v390 = vld [vmem:[%s334 + $0xd4] sm:$0xf]
        %v391 = vld [vmem:[%s334 + $0xd8] sm:$0xf]
        %v392 = vld [vmem:[%s334 + $0xdc] sm:$0xf]
        %v393 = vld [vmem:[%s334 + $0xe0] sm:$0xf]
        %v394 = vld [vmem:[%s334 + $0xe4] sm:$0xf]
        %v395 = vld [vmem:[%s334 + $0xe8] sm:$0xf]
        %v396 = vld [vmem:[%s334 + $0xec] sm:$0xf]
        %v453 = vunpack.c.l.b16 %v338
        %v454 = vunpack.c.l.b16 %v339
        %v455 = vunpack.c.l.b16 %v340
        %v456 = vunpack.c.l.b16 %v341
        %v457 = vunpack.c.l.b16 %v342
        %v458 = vunpack.c.l.b16 %v343
        %v459 = vunpack.c.l.b16 %v344
        %v460 = vunpack.c.l.b16 %v345
        %v461 = vunpack.c.l.b16 %v346
        %v462 = vunpack.c.l.b16 %v347
        %v463 = vunpack.c.l.b16 %v348
        %v464 = vunpack.c.l.b16 %v349
        %v465 = vunpack.c.l.b16 %v350
        %v466 = vunpack.c.l.b16 %v351
        %v467 = vunpack.c.l.b16 %v352
        %v468 = vunpack.c.l.b16 %v353
        %v469 = vunpack.c.l.b16 %v354
        %v470 = vunpack.c.l.b16 %v355
        %v471 = vunpack.c.l.b16 %v356
        %v472 = vunpack.c.l.b16 %v357
        %v473 = vunpack.c.l.b16 %v358
        %v474 = vunpack.c.l.b16 %v359
        %v475 = vunpack.c.l.b16 %v360
        %v476 = vunpack.c.l.b16 %v361
        %v477 = vunpack.c.l.b16 %v362
        %v478 = vunpack.c.l.b16 %v363
        %v479 = vunpack.c.l.b16 %v364
        %v480 = vunpack.c.l.b16 %v365
        %v481 = vunpack.c.l.b16 %v368
        %v482 = vunpack.c.l.b16 %v369
        %v483 = vunpack.c.l.b16 %v370
        %v484 = vunpack.c.l.b16 %v371
        %v485 = vunpack.c.l.b16 %v372
        %v486 = vunpack.c.l.b16 %v373
        %v487 = vunpack.c.l.b16 %v374
        %v488 = vunpack.c.l.b16 %v375
        %v489 = vunpack.c.l.b16 %v376
        %v490 = vunpack.c.l.b16 %v377
        %v491 = vunpack.c.l.b16 %v378
        %v492 = vunpack.c.l.b16 %v379
        %v493 = vunpack.c.l.b16 %v380
        %v494 = vunpack.c.l.b16 %v381
        %v495 = vunpack.c.l.b16 %v382
        %v496 = vunpack.c.l.b16 %v383
        %v497 = vunpack.c.l.b16 %v384
        %v498 = vunpack.c.l.b16 %v385
        %v499 = vunpack.c.l.b16 %v386
        %v500 = vunpack.c.l.b16 %v387
        %v501 = vunpack.c.l.b16 %v388
        %v502 = vunpack.c.l.b16 %v389
        %v503 = vunpack.c.l.b16 %v390
        %v504 = vunpack.c.l.b16 %v391
        %v505 = vunpack.c.l.b16 %v392
        %v506 = vunpack.c.l.b16 %v393
        %v507 = vunpack.c.l.b16 %v394
        %v508 = vunpack.c.l.b16 %v395
        %v509 = vpack.c.b16 %v453, %v453
        %v510 = vpack.c.b16 %v454, %v454
        %v511 = vpack.c.b16 %v455, %v455
        %v512 = vpack.c.b16 %v456, %v456
        %v513 = vpack.c.b16 %v457, %v457
        %v514 = vpack.c.b16 %v458, %v458
        %v515 = vpack.c.b16 %v459, %v459
        %v516 = vpack.c.b16 %v460, %v460
        %v517 = vpack.c.b16 %v461, %v461
        %v518 = vpack.c.b16 %v462, %v462
        %v519 = vpack.c.b16 %v463, %v463
        %v520 = vpack.c.b16 %v464, %v464
        %v521 = vpack.c.b16 %v465, %v465
        %v522 = vpack.c.b16 %v466, %v466
        %v523 = vpack.c.b16 %v467, %v467
        %v524 = vpack.c.b16 %v468, %v468
        %v525 = vpack.c.b16 %v469, %v469
        %v526 = vpack.c.b16 %v470, %v470
        %v527 = vpack.c.b16 %v471, %v471
        %v528 = vpack.c.b16 %v472, %v472
        %v529 = vpack.c.b16 %v473, %v473
        %v530 = vpack.c.b16 %v474, %v474
        %v531 = vpack.c.b16 %v475, %v475
        %v532 = vpack.c.b16 %v476, %v476
        %v533 = vpack.c.b16 %v477, %v477
        %v534 = vpack.c.b16 %v478, %v478
        %v535 = vpack.c.b16 %v479, %v479
        %v536 = vpack.c.b16 %v480, %v480
        %v537 = vpack.c.b16 %v481, %v481
        %v538 = vpack.c.b16 %v482, %v482
        %v539 = vpack.c.b16 %v483, %v483
        %v540 = vpack.c.b16 %v484, %v484
        %v541 = vpack.c.b16 %v485, %v485
        %v542 = vpack.c.b16 %v486, %v486
        %v543 = vpack.c.b16 %v487, %v487
        %v544 = vpack.c.b16 %v488, %v488
        %v545 = vpack.c.b16 %v489, %v489
        %v546 = vpack.c.b16 %v490, %v490
        %v547 = vpack.c.b16 %v491, %v491
        %v548 = vpack.c.b16 %v492, %v492
        %v549 = vpack.c.b16 %v493, %v493
        %v550 = vpack.c.b16 %v494, %v494
        %v551 = vpack.c.b16 %v495, %v495
        %v552 = vpack.c.b16 %v496, %v496
        %v553 = vpack.c.b16 %v497, %v497
        %v554 = vpack.c.b16 %v498, %v498
        %v555 = vpack.c.b16 %v499, %v499
        %v556 = vpack.c.b16 %v500, %v500
        %v557 = vpack.c.b16 %v501, %v501
        %v558 = vpack.c.b16 %v502, %v502
        %v559 = vpack.c.b16 %v503, %v503
        %v560 = vpack.c.b16 %v504, %v504
        %v561 = vpack.c.b16 %v505, %v505
        %v562 = vpack.c.b16 %v506, %v506
        %v563 = vpack.c.b16 %v507, %v507
        %v564 = vpack.c.b16 %v508, %v508
        %565 = vrot.lane.b32.xlu0 %v509, 6
        %v566 = vpop.permute.xlu0 %565
        %567 = vrot.lane.b32.xlu0 %v510, 6
        %v568 = vpop.permute.xlu0 %567
        %569 = vrot.lane.b32.xlu0 %v511, 6
        %v570 = vpop.permute.xlu0 %569
        %571 = vrot.lane.b32.xlu0 %v512, 6
        %v572 = vpop.permute.xlu0 %571
        %573 = vrot.lane.b32.xlu0 %v513, 6
        %v574 = vpop.permute.xlu0 %573
        %575 = vrot.lane.b32.xlu0 %v514, 6
        %v576 = vpop.permute.xlu0 %575
        %577 = vrot.lane.b32.xlu0 %v515, 6
        %v578 = vpop.permute.xlu0 %577
        %579 = vrot.lane.b32.xlu0 %v516, 6
        %v580 = vpop.permute.xlu0 %579
        %581 = vrot.lane.b32.xlu0 %v517, 6
        %v582 = vpop.permute.xlu0 %581
        %583 = vrot.lane.b32.xlu0 %v518, 6
        %v584 = vpop.permute.xlu0 %583
        %585 = vrot.lane.b32.xlu0 %v519, 6
        %v586 = vpop.permute.xlu0 %585
        %587 = vrot.lane.b32.xlu0 %v520, 6
        %v588 = vpop.permute.xlu0 %587
        %589 = vrot.lane.b32.xlu0 %v521, 6
        %v590 = vpop.permute.xlu0 %589
        %591 = vrot.lane.b32.xlu0 %v522, 6
        %v592 = vpop.permute.xlu0 %591
        %593 = vrot.lane.b32.xlu0 %v523, 6
        %v594 = vpop.permute.xlu0 %593
        %595 = vrot.lane.b32.xlu0 %v524, 6
        %v596 = vpop.permute.xlu0 %595
        %597 = vrot.lane.b32.xlu0 %v525, 6
        %v598 = vpop.permute.xlu0 %597
        %599 = vrot.lane.b32.xlu0 %v526, 6
        %v600 = vpop.permute.xlu0 %599
        %601 = vrot.lane.b32.xlu0 %v527, 6
        %v602 = vpop.permute.xlu0 %601
        %603 = vrot.lane.b32.xlu0 %v528, 6
        %v604 = vpop.permute.xlu0 %603
        %605 = vrot.lane.b32.xlu0 %v529, 6
        %v606 = vpop.permute.xlu0 %605
        %607 = vrot.lane.b32.xlu0 %v530, 6
        %v608 = vpop.permute.xlu0 %607
        %609 = vrot.lane.b32.xlu0 %v531, 6
        %v610 = vpop.permute.xlu0 %609
        %611 = vrot.lane.b32.xlu0 %v532, 6
        %v612 = vpop.permute.xlu0 %611
        %613 = vrot.lane.b32.xlu0 %v533, 6
        %v614 = vpop.permute.xlu0 %613
        %615 = vrot.lane.b32.xlu0 %v534, 6
        %v616 = vpop.permute.xlu0 %615
        %617 = vrot.lane.b32.xlu0 %v535, 6
        %v618 = vpop.permute.xlu0 %617
        %619 = vrot.lane.b32.xlu0 %v536, 6
        %v620 = vpop.permute.xlu0 %619
        %621 = vrot.lane.b32.xlu0 %v537, 6
        %v622 = vpop.permute.xlu0 %621
        %623 = vrot.lane.b32.xlu0 %v538, 6
        %v624 = vpop.permute.xlu0 %623
        %625 = vrot.lane.b32.xlu0 %v539, 6
        %v626 = vpop.permute.xlu0 %625
        %627 = vrot.lane.b32.xlu0 %v540, 6
        %v628 = vpop.permute.xlu0 %627
        %629 = vrot.lane.b32.xlu0 %v541, 6
        %v630 = vpop.permute.xlu0 %629
        %631 = vrot.lane.b32.xlu0 %v542, 6
        %v632 = vpop.permute.xlu0 %631
        %633 = vrot.lane.b32.xlu0 %v543, 6
        %v634 = vpop.permute.xlu0 %633
        %635 = vrot.lane.b32.xlu0 %v544, 6
        %v636 = vpop.permute.xlu0 %635
        %637 = vrot.lane.b32.xlu0 %v545, 6
        %v638 = vpop.permute.xlu0 %637
        %639 = vrot.lane.b32.xlu0 %v546, 6
        %v640 = vpop.permute.xlu0 %639
        %641 = vrot.lane.b32.xlu0 %v547, 6
        %v642 = vpop.permute.xlu0 %641
        %643 = vrot.lane.b32.xlu0 %v548, 6
        %v644 = vpop.permute.xlu0 %643
        %645 = vrot.lane.b32.xlu0 %v549, 6
        %v646 = vpop.permute.xlu0 %645
        %647 = vrot.lane.b32.xlu0 %v550, 6
        %v648 = vpop.permute.xlu0 %647
        %649 = vrot.lane.b32.xlu0 %v551, 6
        %v650 = vpop.permute.xlu0 %649
        %651 = vrot.lane.b32.xlu0 %v552, 6
        %v652 = vpop.permute.xlu0 %651
        %653 = vrot.lane.b32.xlu0 %v553, 6
        %v654 = vpop.permute.xlu0 %653
        %655 = vrot.lane.b32.xlu0 %v554, 6
        %v656 = vpop.permute.xlu0 %655
        %657 = vrot.lane.b32.xlu0 %v555, 6
        %v658 = vpop.permute.xlu0 %657
        %659 = vrot.lane.b32.xlu0 %v556, 6
        %v660 = vpop.permute.xlu0 %659
        %661 = vrot.lane.b32.xlu0 %v557, 6
        %v662 = vpop.permute.xlu0 %661
        %663 = vrot.lane.b32.xlu0 %v558, 6
        %v664 = vpop.permute.xlu0 %663
        %665 = vrot.lane.b32.xlu0 %v559, 6
        %v666 = vpop.permute.xlu0 %665
        %667 = vrot.lane.b32.xlu0 %v560, 6
        %v668 = vpop.permute.xlu0 %667
        %669 = vrot.lane.b32.xlu0 %v561, 6
        %v670 = vpop.permute.xlu0 %669
        %671 = vrot.lane.b32.xlu0 %v562, 6
        %v672 = vpop.permute.xlu0 %671
        %673 = vrot.lane.b32.xlu0 %v563, 6
        %v674 = vpop.permute.xlu0 %673
        %675 = vrot.lane.b32.xlu0 %v564, 6
        %v676 = vpop.permute.xlu0 %675
        %v679 = vunpack.c.l.b16 %v366
        %v680 = vunpack.c.l.b16 %v396
        %v681 = vpack.c.b16 %v679, %v679
        %v682 = vpack.c.b16 %v680, %v680
        %683 = vrot.lane.b32.xlu0 %v510, 12
        %v684 = vpop.permute.xlu0 %683
        %685 = vrot.lane.b32.xlu0 %v511, 12
        %v686 = vpop.permute.xlu0 %685
        %687 = vrot.lane.b32.xlu0 %v512, 12
        %v688 = vpop.permute.xlu0 %687
        %689 = vrot.lane.b32.xlu0 %v513, 12
        %v690 = vpop.permute.xlu0 %689
        %691 = vrot.lane.b32.xlu0 %v514, 12
        %v692 = vpop.permute.xlu0 %691
        %693 = vrot.lane.b32.xlu0 %v515, 12
        %v694 = vpop.permute.xlu0 %693
        %695 = vrot.lane.b32.xlu0 %v516, 12
        %v696 = vpop.permute.xlu0 %695
        %697 = vrot.lane.b32.xlu0 %v517, 12
        %v698 = vpop.permute.xlu0 %697
        %699 = vrot.lane.b32.xlu0 %v518, 12
        %v700 = vpop.permute.xlu0 %699
        %701 = vrot.lane.b32.xlu0 %v519, 12
        %v702 = vpop.permute.xlu0 %701
        %703 = vrot.lane.b32.xlu0 %v520, 12
        %v704 = vpop.permute.xlu0 %703
        %705 = vrot.lane.b32.xlu0 %v521, 12
        %v706 = vpop.permute.xlu0 %705
        %707 = vrot.lane.b32.xlu0 %v522, 12
        %v708 = vpop.permute.xlu0 %707
        %709 = vrot.lane.b32.xlu0 %v523, 12
        %v710 = vpop.permute.xlu0 %709
        %711 = vrot.lane.b32.xlu0 %v524, 12
        %v712 = vpop.permute.xlu0 %711
        %713 = vrot.lane.b32.xlu0 %v525, 12
        %v714 = vpop.permute.xlu0 %713
        %715 = vrot.lane.b32.xlu0 %v526, 12
        %v716 = vpop.permute.xlu0 %715
        %717 = vrot.lane.b32.xlu0 %v527, 12
        %v718 = vpop.permute.xlu0 %717
        %719 = vrot.lane.b32.xlu0 %v528, 12
        %v720 = vpop.permute.xlu0 %719
        %721 = vrot.lane.b32.xlu0 %v529, 12
        %v722 = vpop.permute.xlu0 %721
        %723 = vrot.lane.b32.xlu0 %v530, 12
        %v724 = vpop.permute.xlu0 %723
        %725 = vrot.lane.b32.xlu0 %v531, 12
        %v726 = vpop.permute.xlu0 %725
        %727 = vrot.lane.b32.xlu0 %v532, 12
        %v728 = vpop.permute.xlu0 %727
        %729 = vrot.lane.b32.xlu0 %v533, 12
        %v730 = vpop.permute.xlu0 %729
        %731 = vrot.lane.b32.xlu0 %v534, 12
        %v732 = vpop.permute.xlu0 %731
        %733 = vrot.lane.b32.xlu0 %v535, 12
        %v734 = vpop.permute.xlu0 %733
        %735 = vrot.lane.b32.xlu0 %v536, 12
        %v736 = vpop.permute.xlu0 %735
        %737 = vrot.lane.b32.xlu0 %v681, 12
        %v738 = vpop.permute.xlu0 %737
        %739 = vrot.lane.b32.xlu0 %v538, 12
        %v740 = vpop.permute.xlu0 %739
        %741 = vrot.lane.b32.xlu0 %v539, 12
        %v742 = vpop.permute.xlu0 %741
        %743 = vrot.lane.b32.xlu0 %v540, 12
        %v744 = vpop.permute.xlu0 %743
        %745 = vrot.lane.b32.xlu0 %v541, 12
        %v746 = vpop.permute.xlu0 %745
        %747 = vrot.lane.b32.xlu0 %v542, 12
        %v748 = vpop.permute.xlu0 %747
        %749 = vrot.lane.b32.xlu0 %v543, 12
        %v750 = vpop.permute.xlu0 %749
        %751 = vrot.lane.b32.xlu0 %v544, 12
        %v752 = vpop.permute.xlu0 %751
        %753 = vrot.lane.b32.xlu0 %v545, 12
        %v754 = vpop.permute.xlu0 %753
        %755 = vrot.lane.b32.xlu0 %v546, 12
        %v756 = vpop.permute.xlu0 %755
        %757 = vrot.lane.b32.xlu0 %v547, 12
        %v758 = vpop.permute.xlu0 %757
        %759 = vrot.lane.b32.xlu0 %v548, 12
        %v760 = vpop.permute.xlu0 %759
        %761 = vrot.lane.b32.xlu0 %v549, 12
        %v762 = vpop.permute.xlu0 %761
        %763 = vrot.lane.b32.xlu0 %v550, 12
        %v764 = vpop.permute.xlu0 %763
        %765 = vrot.lane.b32.xlu0 %v551, 12
        %v766 = vpop.permute.xlu0 %765
        %767 = vrot.lane.b32.xlu0 %v552, 12
        %v768 = vpop.permute.xlu0 %767
        %769 = vrot.lane.b32.xlu0 %v553, 12
        %v770 = vpop.permute.xlu0 %769
        %771 = vrot.lane.b32.xlu0 %v554, 12
        %v772 = vpop.permute.xlu0 %771
        %773 = vrot.lane.b32.xlu0 %v555, 12
        %v774 = vpop.permute.xlu0 %773
        %775 = vrot.lane.b32.xlu0 %v556, 12
        %v776 = vpop.permute.xlu0 %775
        %777 = vrot.lane.b32.xlu0 %v557, 12
        %v778 = vpop.permute.xlu0 %777
        %779 = vrot.lane.b32.xlu0 %v558, 12
        %v780 = vpop.permute.xlu0 %779
        %781 = vrot.lane.b32.xlu0 %v559, 12
        %v782 = vpop.permute.xlu0 %781
        %783 = vrot.lane.b32.xlu0 %v560, 12
        %v784 = vpop.permute.xlu0 %783
        %785 = vrot.lane.b32.xlu0 %v561, 12
        %v786 = vpop.permute.xlu0 %785
        %787 = vrot.lane.b32.xlu0 %v562, 12
        %v788 = vpop.permute.xlu0 %787
        %789 = vrot.lane.b32.xlu0 %v563, 12
        %v790 = vpop.permute.xlu0 %789
        %791 = vrot.lane.b32.xlu0 %v564, 12
        %v792 = vpop.permute.xlu0 %791
        %793 = vrot.lane.b32.xlu0 %v682, 12
        %v794 = vpop.permute.xlu0 %793
        %vm795 = vcmask 48128
        %v798 = vsel %vm795, %v337, %v566
        %v801 = vsel %vm795, %v338, %v568
        %v804 = vsel %vm795, %v339, %v570
        %v807 = vsel %vm795, %v340, %v572
        %v810 = vsel %vm795, %v341, %v574
        %v813 = vsel %vm795, %v342, %v576
        %v816 = vsel %vm795, %v343, %v578
        %v819 = vsel %vm795, %v344, %v580
        %v822 = vsel %vm795, %v345, %v582
        %v825 = vsel %vm795, %v346, %v584
        %v828 = vsel %vm795, %v347, %v586
        %v831 = vsel %vm795, %v348, %v588
        %v834 = vsel %vm795, %v349, %v590
        %v837 = vsel %vm795, %v350, %v592
        %v840 = vsel %vm795, %v351, %v594
        %v843 = vsel %vm795, %v352, %v596
        %v846 = vsel %vm795, %v353, %v598
        %v849 = vsel %vm795, %v354, %v600
        %v852 = vsel %vm795, %v355, %v602
        %v855 = vsel %vm795, %v356, %v604
        %v858 = vsel %vm795, %v357, %v606
        %v861 = vsel %vm795, %v358, %v608
        %v864 = vsel %vm795, %v359, %v610
        %v867 = vsel %vm795, %v360, %v612
        %v870 = vsel %vm795, %v361, %v614
        %v873 = vsel %vm795, %v362, %v616
        %v876 = vsel %vm795, %v363, %v618
        %v879 = vsel %vm795, %v364, %v620
        %v882 = vsel %vm795, %v367, %v622
        %v885 = vsel %vm795, %v368, %v624
        %v888 = vsel %vm795, %v369, %v626
        %v891 = vsel %vm795, %v370, %v628
        %v894 = vsel %vm795, %v371, %v630
        %v897 = vsel %vm795, %v372, %v632
        %v900 = vsel %vm795, %v373, %v634
        %v903 = vsel %vm795, %v374, %v636
        %v906 = vsel %vm795, %v375, %v638
        %v909 = vsel %vm795, %v376, %v640
        %v912 = vsel %vm795, %v377, %v642
        %v915 = vsel %vm795, %v378, %v644
        %v918 = vsel %vm795, %v379, %v646
        %v921 = vsel %vm795, %v380, %v648
        %v924 = vsel %vm795, %v381, %v650
        %v927 = vsel %vm795, %v382, %v652
        %v930 = vsel %vm795, %v383, %v654
        %v933 = vsel %vm795, %v384, %v656
        %v936 = vsel %vm795, %v385, %v658
        %v939 = vsel %vm795, %v386, %v660
        %v942 = vsel %vm795, %v387, %v662
        %v945 = vsel %vm795, %v388, %v664
        %v948 = vsel %vm795, %v389, %v666
        %v951 = vsel %vm795, %v390, %v668
        %v954 = vsel %vm795, %v391, %v670
        %v957 = vsel %vm795, %v392, %v672
        %v960 = vsel %vm795, %v393, %v674
        %v963 = vsel %vm795, %v394, %v676
        %vm964 = vcmask 97280
        %v966 = vsel %vm964, %v798, %v684
        %v968 = vsel %vm964, %v801, %v686
        %v970 = vsel %vm964, %v804, %v688
        %v972 = vsel %vm964, %v807, %v690
        %v974 = vsel %vm964, %v810, %v692
        %v976 = vsel %vm964, %v813, %v694
        %v978 = vsel %vm964, %v816, %v696
        %v980 = vsel %vm964, %v819, %v698
        %v982 = vsel %vm964, %v822, %v700
        %v984 = vsel %vm964, %v825, %v702
        %v986 = vsel %vm964, %v828, %v704
        %v988 = vsel %vm964, %v831, %v706
        %v990 = vsel %vm964, %v834, %v708
        %v992 = vsel %vm964, %v837, %v710
        %v994 = vsel %vm964, %v840, %v712
        %v996 = vsel %vm964, %v843, %v714
        %v998 = vsel %vm964, %v846, %v716
        %v1000 = vsel %vm964, %v849, %v718
        %v1002 = vsel %vm964, %v852, %v720
        %v1004 = vsel %vm964, %v855, %v722
        %v1006 = vsel %vm964, %v858, %v724
        %v1008 = vsel %vm964, %v861, %v726
        %v1010 = vsel %vm964, %v864, %v728
        %v1012 = vsel %vm964, %v867, %v730
        %v1014 = vsel %vm964, %v870, %v732
        %v1016 = vsel %vm964, %v873, %v734
        %v1018 = vsel %vm964, %v876, %v736
        %v1020 = vsel %vm964, %v879, %v738
        %v1022 = vsel %vm964, %v882, %v740
        %v1024 = vsel %vm964, %v885, %v742
        %v1026 = vsel %vm964, %v888, %v744
        %v1028 = vsel %vm964, %v891, %v746
        %v1030 = vsel %vm964, %v894, %v748
        %v1032 = vsel %vm964, %v897, %v750
        %v1034 = vsel %vm964, %v900, %v752
        %v1036 = vsel %vm964, %v903, %v754
        %v1038 = vsel %vm964, %v906, %v756
        %v1040 = vsel %vm964, %v909, %v758
        %v1042 = vsel %vm964, %v912, %v760
        %v1044 = vsel %vm964, %v915, %v762
        %v1046 = vsel %vm964, %v918, %v764
        %v1048 = vsel %vm964, %v921, %v766
        %v1050 = vsel %vm964, %v924, %v768
        %v1052 = vsel %vm964, %v927, %v770
        %v1054 = vsel %vm964, %v930, %v772
        %v1056 = vsel %vm964, %v933, %v774
        %v1058 = vsel %vm964, %v936, %v776
        %v1060 = vsel %vm964, %v939, %v778
        %v1062 = vsel %vm964, %v942, %v780
        %v1064 = vsel %vm964, %v945, %v782
        %v1066 = vsel %vm964, %v948, %v784
        %v1068 = vsel %vm964, %v951, %v786
        %v1070 = vsel %vm964, %v954, %v788
        %v1072 = vsel %vm964, %v957, %v790
        %v1074 = vsel %vm964, %v960, %v792
        %v1076 = vsel %vm964, %v963, %v794
        %v1077 = vld [vmem:[%s1] sm:$0xf]
        %v1078 = vld [vmem:[%s1 + $0x4] sm:$0xf]
        %v1079 = vld [vmem:[%s1 + $0x8] sm:$0x1]
        %v1080 = vld [vmem:[%s2] sm:$0x1]
        %v1082 = vlaneseq
        %v1083 = vshrl.u32 %v1082, 7
        %v1084 = vsub.s32 0, %v1083
        %v1085 = vrot.slane %v1080, %v1084
        %v1143 = vunpack.c.l.b16 %v966
        %v1144 = vunpack.c.l.b16 %v968
        %v1145 = vunpack.c.l.b16 %v970
        %v1146 = vunpack.c.l.b16 %v972
        %v1147 = vunpack.c.l.b16 %v974
        %v1148 = vunpack.c.l.b16 %v976
        %v1149 = vunpack.c.l.b16 %v978
        %v1150 = vunpack.c.l.b16 %v980
        %v1151 = vunpack.c.l.b16 %v982
        %v1152 = vunpack.c.l.b16 %v984
        %v1153 = vunpack.c.l.b16 %v986
        %v1154 = vunpack.c.l.b16 %v988
        %v1155 = vunpack.c.l.b16 %v990
        %v1156 = vunpack.c.l.b16 %v992
        %v1157 = vunpack.c.l.b16 %v994
        %v1158 = vunpack.c.l.b16 %v996
        %v1159 = vunpack.c.l.b16 %v998
        %v1160 = vunpack.c.l.b16 %v1000
        %v1161 = vunpack.c.l.b16 %v1002
        %v1162 = vunpack.c.l.b16 %v1004
        %v1163 = vunpack.c.l.b16 %v1006
        %v1164 = vunpack.c.l.b16 %v1008
        %v1165 = vunpack.c.l.b16 %v1010
        %v1166 = vunpack.c.l.b16 %v1012
        %v1167 = vunpack.c.l.b16 %v1014
        %v1168 = vunpack.c.l.b16 %v1016
        %v1169 = vunpack.c.l.b16 %v1018
        %v1170 = vunpack.c.l.b16 %v1020
        %v1171 = vunpack.c.l.b16 %v1022
        %v1172 = vunpack.c.l.b16 %v1024
        %v1173 = vunpack.c.l.b16 %v1026
        %v1174 = vunpack.c.l.b16 %v1028
        %v1175 = vunpack.c.l.b16 %v1030
        %v1176 = vunpack.c.l.b16 %v1032
        %v1177 = vunpack.c.l.b16 %v1034
        %v1178 = vunpack.c.l.b16 %v1036
        %v1179 = vunpack.c.l.b16 %v1038
        %v1180 = vunpack.c.l.b16 %v1040
        %v1181 = vunpack.c.l.b16 %v1042
        %v1182 = vunpack.c.l.b16 %v1044
        %v1183 = vunpack.c.l.b16 %v1046
        %v1184 = vunpack.c.l.b16 %v1048
        %v1185 = vunpack.c.l.b16 %v1050
        %v1186 = vunpack.c.l.b16 %v1052
        %v1187 = vunpack.c.l.b16 %v1054
        %v1188 = vunpack.c.l.b16 %v1056
        %v1189 = vunpack.c.l.b16 %v1058
        %v1190 = vunpack.c.l.b16 %v1060
        %v1191 = vunpack.c.l.b16 %v1062
        %v1192 = vunpack.c.l.b16 %v1064
        %v1193 = vunpack.c.l.b16 %v1066
        %v1194 = vunpack.c.l.b16 %v1068
        %v1195 = vunpack.c.l.b16 %v1070
        %v1196 = vunpack.c.l.b16 %v1072
        %v1197 = vunpack.c.l.b16 %v1074
        %v1198 = vunpack.c.l.b16 %v1076
        %v1199 = vpack.c.b16 %v1144, %v1143
        %v1200 = vpack.c.b16 %v1146, %v1145
        %v1201 = vpack.c.b16 %v1148, %v1147
        %v1202 = vpack.c.b16 %v1150, %v1149
        %v1203 = vpack.c.b16 %v1152, %v1151
        %v1204 = vpack.c.b16 %v1154, %v1153
        %v1205 = vpack.c.b16 %v1156, %v1155
        %v1206 = vpack.c.b16 %v1158, %v1157
        %v1207 = vpack.c.b16 %v1160, %v1159
        %v1208 = vpack.c.b16 %v1162, %v1161
        %v1209 = vpack.c.b16 %v1164, %v1163
        %v1210 = vpack.c.b16 %v1166, %v1165
        %v1211 = vpack.c.b16 %v1168, %v1167
        %v1212 = vpack.c.b16 %v1170, %v1169
        %v1213 = vpack.c.b16 %v1172, %v1171
        %v1214 = vpack.c.b16 %v1174, %v1173
        %v1215 = vpack.c.b16 %v1176, %v1175
        %v1216 = vpack.c.b16 %v1178, %v1177
        %v1217 = vpack.c.b16 %v1180, %v1179
        %v1218 = vpack.c.b16 %v1182, %v1181
        %v1219 = vpack.c.b16 %v1184, %v1183
        %v1220 = vpack.c.b16 %v1186, %v1185
        %v1221 = vpack.c.b16 %v1188, %v1187
        %v1222 = vpack.c.b16 %v1190, %v1189
        %v1223 = vpack.c.b16 %v1192, %v1191
        %v1224 = vpack.c.b16 %v1194, %v1193
        %v1225 = vpack.c.b16 %v1196, %v1195
        %v1226 = vpack.c.b16 %v1198, %v1197
        %v1230 = vunpack.c.l.b16 %v1077
        %v1231 = vunpack.c.l.b16 %v1078
        %v1232 = vunpack.c.l.b16 %v1079
        %v1233 = vpack.c.b16 %v1231, %v1230
        %v1234 = vpack.c.b16 %v1232, %v1232
        %vm1236 = vcmask 146432
        %v1238 = vsel %vm1236, %v1199, 0
        %v1241 = vsel %vm1236, %v1200, 0
        %v1244 = vsel %vm1236, %v1201, 0
        %v1247 = vsel %vm1236, %v1202, 0
        %v1250 = vsel %vm1236, %v1203, 0
        %v1253 = vsel %vm1236, %v1204, 0
        %v1256 = vsel %vm1236, %v1205, 0
        %v1259 = vsel %vm1236, %v1206, 0
        %v1262 = vsel %vm1236, %v1207, 0
        %v1265 = vsel %vm1236, %v1208, 0
        %v1268 = vsel %vm1236, %v1209, 0
        %v1271 = vsel %vm1236, %v1210, 0
        %v1274 = vsel %vm1236, %v1211, 0
        %v1277 = vsel %vm1236, %v1212, 0
        %v1280 = vsel %vm1236, %v1213, 0
        %v1283 = vsel %vm1236, %v1214, 0
        %v1286 = vsel %vm1236, %v1215, 0
        %v1289 = vsel %vm1236, %v1216, 0
        %v1292 = vsel %vm1236, %v1217, 0
        %v1295 = vsel %vm1236, %v1218, 0
        %v1298 = vsel %vm1236, %v1219, 0
        %v1301 = vsel %vm1236, %v1220, 0
        %v1304 = vsel %vm1236, %v1221, 0
        %v1307 = vsel %vm1236, %v1222, 0
        %v1310 = vsel %vm1236, %v1223, 0
        %v1313 = vsel %vm1236, %v1224, 0
        %v1316 = vsel %vm1236, %v1225, 0
        %v1319 = vsel %vm1236, %v1226, 0
        %vm1321 = vcmask 1040384
        %v1323 = vsel %vm1321, %v1234, 0
        %1325 = vmatprep.subr.bf16.mxu0 0
        %1326 = vmatpush1.bf16.msra.mxu0 %v1233
        %1327 = vmatprep.subr.bf16.mxu0 0
        %1328 = vmatpush1.bf16.msra.mxu0 %v1323
        %1329 = vmatprep.subr.bf16.mxu0 0
        %1330 = vmatpush1.bf16.msra.mxu0 0
        %1331 = vmatprep.subr.bf16.mxu0 0
        %1332 = vmatpush1.bf16.msra.mxu0 0
        %1333 = vmatprep.subr.bf16.mxu0 0
        %1334 = vmatpush1.bf16.msra.mxu0 0
        %1335 = vmatprep.subr.bf16.mxu0 0
        %1336 = vmatpush1.bf16.msra.mxu0 0
        %1337 = vmatprep.subr.bf16.mxu0 0
        %1338 = vmatpush1.bf16.msra.mxu0 0
        %1339 = vmatprep.subr.bf16.mxu0 0
        %1340 = vmatpush1.bf16.msra.mxu0 0
        %1341 = vmatprep.subr.bf16.mxu0 0
        %1342 = vmatpush1.bf16.msra.mxu0 0
        %1343 = vmatprep.subr.bf16.mxu0 0
        %1344 = vmatpush1.bf16.msra.mxu0 0
        %1345 = vmatprep.subr.bf16.mxu0 0
        %1346 = vmatpush1.bf16.msra.mxu0 0
        %1347 = vmatprep.subr.bf16.mxu0 0
        %1348 = vmatpush1.bf16.msra.mxu0 0
        %1349 = vmatprep.subr.bf16.mxu0 0
        %1350 = vmatpush1.bf16.msra.mxu0 0
        %1351 = vmatprep.subr.bf16.mxu0 0
        %1352 = vmatpush1.bf16.msra.mxu0 0
        %1353 = vmatprep.subr.bf16.mxu0 0
        %1354 = vmatpush1.bf16.msra.mxu0 0
        %1355 = vmatprep.subr.bf16.mxu0 0
        %1356 = vmatpush1.bf16.msra.mxu0 0
        %1357 = vmatprep.mubr.bf16.mxu0 0
        %1358 = vmatmul.mubr.bf16.gmra.mrb[0].mxu0 %v1238
        %v1359 = vpop.f32.mrb[0].mxu0
        %v1360 = vadd.f32 %v1085, %v1359
        %v1361 = vpop.f32.mrb[0].mxu0
        %v1362 = vpop.f32.mrb[0].mxu0
        %v1363 = vadd.f32 %v1085, %v1362
        %v1364 = vpop.f32.mrb[0].mxu0
        %1365 = vmatprep.mubr.bf16.mxu0 0
        %1366 = vmatmul.mubr.bf16.gmra.mrb[0].mxu0 %v1241
        %v1367 = vpop.f32.mrb[0].mxu0
        %v1368 = vadd.f32 %v1085, %v1367
        %v1369 = vpop.f32.mrb[0].mxu0
        %v1370 = vpop.f32.mrb[0].mxu0
        %v1371 = vadd.f32 %v1085, %v1370
        %v1372 = vpop.f32.mrb[0].mxu0
        %1373 = vmatprep.mubr.bf16.mxu0 0
        %1374 = vmatmul.mubr.bf16.gmra.mrb[0].mxu0 %v1244
        %v1375 = vpop.f32.mrb[0].mxu0
        %v1376 = vadd.f32 %v1085, %v1375
        %v1377 = vpop.f32.mrb[0].mxu0
        %v1378 = vpop.f32.mrb[0].mxu0
        %v1379 = vadd.f32 %v1085, %v1378
        %v1380 = vpop.f32.mrb[0].mxu0
        %1381 = vmatprep.mubr.bf16.mxu0 0
        %1382 = vmatmul.mubr.bf16.gmra.mrb[0].mxu0 %v1247
        %v1383 = vpop.f32.mrb[0].mxu0
        %v1384 = vadd.f32 %v1085, %v1383
        %v1385 = vpop.f32.mrb[0].mxu0
        %v1386 = vpop.f32.mrb[0].mxu0
        %v1387 = vadd.f32 %v1085, %v1386
        %v1388 = vpop.f32.mrb[0].mxu0
        %1389 = vmatprep.mubr.bf16.mxu0 0
        %1390 = vmatmul.mubr.bf16.gmra.mrb[0].mxu0 %v1250
        %v1391 = vpop.f32.mrb[0].mxu0
        %v1392 = vadd.f32 %v1085, %v1391
        %v1393 = vpop.f32.mrb[0].mxu0
        %v1394 = vpop.f32.mrb[0].mxu0
        %v1395 = vadd.f32 %v1085, %v1394
        %v1396 = vpop.f32.mrb[0].mxu0
        %1397 = vmatprep.mubr.bf16.mxu0 0
        %1398 = vmatmul.mubr.bf16.gmra.mrb[0].mxu0 %v1253
        %v1399 = vpop.f32.mrb[0].mxu0
        %v1400 = vadd.f32 %v1085, %v1399
        %v1401 = vpop.f32.mrb[0].mxu0
        %v1402 = vpop.f32.mrb[0].mxu0
        %v1403 = vadd.f32 %v1085, %v1402
        %v1404 = vpop.f32.mrb[0].mxu0
        %1405 = vmatprep.mubr.bf16.mxu0 0
        %1406 = vmatmul.mubr.bf16.gmra.mrb[0].mxu0 %v1256
        %v1407 = vpop.f32.mrb[0].mxu0
        %v1408 = vadd.f32 %v1085, %v1407
        %v1409 = vpop.f32.mrb[0].mxu0
        %v1410 = vpop.f32.mrb[0].mxu0
        %v1411 = vadd.f32 %v1085, %v1410
        %v1412 = vpop.f32.mrb[0].mxu0
        %1413 = vmatprep.mubr.bf16.mxu0 0
        %1414 = vmatmul.mubr.bf16.gmra.mrb[0].mxu0 %v1259
        %v1415 = vpop.f32.mrb[0].mxu0
        %v1416 = vadd.f32 %v1085, %v1415
        %v1417 = vpop.f32.mrb[0].mxu0
        %v1418 = vpop.f32.mrb[0].mxu0
        %v1419 = vadd.f32 %v1085, %v1418
        %v1420 = vpop.f32.mrb[0].mxu0
        %1421 = vmatprep.mubr.bf16.mxu0 0
        %1422 = vmatmul.mubr.bf16.gmra.mrb[0].mxu0 %v1262
        %v1423 = vpop.f32.mrb[0].mxu0
        %v1424 = vadd.f32 %v1085, %v1423
        %v1425 = vpop.f32.mrb[0].mxu0
        %v1426 = vpop.f32.mrb[0].mxu0
        %v1427 = vadd.f32 %v1085, %v1426
        %v1428 = vpop.f32.mrb[0].mxu0
        %1429 = vmatprep.mubr.bf16.mxu0 0
        %1430 = vmatmul.mubr.bf16.gmra.mrb[0].mxu0 %v1265
        %v1431 = vpop.f32.mrb[0].mxu0
        %v1432 = vadd.f32 %v1085, %v1431
        %v1433 = vpop.f32.mrb[0].mxu0
        %v1434 = vpop.f32.mrb[0].mxu0
        %v1435 = vadd.f32 %v1085, %v1434
        %v1436 = vpop.f32.mrb[0].mxu0
        %1437 = vmatprep.mubr.bf16.mxu0 0
        %1438 = vmatmul.mubr.bf16.gmra.mrb[0].mxu0 %v1268
        %v1439 = vpop.f32.mrb[0].mxu0
        %v1440 = vadd.f32 %v1085, %v1439
        %v1441 = vpop.f32.mrb[0].mxu0
        %v1442 = vpop.f32.mrb[0].mxu0
        %v1443 = vadd.f32 %v1085, %v1442
        %v1444 = vpop.f32.mrb[0].mxu0
        %1445 = vmatprep.mubr.bf16.mxu0 0
        %1446 = vmatmul.mubr.bf16.gmra.mrb[0].mxu0 %v1271
        %v1447 = vpop.f32.mrb[0].mxu0
        %v1448 = vadd.f32 %v1085, %v1447
        %v1449 = vpop.f32.mrb[0].mxu0
        %v1450 = vpop.f32.mrb[0].mxu0
        %v1451 = vadd.f32 %v1085, %v1450
        %v1452 = vpop.f32.mrb[0].mxu0
        %1453 = vmatprep.mubr.bf16.mxu0 0
        %1454 = vmatmul.mubr.bf16.gmra.mrb[0].mxu0 %v1274
        %v1455 = vpop.f32.mrb[0].mxu0
        %v1456 = vadd.f32 %v1085, %v1455
        %v1457 = vpop.f32.mrb[0].mxu0
        %v1458 = vpop.f32.mrb[0].mxu0
        %v1459 = vadd.f32 %v1085, %v1458
        %v1460 = vpop.f32.mrb[0].mxu0
        %1461 = vmatprep.mubr.bf16.mxu0 0
        %1462 = vmatmul.mubr.bf16.gmra.mrb[0].mxu0 %v1277
        %v1463 = vpop.f32.mrb[0].mxu0
        %v1464 = vadd.f32 %v1085, %v1463
        %v1465 = vpop.f32.mrb[0].mxu0
        %v1466 = vpop.f32.mrb[0].mxu0
        %v1467 = vadd.f32 %v1085, %v1466
        %v1468 = vpop.f32.mrb[0].mxu0
        %1469 = vmatprep.mubr.bf16.mxu0 0
        %1470 = vmatmul.mubr.bf16.gmra.mrb[0].mxu0 %v1280
        %v1471 = vpop.f32.mrb[0].mxu0
        %v1472 = vadd.f32 %v1085, %v1471
        %v1473 = vpop.f32.mrb[0].mxu0
        %v1474 = vpop.f32.mrb[0].mxu0
        %v1475 = vadd.f32 %v1085, %v1474
        %v1476 = vpop.f32.mrb[0].mxu0
        %1477 = vmatprep.mubr.bf16.mxu0 0
        %1478 = vmatmul.mubr.bf16.gmra.mrb[0].mxu0 %v1283
        %v1479 = vpop.f32.mrb[0].mxu0
        %v1480 = vadd.f32 %v1085, %v1479
        %v1481 = vpop.f32.mrb[0].mxu0
        %v1482 = vpop.f32.mrb[0].mxu0
        %v1483 = vadd.f32 %v1085, %v1482
        %v1484 = vpop.f32.mrb[0].mxu0
        %1485 = vmatprep.mubr.bf16.mxu0 0
        %1486 = vmatmul.mubr.bf16.gmra.mrb[0].mxu0 %v1286
        %v1487 = vpop.f32.mrb[0].mxu0
        %v1488 = vadd.f32 %v1085, %v1487
        %v1489 = vpop.f32.mrb[0].mxu0
        %v1490 = vpop.f32.mrb[0].mxu0
        %v1491 = vadd.f32 %v1085, %v1490
        %v1492 = vpop.f32.mrb[0].mxu0
        %1493 = vmatprep.mubr.bf16.mxu0 0
        %1494 = vmatmul.mubr.bf16.gmra.mrb[0].mxu0 %v1289
        %v1495 = vpop.f32.mrb[0].mxu0
        %v1496 = vadd.f32 %v1085, %v1495
        %v1497 = vpop.f32.mrb[0].mxu0
        %v1498 = vpop.f32.mrb[0].mxu0
        %v1499 = vadd.f32 %v1085, %v1498
        %v1500 = vpop.f32.mrb[0].mxu0
        %1501 = vmatprep.mubr.bf16.mxu0 0
        %1502 = vmatmul.mubr.bf16.gmra.mrb[0].mxu0 %v1292
        %v1503 = vpop.f32.mrb[0].mxu0
        %v1504 = vadd.f32 %v1085, %v1503
        %v1505 = vpop.f32.mrb[0].mxu0
        %v1506 = vpop.f32.mrb[0].mxu0
        %v1507 = vadd.f32 %v1085, %v1506
        %v1508 = vpop.f32.mrb[0].mxu0
        %1509 = vmatprep.mubr.bf16.mxu0 0
        %1510 = vmatmul.mubr.bf16.gmra.mrb[0].mxu0 %v1295
        %v1511 = vpop.f32.mrb[0].mxu0
        %v1512 = vadd.f32 %v1085, %v1511
        %v1513 = vpop.f32.mrb[0].mxu0
        %v1514 = vpop.f32.mrb[0].mxu0
        %v1515 = vadd.f32 %v1085, %v1514
        %v1516 = vpop.f32.mrb[0].mxu0
        %1517 = vmatprep.mubr.bf16.mxu0 0
        %1518 = vmatmul.mubr.bf16.gmra.mrb[0].mxu0 %v1298
        %v1519 = vpop.f32.mrb[0].mxu0
        %v1520 = vadd.f32 %v1085, %v1519
        %v1521 = vpop.f32.mrb[0].mxu0
        %v1522 = vpop.f32.mrb[0].mxu0
        %v1523 = vadd.f32 %v1085, %v1522
        %v1524 = vpop.f32.mrb[0].mxu0
        %1525 = vmatprep.mubr.bf16.mxu0 0
        %1526 = vmatmul.mubr.bf16.gmra.mrb[0].mxu0 %v1301
        %v1527 = vpop.f32.mrb[0].mxu0
        %v1528 = vadd.f32 %v1085, %v1527
        %v1529 = vpop.f32.mrb[0].mxu0
        %v1530 = vpop.f32.mrb[0].mxu0
        %v1531 = vadd.f32 %v1085, %v1530
        %v1532 = vpop.f32.mrb[0].mxu0
        %1533 = vmatprep.mubr.bf16.mxu0 0
        %1534 = vmatmul.mubr.bf16.gmra.mrb[0].mxu0 %v1304
        %v1535 = vpop.f32.mrb[0].mxu0
        %v1536 = vadd.f32 %v1085, %v1535
        %v1537 = vpop.f32.mrb[0].mxu0
        %v1538 = vpop.f32.mrb[0].mxu0
        %v1539 = vadd.f32 %v1085, %v1538
        %v1540 = vpop.f32.mrb[0].mxu0
        %1541 = vmatprep.mubr.bf16.mxu0 0
        %1542 = vmatmul.mubr.bf16.gmra.mrb[0].mxu0 %v1307
        %v1543 = vpop.f32.mrb[0].mxu0
        %v1544 = vadd.f32 %v1085, %v1543
        %v1545 = vpop.f32.mrb[0].mxu0
        %v1546 = vpop.f32.mrb[0].mxu0
        %v1547 = vadd.f32 %v1085, %v1546
        %v1548 = vpop.f32.mrb[0].mxu0
        %1549 = vmatprep.mubr.bf16.mxu0 0
        %1550 = vmatmul.mubr.bf16.gmra.mrb[0].mxu0 %v1310
        %v1551 = vpop.f32.mrb[0].mxu0
        %v1552 = vadd.f32 %v1085, %v1551
        %v1553 = vpop.f32.mrb[0].mxu0
        %v1554 = vpop.f32.mrb[0].mxu0
        %v1555 = vadd.f32 %v1085, %v1554
        %v1556 = vpop.f32.mrb[0].mxu0
        %1557 = vmatprep.mubr.bf16.mxu0 0
        %1558 = vmatmul.mubr.bf16.gmra.mrb[0].mxu0 %v1313
        %v1559 = vpop.f32.mrb[0].mxu0
        %v1560 = vadd.f32 %v1085, %v1559
        %v1561 = vpop.f32.mrb[0].mxu0
        %v1562 = vpop.f32.mrb[0].mxu0
        %v1563 = vadd.f32 %v1085, %v1562
        %v1564 = vpop.f32.mrb[0].mxu0
        %1565 = vmatprep.mubr.bf16.mxu0 0
        %1566 = vmatmul.mubr.bf16.gmra.mrb[0].mxu0 %v1316
        %v1567 = vpop.f32.mrb[0].mxu0
        %v1568 = vadd.f32 %v1085, %v1567
        %v1569 = vpop.f32.mrb[0].mxu0
        %v1570 = vpop.f32.mrb[0].mxu0
        %v1571 = vadd.f32 %v1085, %v1570
        %v1572 = vpop.f32.mrb[0].mxu0
        %1573 = vmatprep.mubr.bf16.mxu0 0
        %1574 = vmatmul.mubr.bf16.gmra.mrb[0].mxu0 %v1319
        %v1575 = vpop.f32.mrb[0].mxu0
        %v1576 = vadd.f32 %v1085, %v1575
        %v1577 = vpop.f32.mrb[0].mxu0
        %v1578 = vpop.f32.mrb[0].mxu0
        %v1579 = vadd.f32 %v1085, %v1578
        %v1580 = vpop.f32.mrb[0].mxu0
        %1581 = vdwg.mxu0
        %v1582 = vmul.f32 %v1360, 0.1
        %v1583 = vmul.f32 %v1363, 0.1
        %v1584 = vmul.f32 %v1368, 0.1
        %v1585 = vmul.f32 %v1371, 0.1
        %v1586 = vmul.f32 %v1376, 0.1
        %v1587 = vmul.f32 %v1379, 0.1
        %v1588 = vmul.f32 %v1384, 0.1
        %v1589 = vmul.f32 %v1387, 0.1
        %v1590 = vmul.f32 %v1392, 0.1
        %v1591 = vmul.f32 %v1395, 0.1
        %v1592 = vmul.f32 %v1400, 0.1
        %v1593 = vmul.f32 %v1403, 0.1
        %v1594 = vmul.f32 %v1408, 0.1
        %v1595 = vmul.f32 %v1411, 0.1
        %v1596 = vmul.f32 %v1416, 0.1
        %v1597 = vmul.f32 %v1419, 0.1
        %v1598 = vmul.f32 %v1424, 0.1
        %v1599 = vmul.f32 %v1427, 0.1
        %v1600 = vmul.f32 %v1432, 0.1
        %v1601 = vmul.f32 %v1435, 0.1
        %v1602 = vmul.f32 %v1440, 0.1
        %v1603 = vmul.f32 %v1443, 0.1
        %v1604 = vmul.f32 %v1448, 0.1
        %v1605 = vmul.f32 %v1451, 0.1
        %v1606 = vmul.f32 %v1456, 0.1
        %v1607 = vmul.f32 %v1459, 0.1
        %v1608 = vmul.f32 %v1464, 0.1
        %v1609 = vmul.f32 %v1467, 0.1
        %v1610 = vmul.f32 %v1472, 0.1
        %v1611 = vmul.f32 %v1475, 0.1
        %v1612 = vmul.f32 %v1480, 0.1
        %v1613 = vmul.f32 %v1483, 0.1
        %v1614 = vmul.f32 %v1488, 0.1
        %v1615 = vmul.f32 %v1491, 0.1
        %v1616 = vmul.f32 %v1496, 0.1
        %v1617 = vmul.f32 %v1499, 0.1
        %v1618 = vmul.f32 %v1504, 0.1
        %v1619 = vmul.f32 %v1507, 0.1
        %v1620 = vmul.f32 %v1512, 0.1
        %v1621 = vmul.f32 %v1515, 0.1
        %v1622 = vmul.f32 %v1520, 0.1
        %v1623 = vmul.f32 %v1523, 0.1
        %v1624 = vmul.f32 %v1528, 0.1
        %v1625 = vmul.f32 %v1531, 0.1
        %v1626 = vmul.f32 %v1536, 0.1
        %v1627 = vmul.f32 %v1539, 0.1
        %v1628 = vmul.f32 %v1544, 0.1
        %v1629 = vmul.f32 %v1547, 0.1
        %v1630 = vmul.f32 %v1552, 0.1
        %v1631 = vmul.f32 %v1555, 0.1
        %v1632 = vmul.f32 %v1560, 0.1
        %v1633 = vmul.f32 %v1563, 0.1
        %v1634 = vmul.f32 %v1568, 0.1
        %v1635 = vmul.f32 %v1571, 0.1
        %v1636 = vmul.f32 %v1576, 0.1
        %v1637 = vmul.f32 %v1579, 0.1
        %v1638 = vmax.f32 %v1360, %v1582
        %v1639 = vmax.f32 %v1363, %v1583
        %v1640 = vmax.f32 %v1368, %v1584
        %v1641 = vmax.f32 %v1371, %v1585
        %v1642 = vmax.f32 %v1376, %v1586
        %v1643 = vmax.f32 %v1379, %v1587
        %v1644 = vmax.f32 %v1384, %v1588
        %v1645 = vmax.f32 %v1387, %v1589
        %v1646 = vmax.f32 %v1392, %v1590
        %v1647 = vmax.f32 %v1395, %v1591
        %v1648 = vmax.f32 %v1400, %v1592
        %v1649 = vmax.f32 %v1403, %v1593
        %v1650 = vmax.f32 %v1408, %v1594
        %v1651 = vmax.f32 %v1411, %v1595
        %v1652 = vmax.f32 %v1416, %v1596
        %v1653 = vmax.f32 %v1419, %v1597
        %v1654 = vmax.f32 %v1424, %v1598
        %v1655 = vmax.f32 %v1427, %v1599
        %v1656 = vmax.f32 %v1432, %v1600
        %v1657 = vmax.f32 %v1435, %v1601
        %v1658 = vmax.f32 %v1440, %v1602
        %v1659 = vmax.f32 %v1443, %v1603
        %v1660 = vmax.f32 %v1448, %v1604
        %v1661 = vmax.f32 %v1451, %v1605
        %v1662 = vmax.f32 %v1456, %v1606
        %v1663 = vmax.f32 %v1459, %v1607
        %v1664 = vmax.f32 %v1464, %v1608
        %v1665 = vmax.f32 %v1467, %v1609
        %v1666 = vmax.f32 %v1472, %v1610
        %v1667 = vmax.f32 %v1475, %v1611
        %v1668 = vmax.f32 %v1480, %v1612
        %v1669 = vmax.f32 %v1483, %v1613
        %v1670 = vmax.f32 %v1488, %v1614
        %v1671 = vmax.f32 %v1491, %v1615
        %v1672 = vmax.f32 %v1496, %v1616
        %v1673 = vmax.f32 %v1499, %v1617
        %v1674 = vmax.f32 %v1504, %v1618
        %v1675 = vmax.f32 %v1507, %v1619
        %v1676 = vmax.f32 %v1512, %v1620
        %v1677 = vmax.f32 %v1515, %v1621
        %v1678 = vmax.f32 %v1520, %v1622
        %v1679 = vmax.f32 %v1523, %v1623
        %v1680 = vmax.f32 %v1528, %v1624
        %v1681 = vmax.f32 %v1531, %v1625
        %v1682 = vmax.f32 %v1536, %v1626
        %v1683 = vmax.f32 %v1539, %v1627
        %v1684 = vmax.f32 %v1544, %v1628
        %v1685 = vmax.f32 %v1547, %v1629
        %v1686 = vmax.f32 %v1552, %v1630
        %v1687 = vmax.f32 %v1555, %v1631
        %v1688 = vmax.f32 %v1560, %v1632
        %v1689 = vmax.f32 %v1563, %v1633
        %v1690 = vmax.f32 %v1568, %v1634
        %v1691 = vmax.f32 %v1571, %v1635
        %v1692 = vmax.f32 %v1576, %v1636
        %v1693 = vmax.f32 %v1579, %v1637
        %vm1694 = vcmask 523264
        %v1695 = vsel %vm1694, %v1638, -inf
        %v1696 = vsel %vm1694, %v1639, -inf
        %v1697 = vmax.f32 %v1695, %v1696
        %v1698 = vsel %vm1694, %v1640, -inf
        %v1699 = vsel %vm1694, %v1641, -inf
        %v1700 = vmax.f32 %v1698, %v1699
        %v1701 = vsel %vm1694, %v1642, -inf
        %v1702 = vsel %vm1694, %v1643, -inf
        %v1703 = vmax.f32 %v1701, %v1702
        %v1704 = vsel %vm1694, %v1644, -inf
        %v1705 = vsel %vm1694, %v1645, -inf
        %v1706 = vmax.f32 %v1704, %v1705
        %v1707 = vsel %vm1694, %v1646, -inf
        %v1708 = vsel %vm1694, %v1647, -inf
        %v1709 = vmax.f32 %v1707, %v1708
        %v1710 = vsel %vm1694, %v1648, -inf
        %v1711 = vsel %vm1694, %v1649, -inf
        %v1712 = vmax.f32 %v1710, %v1711
        %v1713 = vsel %vm1694, %v1650, -inf
        %v1714 = vsel %vm1694, %v1651, -inf
        %v1715 = vmax.f32 %v1713, %v1714
        %v1716 = vsel %vm1694, %v1652, -inf
        %v1717 = vsel %vm1694, %v1653, -inf
        %v1718 = vmax.f32 %v1716, %v1717
        %v1719 = vsel %vm1694, %v1654, -inf
        %v1720 = vsel %vm1694, %v1655, -inf
        %v1721 = vmax.f32 %v1719, %v1720
        %v1722 = vsel %vm1694, %v1656, -inf
        %v1723 = vsel %vm1694, %v1657, -inf
        %v1724 = vmax.f32 %v1722, %v1723
        %v1725 = vsel %vm1694, %v1658, -inf
        %v1726 = vsel %vm1694, %v1659, -inf
        %v1727 = vmax.f32 %v1725, %v1726
        %v1728 = vsel %vm1694, %v1660, -inf
        %v1729 = vsel %vm1694, %v1661, -inf
        %v1730 = vmax.f32 %v1728, %v1729
        %v1731 = vsel %vm1694, %v1662, -inf
        %v1732 = vsel %vm1694, %v1663, -inf
        %v1733 = vmax.f32 %v1731, %v1732
        %v1734 = vsel %vm1694, %v1664, -inf
        %v1735 = vsel %vm1694, %v1665, -inf
        %v1736 = vmax.f32 %v1734, %v1735
        %v1737 = vsel %vm1694, %v1666, -inf
        %v1738 = vsel %vm1694, %v1667, -inf
        %v1739 = vmax.f32 %v1737, %v1738
        %v1740 = vsel %vm1694, %v1668, -inf
        %v1741 = vsel %vm1694, %v1669, -inf
        %v1742 = vmax.f32 %v1740, %v1741
        %v1743 = vsel %vm1694, %v1670, -inf
        %v1744 = vsel %vm1694, %v1671, -inf
        %v1745 = vmax.f32 %v1743, %v1744
        %v1746 = vsel %vm1694, %v1672, -inf
        %v1747 = vsel %vm1694, %v1673, -inf
        %v1748 = vmax.f32 %v1746, %v1747
        %v1749 = vsel %vm1694, %v1674, -inf
        %v1750 = vsel %vm1694, %v1675, -inf
        %v1751 = vmax.f32 %v1749, %v1750
        %v1752 = vsel %vm1694, %v1676, -inf
        %v1753 = vsel %vm1694, %v1677, -inf
        %v1754 = vmax.f32 %v1752, %v1753
        %v1755 = vsel %vm1694, %v1678, -inf
        %v1756 = vsel %vm1694, %v1679, -inf
        %v1757 = vmax.f32 %v1755, %v1756
        %v1758 = vsel %vm1694, %v1680, -inf
        %v1759 = vsel %vm1694, %v1681, -inf
        %v1760 = vmax.f32 %v1758, %v1759
        %v1761 = vsel %vm1694, %v1682, -inf
        %v1762 = vsel %vm1694, %v1683, -inf
        %v1763 = vmax.f32 %v1761, %v1762
        %v1764 = vsel %vm1694, %v1684, -inf
        %v1765 = vsel %vm1694, %v1685, -inf
        %v1766 = vmax.f32 %v1764, %v1765
        %v1767 = vsel %vm1694, %v1686, -inf
        %v1768 = vsel %vm1694, %v1687, -inf
        %v1769 = vmax.f32 %v1767, %v1768
        %v1770 = vsel %vm1694, %v1688, -inf
        %v1771 = vsel %vm1694, %v1689, -inf
        %v1772 = vmax.f32 %v1770, %v1771
        %v1773 = vsel %vm1694, %v1690, -inf
        %v1774 = vsel %vm1694, %v1691, -inf
        %v1775 = vmax.f32 %v1773, %v1774
        %v1776 = vsel %vm1694, %v1692, -inf
        %v1777 = vsel %vm1694, %v1693, -inf
        %v1778 = vmax.f32 %v1776, %v1777
        %1807 = vrot.lane.b32.xlu0 %v1697, 112
        %v1808 = vpop.permute.xlu0 %1807
        %1809 = vrot.lane.b32.xlu0 %v1700, 112
        %v1810 = vpop.permute.xlu0 %1809
        %1811 = vrot.lane.b32.xlu0 %v1703, 112
        %v1812 = vpop.permute.xlu0 %1811
        %1813 = vrot.lane.b32.xlu0 %v1706, 112
        %v1814 = vpop.permute.xlu0 %1813
        %1815 = vrot.lane.b32.xlu0 %v1709, 112
        %v1816 = vpop.permute.xlu0 %1815
        %1817 = vrot.lane.b32.xlu0 %v1712, 112
        %v1818 = vpop.permute.xlu0 %1817
        %1819 = vrot.lane.b32.xlu0 %v1715, 112
        %v1820 = vpop.permute.xlu0 %1819
        %1821 = vrot.lane.b32.xlu0 %v1718, 112
        %v1822 = vpop.permute.xlu0 %1821
        %1823 = vrot.lane.b32.xlu0 %v1721, 112
        %v1824 = vpop.permute.xlu0 %1823
        %1825 = vrot.lane.b32.xlu0 %v1724, 112
        %v1826 = vpop.permute.xlu0 %1825
        %1827 = vrot.lane.b32.xlu0 %v1727, 112
        %v1828 = vpop.permute.xlu0 %1827
        %1829 = vrot.lane.b32.xlu0 %v1730, 112
        %v1830 = vpop.permute.xlu0 %1829
        %1831 = vrot.lane.b32.xlu0 %v1733, 112
        %v1832 = vpop.permute.xlu0 %1831
        %1833 = vrot.lane.b32.xlu0 %v1736, 112
        %v1834 = vpop.permute.xlu0 %1833
        %1835 = vrot.lane.b32.xlu0 %v1739, 112
        %v1836 = vpop.permute.xlu0 %1835
        %1837 = vrot.lane.b32.xlu0 %v1742, 112
        %v1838 = vpop.permute.xlu0 %1837
        %1839 = vrot.lane.b32.xlu0 %v1745, 112
        %v1840 = vpop.permute.xlu0 %1839
        %1841 = vrot.lane.b32.xlu0 %v1748, 112
        %v1842 = vpop.permute.xlu0 %1841
        %1843 = vrot.lane.b32.xlu0 %v1751, 112
        %v1844 = vpop.permute.xlu0 %1843
        %1845 = vrot.lane.b32.xlu0 %v1754, 112
        %v1846 = vpop.permute.xlu0 %1845
        %1847 = vrot.lane.b32.xlu0 %v1757, 112
        %v1848 = vpop.permute.xlu0 %1847
        %1849 = vrot.lane.b32.xlu0 %v1760, 112
        %v1850 = vpop.permute.xlu0 %1849
        %1851 = vrot.lane.b32.xlu0 %v1763, 112
        %v1852 = vpop.permute.xlu0 %1851
        %1853 = vrot.lane.b32.xlu0 %v1766, 112
        %v1854 = vpop.permute.xlu0 %1853
        %1855 = vrot.lane.b32.xlu0 %v1769, 112
        %v1856 = vpop.permute.xlu0 %1855
        %1857 = vrot.lane.b32.xlu0 %v1772, 112
        %v1858 = vpop.permute.xlu0 %1857
        %1859 = vrot.lane.b32.xlu0 %v1775, 112
        %v1860 = vpop.permute.xlu0 %1859
        %1861 = vrot.lane.b32.xlu0 %v1778, 112
        %v1862 = vpop.permute.xlu0 %1861
        %v1891 = vmax.f32 %v1697, %v1808
        %v1892 = vmax.f32 %v1700, %v1810
        %v1893 = vmax.f32 %v1703, %v1812
        %v1894 = vmax.f32 %v1706, %v1814
        %v1895 = vmax.f32 %v1709, %v1816
        %v1896 = vmax.f32 %v1712, %v1818
        %v1897 = vmax.f32 %v1715, %v1820
        %v1898 = vmax.f32 %v1718, %v1822
        %v1899 = vmax.f32 %v1721, %v1824
        %v1900 = vmax.f32 %v1724, %v1826
        %v1901 = vmax.f32 %v1727, %v1828
        %v1902 = vmax.f32 %v1730, %v1830
        %v1903 = vmax.f32 %v1733, %v1832
        %v1904 = vmax.f32 %v1736, %v1834
        %v1905 = vmax.f32 %v1739, %v1836
        %v1906 = vmax.f32 %v1742, %v1838
        %v1907 = vmax.f32 %v1745, %v1840
        %v1908 = vmax.f32 %v1748, %v1842
        %v1909 = vmax.f32 %v1751, %v1844
        %v1910 = vmax.f32 %v1754, %v1846
        %v1911 = vmax.f32 %v1757, %v1848
        %v1912 = vmax.f32 %v1760, %v1850
        %v1913 = vmax.f32 %v1763, %v1852
        %v1914 = vmax.f32 %v1766, %v1854
        %v1915 = vmax.f32 %v1769, %v1856
        %v1916 = vmax.f32 %v1772, %v1858
        %v1917 = vmax.f32 %v1775, %v1860
        %v1918 = vmax.f32 %v1778, %v1862
        %1947 = vrot.lane.b32.xlu0 %v1891, 112
        %v1948 = vpop.permute.xlu0 %1947
        %1949 = vrot.lane.b32.xlu0 %v1892, 112
        %v1950 = vpop.permute.xlu0 %1949
        %1951 = vrot.lane.b32.xlu0 %v1893, 112
        %v1952 = vpop.permute.xlu0 %1951
        %1953 = vrot.lane.b32.xlu0 %v1894, 112
        %v1954 = vpop.permute.xlu0 %1953
        %1955 = vrot.lane.b32.xlu0 %v1895, 112
        %v1956 = vpop.permute.xlu0 %1955
        %1957 = vrot.lane.b32.xlu0 %v1896, 112
        %v1958 = vpop.permute.xlu0 %1957
        %1959 = vrot.lane.b32.xlu0 %v1897, 112
        %v1960 = vpop.permute.xlu0 %1959
        %1961 = vrot.lane.b32.xlu0 %v1898, 112
        %v1962 = vpop.permute.xlu0 %1961
        %1963 = vrot.lane.b32.xlu0 %v1899, 112
        %v1964 = vpop.permute.xlu0 %1963
        %1965 = vrot.lane.b32.xlu0 %v1900, 112
        %v1966 = vpop.permute.xlu0 %1965
        %1967 = vrot.lane.b32.xlu0 %v1901, 112
        %v1968 = vpop.permute.xlu0 %1967
        %1969 = vrot.lane.b32.xlu0 %v1902, 112
        %v1970 = vpop.permute.xlu0 %1969
        %1971 = vrot.lane.b32.xlu0 %v1903, 112
        %v1972 = vpop.permute.xlu0 %1971
        %1973 = vrot.lane.b32.xlu0 %v1904, 112
        %v1974 = vpop.permute.xlu0 %1973
        %1975 = vrot.lane.b32.xlu0 %v1905, 112
        %v1976 = vpop.permute.xlu0 %1975
        %1977 = vrot.lane.b32.xlu0 %v1906, 112
        %v1978 = vpop.permute.xlu0 %1977
        %1979 = vrot.lane.b32.xlu0 %v1907, 112
        %v1980 = vpop.permute.xlu0 %1979
        %1981 = vrot.lane.b32.xlu0 %v1908, 112
        %v1982 = vpop.permute.xlu0 %1981
        %1983 = vrot.lane.b32.xlu0 %v1909, 112
        %v1984 = vpop.permute.xlu0 %1983
        %1985 = vrot.lane.b32.xlu0 %v1910, 112
        %v1986 = vpop.permute.xlu0 %1985
        %1987 = vrot.lane.b32.xlu0 %v1911, 112
        %v1988 = vpop.permute.xlu0 %1987
        %1989 = vrot.lane.b32.xlu0 %v1912, 112
        %v1990 = vpop.permute.xlu0 %1989
        %1991 = vrot.lane.b32.xlu0 %v1913, 112
        %v1992 = vpop.permute.xlu0 %1991
        %1993 = vrot.lane.b32.xlu0 %v1914, 112
        %v1994 = vpop.permute.xlu0 %1993
        %1995 = vrot.lane.b32.xlu0 %v1915, 112
        %v1996 = vpop.permute.xlu0 %1995
        %1997 = vrot.lane.b32.xlu0 %v1916, 112
        %v1998 = vpop.permute.xlu0 %1997
        %1999 = vrot.lane.b32.xlu0 %v1917, 112
        %v2000 = vpop.permute.xlu0 %1999
        %2001 = vrot.lane.b32.xlu0 %v1918, 112
        %v2002 = vpop.permute.xlu0 %2001
        %vm2031 = vcmask 130048
        %v2032 = vsel %vm2031, %v1891, %v1948
        %v2033 = vsel %vm2031, %v1892, %v1950
        %v2034 = vsel %vm2031, %v1893, %v1952
        %v2035 = vsel %vm2031, %v1894, %v1954
        %v2036 = vsel %vm2031, %v1895, %v1956
        %v2037 = vsel %vm2031, %v1896, %v1958
        %v2038 = vsel %vm2031, %v1897, %v1960
        %v2039 = vsel %vm2031, %v1898, %v1962
        %v2040 = vsel %vm2031, %v1899, %v1964
        %v2041 = vsel %vm2031, %v1900, %v1966
        %v2042 = vsel %vm2031, %v1901, %v1968
        %v2043 = vsel %vm2031, %v1902, %v1970
        %v2044 = vsel %vm2031, %v1903, %v1972
        %v2045 = vsel %vm2031, %v1904, %v1974
        %v2046 = vsel %vm2031, %v1905, %v1976
        %v2047 = vsel %vm2031, %v1906, %v1978
        %v2048 = vsel %vm2031, %v1907, %v1980
        %v2049 = vsel %vm2031, %v1908, %v1982
        %v2050 = vsel %vm2031, %v1909, %v1984
        %v2051 = vsel %vm2031, %v1910, %v1986
        %v2052 = vsel %vm2031, %v1911, %v1988
        %v2053 = vsel %vm2031, %v1912, %v1990
        %v2054 = vsel %vm2031, %v1913, %v1992
        %v2055 = vsel %vm2031, %v1914, %v1994
        %v2056 = vsel %vm2031, %v1915, %v1996
        %v2057 = vsel %vm2031, %v1916, %v1998
        %v2058 = vsel %vm2031, %v1917, %v2000
        %v2059 = vsel %vm2031, %v1918, %v2002
        %v2060 = vpack.c.bf16 %v2032, %v2032
        %v2061 = vpack.c.bf16 %v2033, %v2033
        %v2062 = vpack.c.bf16 %v2034, %v2034
        %v2063 = vpack.c.bf16 %v2035, %v2035
        %v2064 = vpack.c.bf16 %v2036, %v2036
        %v2065 = vpack.c.bf16 %v2037, %v2037
        %v2066 = vpack.c.bf16 %v2038, %v2038
        %v2067 = vpack.c.bf16 %v2039, %v2039
        %v2068 = vpack.c.bf16 %v2040, %v2040
        %v2069 = vpack.c.bf16 %v2041, %v2041
        %v2070 = vpack.c.bf16 %v2042, %v2042
        %v2071 = vpack.c.bf16 %v2043, %v2043
        %v2072 = vpack.c.bf16 %v2044, %v2044
        %v2073 = vpack.c.bf16 %v2045, %v2045
        %v2074 = vpack.c.bf16 %v2046, %v2046
        %v2075 = vpack.c.bf16 %v2047, %v2047
        %v2076 = vpack.c.bf16 %v2048, %v2048
        %v2077 = vpack.c.bf16 %v2049, %v2049
        %v2078 = vpack.c.bf16 %v2050, %v2050
        %v2079 = vpack.c.bf16 %v2051, %v2051
        %v2080 = vpack.c.bf16 %v2052, %v2052
        %v2081 = vpack.c.bf16 %v2053, %v2053
        %v2082 = vpack.c.bf16 %v2054, %v2054
        %v2083 = vpack.c.bf16 %v2055, %v2055
        %v2084 = vpack.c.bf16 %v2056, %v2056
        %v2085 = vpack.c.bf16 %v2057, %v2057
        %v2086 = vpack.c.bf16 %v2058, %v2058
        %v2087 = vpack.c.bf16 %v2059, %v2059
        %v2089 = vshrl.u32 %v2060, 16
        %v2091 = vshll.u32 %v2060, 16
        %v2093 = vrot.slane %v2091, 1
        %v2094 = vor.u32 %v2089, %v2093
        %v2096 = vshrl.u32 %v2061, 16
        %v2098 = vshll.u32 %v2061, 16
        %v2100 = vrot.slane %v2098, 1
        %v2101 = vor.u32 %v2096, %v2100
        %v2103 = vshrl.u32 %v2062, 16
        %v2105 = vshll.u32 %v2062, 16
        %v2107 = vrot.slane %v2105, 1
        %v2108 = vor.u32 %v2103, %v2107
        %v2110 = vshrl.u32 %v2063, 16
        %v2112 = vshll.u32 %v2063, 16
        %v2114 = vrot.slane %v2112, 1
        %v2115 = vor.u32 %v2110, %v2114
        %v2117 = vshrl.u32 %v2064, 16
        %v2119 = vshll.u32 %v2064, 16
        %v2121 = vrot.slane %v2119, 1
        %v2122 = vor.u32 %v2117, %v2121
        %v2124 = vshrl.u32 %v2065, 16
        %v2126 = vshll.u32 %v2065, 16
        %v2128 = vrot.slane %v2126, 1
        %v2129 = vor.u32 %v2124, %v2128
        %v2131 = vshrl.u32 %v2066, 16
        %v2133 = vshll.u32 %v2066, 16
        %v2135 = vrot.slane %v2133, 1
        %v2136 = vor.u32 %v2131, %v2135
        %v2138 = vshrl.u32 %v2067, 16
        %v2140 = vshll.u32 %v2067, 16
        %v2142 = vrot.slane %v2140, 1
        %v2143 = vor.u32 %v2138, %v2142
        %v2145 = vshrl.u32 %v2068, 16
        %v2147 = vshll.u32 %v2068, 16
        %v2149 = vrot.slane %v2147, 1
        %v2150 = vor.u32 %v2145, %v2149
        %v2152 = vshrl.u32 %v2069, 16
        %v2154 = vshll.u32 %v2069, 16
        %v2156 = vrot.slane %v2154, 1
        %v2157 = vor.u32 %v2152, %v2156
        %v2159 = vshrl.u32 %v2070, 16
        %v2161 = vshll.u32 %v2070, 16
        %v2163 = vrot.slane %v2161, 1
        %v2164 = vor.u32 %v2159, %v2163
        %v2166 = vshrl.u32 %v2071, 16
        %v2168 = vshll.u32 %v2071, 16
        %v2170 = vrot.slane %v2168, 1
        %v2171 = vor.u32 %v2166, %v2170
        %v2173 = vshrl.u32 %v2074, 16
        %v2175 = vshll.u32 %v2074, 16
        %v2177 = vrot.slane %v2175, 1
        %v2178 = vor.u32 %v2173, %v2177
        %v2180 = vshrl.u32 %v2075, 16
        %v2182 = vshll.u32 %v2075, 16
        %v2184 = vrot.slane %v2182, 1
        %v2185 = vor.u32 %v2180, %v2184
        %v2187 = vshrl.u32 %v2076, 16
        %v2189 = vshll.u32 %v2076, 16
        %v2191 = vrot.slane %v2189, 1
        %v2192 = vor.u32 %v2187, %v2191
        %v2194 = vshrl.u32 %v2077, 16
        %v2196 = vshll.u32 %v2077, 16
        %v2198 = vrot.slane %v2196, 1
        %v2199 = vor.u32 %v2194, %v2198
        %v2201 = vshrl.u32 %v2078, 16
        %v2203 = vshll.u32 %v2078, 16
        %v2205 = vrot.slane %v2203, 1
        %v2206 = vor.u32 %v2201, %v2205
        %v2208 = vshrl.u32 %v2079, 16
        %v2210 = vshll.u32 %v2079, 16
        %v2212 = vrot.slane %v2210, 1
        %v2213 = vor.u32 %v2208, %v2212
        %v2215 = vshrl.u32 %v2080, 16
        %v2217 = vshll.u32 %v2080, 16
        %v2219 = vrot.slane %v2217, 1
        %v2220 = vor.u32 %v2215, %v2219
        %v2222 = vshrl.u32 %v2081, 16
        %v2224 = vshll.u32 %v2081, 16
        %v2226 = vrot.slane %v2224, 1
        %v2227 = vor.u32 %v2222, %v2226
        %v2229 = vshrl.u32 %v2082, 16
        %v2231 = vshll.u32 %v2082, 16
        %v2233 = vrot.slane %v2231, 1
        %v2234 = vor.u32 %v2229, %v2233
        %v2236 = vshrl.u32 %v2083, 16
        %v2238 = vshll.u32 %v2083, 16
        %v2240 = vrot.slane %v2238, 1
        %v2241 = vor.u32 %v2236, %v2240
        %v2243 = vshrl.u32 %v2084, 16
        %v2245 = vshll.u32 %v2084, 16
        %v2247 = vrot.slane %v2245, 1
        %v2248 = vor.u32 %v2243, %v2247
        %v2250 = vshrl.u32 %v2085, 16
        %v2252 = vshll.u32 %v2085, 16
        %v2254 = vrot.slane %v2252, 1
        %v2255 = vor.u32 %v2250, %v2254
        %2256 = vrot.lane.b32.xlu0 %v2094, 32
        %v2257 = vpop.permute.xlu0 %2256
        %2258 = vrot.lane.b32.xlu0 %v2101, 32
        %v2259 = vpop.permute.xlu0 %2258
        %2260 = vrot.lane.b32.xlu0 %v2108, 32
        %v2261 = vpop.permute.xlu0 %2260
        %2262 = vrot.lane.b32.xlu0 %v2115, 32
        %v2263 = vpop.permute.xlu0 %2262
        %2264 = vrot.lane.b32.xlu0 %v2122, 32
        %v2265 = vpop.permute.xlu0 %2264
        %2266 = vrot.lane.b32.xlu0 %v2129, 32
        %v2267 = vpop.permute.xlu0 %2266
        %2268 = vrot.lane.b32.xlu0 %v2136, 32
        %v2269 = vpop.permute.xlu0 %2268
        %2270 = vrot.lane.b32.xlu0 %v2143, 32
        %v2271 = vpop.permute.xlu0 %2270
        %2272 = vrot.lane.b32.xlu0 %v2150, 32
        %v2273 = vpop.permute.xlu0 %2272
        %2274 = vrot.lane.b32.xlu0 %v2157, 32
        %v2275 = vpop.permute.xlu0 %2274
        %2276 = vrot.lane.b32.xlu0 %v2164, 32
        %v2277 = vpop.permute.xlu0 %2276
        %2278 = vrot.lane.b32.xlu0 %v2171, 32
        %v2279 = vpop.permute.xlu0 %2278
        %2280 = vrot.lane.b32.xlu0 %v2178, 32
        %v2281 = vpop.permute.xlu0 %2280
        %2282 = vrot.lane.b32.xlu0 %v2185, 32
        %v2283 = vpop.permute.xlu0 %2282
        %2284 = vrot.lane.b32.xlu0 %v2192, 32
        %v2285 = vpop.permute.xlu0 %2284
        %2286 = vrot.lane.b32.xlu0 %v2199, 32
        %v2287 = vpop.permute.xlu0 %2286
        %2288 = vrot.lane.b32.xlu0 %v2206, 32
        %v2289 = vpop.permute.xlu0 %2288
        %2290 = vrot.lane.b32.xlu0 %v2213, 32
        %v2291 = vpop.permute.xlu0 %2290
        %2292 = vrot.lane.b32.xlu0 %v2220, 32
        %v2293 = vpop.permute.xlu0 %2292
        %2294 = vrot.lane.b32.xlu0 %v2227, 32
        %v2295 = vpop.permute.xlu0 %2294
        %2296 = vrot.lane.b32.xlu0 %v2234, 32
        %v2297 = vpop.permute.xlu0 %2296
        %2298 = vrot.lane.b32.xlu0 %v2241, 32
        %v2299 = vpop.permute.xlu0 %2298
        %2300 = vrot.lane.b32.xlu0 %v2248, 32
        %v2301 = vpop.permute.xlu0 %2300
        %2302 = vrot.lane.b32.xlu0 %v2255, 32
        %v2303 = vpop.permute.xlu0 %2302
        %2328 = vrot.lane.b32.xlu0 %v2061, 64
        %v2329 = vpop.permute.xlu0 %2328
        %2330 = vrot.lane.b32.xlu0 %v2062, 64
        %v2331 = vpop.permute.xlu0 %2330
        %2332 = vrot.lane.b32.xlu0 %v2063, 64
        %v2333 = vpop.permute.xlu0 %2332
        %2334 = vrot.lane.b32.xlu0 %v2064, 64
        %v2335 = vpop.permute.xlu0 %2334
        %2336 = vrot.lane.b32.xlu0 %v2065, 64
        %v2337 = vpop.permute.xlu0 %2336
        %2338 = vrot.lane.b32.xlu0 %v2066, 64
        %v2339 = vpop.permute.xlu0 %2338
        %2340 = vrot.lane.b32.xlu0 %v2067, 64
        %v2341 = vpop.permute.xlu0 %2340
        %2342 = vrot.lane.b32.xlu0 %v2068, 64
        %v2343 = vpop.permute.xlu0 %2342
        %2344 = vrot.lane.b32.xlu0 %v2069, 64
        %v2345 = vpop.permute.xlu0 %2344
        %2346 = vrot.lane.b32.xlu0 %v2070, 64
        %v2347 = vpop.permute.xlu0 %2346
        %2348 = vrot.lane.b32.xlu0 %v2071, 64
        %v2349 = vpop.permute.xlu0 %2348
        %2350 = vrot.lane.b32.xlu0 %v2072, 64
        %v2351 = vpop.permute.xlu0 %2350
        %2352 = vrot.lane.b32.xlu0 %v2075, 64
        %v2353 = vpop.permute.xlu0 %2352
        %2354 = vrot.lane.b32.xlu0 %v2076, 64
        %v2355 = vpop.permute.xlu0 %2354
        %2356 = vrot.lane.b32.xlu0 %v2077, 64
        %v2357 = vpop.permute.xlu0 %2356
        %2358 = vrot.lane.b32.xlu0 %v2078, 64
        %v2359 = vpop.permute.xlu0 %2358
        %2360 = vrot.lane.b32.xlu0 %v2079, 64
        %v2361 = vpop.permute.xlu0 %2360
        %2362 = vrot.lane.b32.xlu0 %v2080, 64
        %v2363 = vpop.permute.xlu0 %2362
        %2364 = vrot.lane.b32.xlu0 %v2081, 64
        %v2365 = vpop.permute.xlu0 %2364
        %2366 = vrot.lane.b32.xlu0 %v2082, 64
        %v2367 = vpop.permute.xlu0 %2366
        %2368 = vrot.lane.b32.xlu0 %v2083, 64
        %v2369 = vpop.permute.xlu0 %2368
        %2370 = vrot.lane.b32.xlu0 %v2084, 64
        %v2371 = vpop.permute.xlu0 %2370
        %2372 = vrot.lane.b32.xlu0 %v2085, 64
        %v2373 = vpop.permute.xlu0 %2372
        %2374 = vrot.lane.b32.xlu0 %v2086, 64
        %v2375 = vpop.permute.xlu0 %2374
        %v2377 = vshrl.u32 %v2072, 16
        %v2379 = vshll.u32 %v2072, 16
        %v2381 = vrot.slane %v2379, 1
        %v2382 = vor.u32 %v2377, %v2381
        %v2384 = vshrl.u32 %v2086, 16
        %v2386 = vshll.u32 %v2086, 16
        %v2388 = vrot.slane %v2386, 1
        %v2389 = vor.u32 %v2384, %v2388
        %2390 = vrot.lane.b32.xlu0 %v2101, 96
        %v2391 = vpop.permute.xlu0 %2390
        %2392 = vrot.lane.b32.xlu0 %v2108, 96
        %v2393 = vpop.permute.xlu0 %2392
        %2394 = vrot.lane.b32.xlu0 %v2115, 96
        %v2395 = vpop.permute.xlu0 %2394
        %2396 = vrot.lane.b32.xlu0 %v2122, 96
        %v2397 = vpop.permute.xlu0 %2396
        %2398 = vrot.lane.b32.xlu0 %v2129, 96
        %v2399 = vpop.permute.xlu0 %2398
        %2400 = vrot.lane.b32.xlu0 %v2136, 96
        %v2401 = vpop.permute.xlu0 %2400
        %2402 = vrot.lane.b32.xlu0 %v2143, 96
        %v2403 = vpop.permute.xlu0 %2402
        %2404 = vrot.lane.b32.xlu0 %v2150, 96
        %v2405 = vpop.permute.xlu0 %2404
        %2406 = vrot.lane.b32.xlu0 %v2157, 96
        %v2407 = vpop.permute.xlu0 %2406
        %2408 = vrot.lane.b32.xlu0 %v2164, 96
        %v2409 = vpop.permute.xlu0 %2408
        %2410 = vrot.lane.b32.xlu0 %v2171, 96
        %v2411 = vpop.permute.xlu0 %2410
        %2412 = vrot.lane.b32.xlu0 %v2382, 96
        %v2413 = vpop.permute.xlu0 %2412
        %2414 = vrot.lane.b32.xlu0 %v2185, 96
        %v2415 = vpop.permute.xlu0 %2414
        %2416 = vrot.lane.b32.xlu0 %v2192, 96
        %v2417 = vpop.permute.xlu0 %2416
        %2418 = vrot.lane.b32.xlu0 %v2199, 96
        %v2419 = vpop.permute.xlu0 %2418
        %2420 = vrot.lane.b32.xlu0 %v2206, 96
        %v2421 = vpop.permute.xlu0 %2420
        %2422 = vrot.lane.b32.xlu0 %v2213, 96
        %v2423 = vpop.permute.xlu0 %2422
        %2424 = vrot.lane.b32.xlu0 %v2220, 96
        %v2425 = vpop.permute.xlu0 %2424
        %2426 = vrot.lane.b32.xlu0 %v2227, 96
        %v2427 = vpop.permute.xlu0 %2426
        %2428 = vrot.lane.b32.xlu0 %v2234, 96
        %v2429 = vpop.permute.xlu0 %2428
        %2430 = vrot.lane.b32.xlu0 %v2241, 96
        %v2431 = vpop.permute.xlu0 %2430
        %2432 = vrot.lane.b32.xlu0 %v2248, 96
        %v2433 = vpop.permute.xlu0 %2432
        %2434 = vrot.lane.b32.xlu0 %v2255, 96
        %v2435 = vpop.permute.xlu0 %2434
        %2436 = vrot.lane.b32.xlu0 %v2389, 96
        %v2437 = vpop.permute.xlu0 %2436
        %v2439 = vshrl.u32 %v2073, 16
        %v2441 = vshll.u32 %v2073, 16
        %v2443 = vrot.slane %v2441, 1
        %v2444 = vor.u32 %v2439, %v2443
        %v2446 = vshrl.u32 %v2087, 16
        %v2448 = vshll.u32 %v2087, 16
        %v2450 = vrot.slane %v2448, 1
        %v2451 = vor.u32 %v2446, %v2450
        %2452 = vrot.lane.b32.xlu0 %v2382, 32
        %v2453 = vpop.permute.xlu0 %2452
        %2454 = vrot.lane.b32.xlu0 %v2444, 32
        %v2455 = vpop.permute.xlu0 %2454
        %2456 = vrot.lane.b32.xlu0 %v2389, 32
        %v2457 = vpop.permute.xlu0 %2456
        %2458 = vrot.lane.b32.xlu0 %v2451, 32
        %v2459 = vpop.permute.xlu0 %2458
        %vm2460 = vcmask 261120
        %v2462 = vsel %vm2460, %v2060, %v2257
        %v2464 = vsel %vm2460, %v2061, %v2259
        %v2466 = vsel %vm2460, %v2062, %v2261
        %v2468 = vsel %vm2460, %v2063, %v2263
        %v2470 = vsel %vm2460, %v2064, %v2265
        %v2472 = vsel %vm2460, %v2065, %v2267
        %v2474 = vsel %vm2460, %v2066, %v2269
        %v2476 = vsel %vm2460, %v2067, %v2271
        %v2478 = vsel %vm2460, %v2068, %v2273
        %v2480 = vsel %vm2460, %v2069, %v2275
        %v2482 = vsel %vm2460, %v2070, %v2277
        %v2484 = vsel %vm2460, %v2071, %v2279
        %v2486 = vsel %vm2460, %v2074, %v2281
        %v2488 = vsel %vm2460, %v2075, %v2283
        %v2490 = vsel %vm2460, %v2076, %v2285
        %v2492 = vsel %vm2460, %v2077, %v2287
        %v2494 = vsel %vm2460, %v2078, %v2289
        %v2496 = vsel %vm2460, %v2079, %v2291
        %v2498 = vsel %vm2460, %v2080, %v2293
        %v2500 = vsel %vm2460, %v2081, %v2295
        %v2502 = vsel %vm2460, %v2082, %v2297
        %v2504 = vsel %vm2460, %v2083, %v2299
        %v2506 = vsel %vm2460, %v2084, %v2301
        %v2508 = vsel %vm2460, %v2085, %v2303
        %vm2509 = vcmask 392192
        %v2510 = vsel %vm2509, %v2462, %v2257
        %v2511 = vsel %vm2509, %v2464, %v2259
        %v2512 = vsel %vm2509, %v2466, %v2261
        %v2513 = vsel %vm2509, %v2468, %v2263
        %v2514 = vsel %vm2509, %v2470, %v2265
        %v2515 = vsel %vm2509, %v2472, %v2267
        %v2516 = vsel %vm2509, %v2474, %v2269
        %v2517 = vsel %vm2509, %v2476, %v2271
        %v2518 = vsel %vm2509, %v2478, %v2273
        %v2519 = vsel %vm2509, %v2480, %v2275
        %v2520 = vsel %vm2509, %v2482, %v2277
        %v2521 = vsel %vm2509, %v2484, %v2279
        %v2522 = vsel %vm2509, %v2486, %v2281
        %v2523 = vsel %vm2509, %v2488, %v2283
        %v2524 = vsel %vm2509, %v2490, %v2285
        %v2525 = vsel %vm2509, %v2492, %v2287
        %v2526 = vsel %vm2509, %v2494, %v2289
        %v2527 = vsel %vm2509, %v2496, %v2291
        %v2528 = vsel %vm2509, %v2498, %v2293
        %v2529 = vsel %vm2509, %v2500, %v2295
        %v2530 = vsel %vm2509, %v2502, %v2297
        %v2531 = vsel %vm2509, %v2504, %v2299
        %v2532 = vsel %vm2509, %v2506, %v2301
        %v2533 = vsel %vm2509, %v2508, %v2303
        %v2535 = vsel %vm1694, %v2510, %v2329
        %v2537 = vsel %vm1694, %v2511, %v2331
        %v2539 = vsel %vm1694, %v2512, %v2333
        %v2541 = vsel %vm1694, %v2513, %v2335
        %v2543 = vsel %vm1694, %v2514, %v2337
        %v2545 = vsel %vm1694, %v2515, %v2339
        %v2547 = vsel %vm1694, %v2516, %v2341
        %v2549 = vsel %vm1694, %v2517, %v2343
        %v2551 = vsel %vm1694, %v2518, %v2345
        %v2553 = vsel %vm1694, %v2519, %v2347
        %v2555 = vsel %vm1694, %v2520, %v2349
        %v2557 = vsel %vm1694, %v2521, %v2351
        %v2559 = vsel %vm1694, %v2522, %v2353
        %v2561 = vsel %vm1694, %v2523, %v2355
        %v2563 = vsel %vm1694, %v2524, %v2357
        %v2565 = vsel %vm1694, %v2525, %v2359
        %v2567 = vsel %vm1694, %v2526, %v2361
        %v2569 = vsel %vm1694, %v2527, %v2363
        %v2571 = vsel %vm1694, %v2528, %v2365
        %v2573 = vsel %vm1694, %v2529, %v2367
        %v2575 = vsel %vm1694, %v2530, %v2369
        %v2577 = vsel %vm1694, %v2531, %v2371
        %v2579 = vsel %vm1694, %v2532, %v2373
        %v2581 = vsel %vm1694, %v2533, %v2375
        %vm2582 = vcmask 654336
        %v2583 = vsel %vm2582, %v2535, %v2329
        %v2584 = vsel %vm2582, %v2537, %v2331
        %v2585 = vsel %vm2582, %v2539, %v2333
        %v2586 = vsel %vm2582, %v2541, %v2335
        %v2587 = vsel %vm2582, %v2543, %v2337
        %v2588 = vsel %vm2582, %v2545, %v2339
        %v2589 = vsel %vm2582, %v2547, %v2341
        %v2590 = vsel %vm2582, %v2549, %v2343
        %v2591 = vsel %vm2582, %v2551, %v2345
        %v2592 = vsel %vm2582, %v2553, %v2347
        %v2593 = vsel %vm2582, %v2555, %v2349
        %v2594 = vsel %vm2582, %v2557, %v2351
        %v2595 = vsel %vm2582, %v2559, %v2353
        %v2596 = vsel %vm2582, %v2561, %v2355
        %v2597 = vsel %vm2582, %v2563, %v2357
        %v2598 = vsel %vm2582, %v2565, %v2359
        %v2599 = vsel %vm2582, %v2567, %v2361
        %v2600 = vsel %vm2582, %v2569, %v2363
        %v2601 = vsel %vm2582, %v2571, %v2365
        %v2602 = vsel %vm2582, %v2573, %v2367
        %v2603 = vsel %vm2582, %v2575, %v2369
        %v2604 = vsel %vm2582, %v2577, %v2371
        %v2605 = vsel %vm2582, %v2579, %v2373
        %v2606 = vsel %vm2582, %v2581, %v2375
        %vm2607 = vcmask 785408
        %v2609 = vsel %vm2607, %v2583, %v2391
        %v2611 = vsel %vm2607, %v2584, %v2393
        %v2613 = vsel %vm2607, %v2585, %v2395
        %v2615 = vsel %vm2607, %v2586, %v2397
        %v2617 = vsel %vm2607, %v2587, %v2399
        %v2619 = vsel %vm2607, %v2588, %v2401
        %v2621 = vsel %vm2607, %v2589, %v2403
        %v2623 = vsel %vm2607, %v2590, %v2405
        %v2625 = vsel %vm2607, %v2591, %v2407
        %v2627 = vsel %vm2607, %v2592, %v2409
        %v2629 = vsel %vm2607, %v2593, %v2411
        %v2631 = vsel %vm2607, %v2594, %v2413
        %v2633 = vsel %vm2607, %v2595, %v2415
        %v2635 = vsel %vm2607, %v2596, %v2417
        %v2637 = vsel %vm2607, %v2597, %v2419
        %v2639 = vsel %vm2607, %v2598, %v2421
        %v2641 = vsel %vm2607, %v2599, %v2423
        %v2643 = vsel %vm2607, %v2600, %v2425
        %v2645 = vsel %vm2607, %v2601, %v2427
        %v2647 = vsel %vm2607, %v2602, %v2429
        %v2649 = vsel %vm2607, %v2603, %v2431
        %v2651 = vsel %vm2607, %v2604, %v2433
        %v2653 = vsel %vm2607, %v2605, %v2435
        %v2655 = vsel %vm2607, %v2606, %v2437
        %vm2656 = vcmask 916480
        %v2657 = vsel %vm2656, %v2609, %v2391
        %v2658 = vsel %vm2656, %v2611, %v2393
        %v2659 = vsel %vm2656, %v2613, %v2395
        %v2660 = vsel %vm2656, %v2615, %v2397
        %v2661 = vsel %vm2656, %v2617, %v2399
        %v2662 = vsel %vm2656, %v2619, %v2401
        %v2663 = vsel %vm2656, %v2621, %v2403
        %v2664 = vsel %vm2656, %v2623, %v2405
        %v2665 = vsel %vm2656, %v2625, %v2407
        %v2666 = vsel %vm2656, %v2627, %v2409
        %v2667 = vsel %vm2656, %v2629, %v2411
        %v2668 = vsel %vm2656, %v2631, %v2413
        %v2669 = vsel %vm2656, %v2633, %v2415
        %v2670 = vsel %vm2656, %v2635, %v2417
        %v2671 = vsel %vm2656, %v2637, %v2419
        %v2672 = vsel %vm2656, %v2639, %v2421
        %v2673 = vsel %vm2656, %v2641, %v2423
        %v2674 = vsel %vm2656, %v2643, %v2425
        %v2675 = vsel %vm2656, %v2645, %v2427
        %v2676 = vsel %vm2656, %v2647, %v2429
        %v2677 = vsel %vm2656, %v2649, %v2431
        %v2678 = vsel %vm2656, %v2651, %v2433
        %v2679 = vsel %vm2656, %v2653, %v2435
        %v2680 = vsel %vm2656, %v2655, %v2437
        %v2682 = vsel %vm2460, %v2072, %v2453
        %v2684 = vsel %vm2460, %v2073, %v2455
        %v2686 = vsel %vm2460, %v2086, %v2457
        %v2688 = vsel %vm2460, %v2087, %v2459
        %v2689 = vsel %vm2509, %v2682, %v2453
        %v2690 = vsel %vm2509, %v2684, %v2455
        %v2691 = vsel %vm2509, %v2686, %v2457
        %v2692 = vsel %vm2509, %v2688, %v2459
        %v2741 = vcombine.low %v2657, %v2512
        %v2743 = vunpack.c.l.s4 1966171168
        %v2744 = vunpack.c.0.s8 %v2743
        %v2745 = vlaneseq
        %v2746 = vshrl.u32 %v2745, 7
        %v2747 = vsub.s32 %v2744, %v2746
        %v2748 = vrot.slane %v2741, %v2747
        %v2749 = vcombine.high %v2748, %v2748
        %v2751 = vunpack.c.l.s4 1966171168
        %v2752 = vunpack.c.0.s8 %v2751
        %v2753 = vlaneseq
        %v2754 = vshrl.u32 %v2753, 7
        %v2755 = vsub.s32 %v2752, %v2754
        %v2756 = vrot.slane %v2748, %v2755
        %v2758 = vunpack.c.l.s4 1966171168
        %v2759 = vunpack.c.0.s8 %v2758
        %v2760 = vlaneseq
        %v2761 = vshrl.u32 %v2760, 7
        %v2762 = vsub.s32 %v2759, %v2761
        %v2763 = vrot.slane %v2749, %v2762
        %v2764 = vcombine.high %v2756, %v2756
        %v2765 = vcombine.low %v2658, %v2513
        %v2767 = vunpack.c.l.s4 1966171168
        %v2768 = vunpack.c.0.s8 %v2767
        %v2769 = vlaneseq
        %v2770 = vshrl.u32 %v2769, 7
        %v2771 = vsub.s32 %v2768, %v2770
        %v2772 = vrot.slane %v2765, %v2771
        %v2773 = vcombine.high %v2772, %v2772
        %v2775 = vunpack.c.l.s4 1966171168
        %v2776 = vunpack.c.0.s8 %v2775
        %v2777 = vlaneseq
        %v2778 = vshrl.u32 %v2777, 7
        %v2779 = vsub.s32 %v2776, %v2778
        %v2780 = vrot.slane %v2772, %v2779
        %v2782 = vunpack.c.l.s4 1966171168
        %v2783 = vunpack.c.0.s8 %v2782
        %v2784 = vlaneseq
        %v2785 = vshrl.u32 %v2784, 7
        %v2786 = vsub.s32 %v2783, %v2785
        %v2787 = vrot.slane %v2773, %v2786
        %v2788 = vcombine.high %v2780, %v2780
        %v2789 = vcombine.low %v2659, %v2514
        %v2791 = vunpack.c.l.s4 1966171168
        %v2792 = vunpack.c.0.s8 %v2791
        %v2793 = vlaneseq
        %v2794 = vshrl.u32 %v2793, 7
        %v2795 = vsub.s32 %v2792, %v2794
        %v2796 = vrot.slane %v2789, %v2795
        %v2797 = vcombine.high %v2796, %v2796
        %v2799 = vunpack.c.l.s4 1966171168
        %v2800 = vunpack.c.0.s8 %v2799
        %v2801 = vlaneseq
        %v2802 = vshrl.u32 %v2801, 7
        %v2803 = vsub.s32 %v2800, %v2802
        %v2804 = vrot.slane %v2796, %v2803
        %v2806 = vunpack.c.l.s4 1966171168
        %v2807 = vunpack.c.0.s8 %v2806
        %v2808 = vlaneseq
        %v2809 = vshrl.u32 %v2808, 7
        %v2810 = vsub.s32 %v2807, %v2809
        %v2811 = vrot.slane %v2797, %v2810
        %v2812 = vcombine.high %v2804, %v2804
        %v2813 = vcombine.low %v2660, %v2515
        %v2815 = vunpack.c.l.s4 1966171168
        %v2816 = vunpack.c.0.s8 %v2815
        %v2817 = vlaneseq
        %v2818 = vshrl.u32 %v2817, 7
        %v2819 = vsub.s32 %v2816, %v2818
        %v2820 = vrot.slane %v2813, %v2819
        %v2821 = vcombine.high %v2820, %v2820
        %v2823 = vunpack.c.l.s4 1966171168
        %v2824 = vunpack.c.0.s8 %v2823
        %v2825 = vlaneseq
        %v2826 = vshrl.u32 %v2825, 7
        %v2827 = vsub.s32 %v2824, %v2826
        %v2828 = vrot.slane %v2820, %v2827
        %v2830 = vunpack.c.l.s4 1966171168
        %v2831 = vunpack.c.0.s8 %v2830
        %v2832 = vlaneseq
        %v2833 = vshrl.u32 %v2832, 7
        %v2834 = vsub.s32 %v2831, %v2833
        %v2835 = vrot.slane %v2821, %v2834
        %v2836 = vcombine.high %v2828, %v2828
        %v2837 = vcombine.low %v2661, %v2516
        %v2839 = vunpack.c.l.s4 1966171168
        %v2840 = vunpack.c.0.s8 %v2839
        %v2841 = vlaneseq
        %v2842 = vshrl.u32 %v2841, 7
        %v2843 = vsub.s32 %v2840, %v2842
        %v2844 = vrot.slane %v2837, %v2843
        %v2845 = vcombine.high %v2844, %v2844
        %v2847 = vunpack.c.l.s4 1966171168
        %v2848 = vunpack.c.0.s8 %v2847
        %v2849 = vlaneseq
        %v2850 = vshrl.u32 %v2849, 7
        %v2851 = vsub.s32 %v2848, %v2850
        %v2852 = vrot.slane %v2844, %v2851
        %v2854 = vunpack.c.l.s4 1966171168
        %v2855 = vunpack.c.0.s8 %v2854
        %v2856 = vlaneseq
        %v2857 = vshrl.u32 %v2856, 7
        %v2858 = vsub.s32 %v2855, %v2857
        %v2859 = vrot.slane %v2845, %v2858
        %v2860 = vcombine.high %v2852, %v2852
        %v2861 = vcombine.low %v2662, %v2517
        %v2863 = vunpack.c.l.s4 1966171168
        %v2864 = vunpack.c.0.s8 %v2863
        %v2865 = vlaneseq
        %v2866 = vshrl.u32 %v2865, 7
        %v2867 = vsub.s32 %v2864, %v2866
        %v2868 = vrot.slane %v2861, %v2867
        %v2869 = vcombine.high %v2868, %v2868
        %v2871 = vunpack.c.l.s4 1966171168
        %v2872 = vunpack.c.0.s8 %v2871
        %v2873 = vlaneseq
        %v2874 = vshrl.u32 %v2873, 7
        %v2875 = vsub.s32 %v2872, %v2874
        %v2876 = vrot.slane %v2868, %v2875
        %v2878 = vunpack.c.l.s4 1966171168
        %v2879 = vunpack.c.0.s8 %v2878
        %v2880 = vlaneseq
        %v2881 = vshrl.u32 %v2880, 7
        %v2882 = vsub.s32 %v2879, %v2881
        %v2883 = vrot.slane %v2869, %v2882
        %v2884 = vcombine.high %v2876, %v2876
        %v2885 = vcombine.low %v2663, %v2518
        %v2887 = vunpack.c.l.s4 1966171168
        %v2888 = vunpack.c.0.s8 %v2887
        %v2889 = vlaneseq
        %v2890 = vshrl.u32 %v2889, 7
        %v2891 = vsub.s32 %v2888, %v2890
        %v2892 = vrot.slane %v2885, %v2891
        %v2893 = vcombine.high %v2892, %v2892
        %v2895 = vunpack.c.l.s4 1966171168
        %v2896 = vunpack.c.0.s8 %v2895
        %v2897 = vlaneseq
        %v2898 = vshrl.u32 %v2897, 7
        %v2899 = vsub.s32 %v2896, %v2898
        %v2900 = vrot.slane %v2892, %v2899
        %v2902 = vunpack.c.l.s4 1966171168
        %v2903 = vunpack.c.0.s8 %v2902
        %v2904 = vlaneseq
        %v2905 = vshrl.u32 %v2904, 7
        %v2906 = vsub.s32 %v2903, %v2905
        %v2907 = vrot.slane %v2893, %v2906
        %v2908 = vcombine.high %v2900, %v2900
        %v2909 = vcombine.low %v2664, %v2519
        %v2911 = vunpack.c.l.s4 1966171168
        %v2912 = vunpack.c.0.s8 %v2911
        %v2913 = vlaneseq
        %v2914 = vshrl.u32 %v2913, 7
        %v2915 = vsub.s32 %v2912, %v2914
        %v2916 = vrot.slane %v2909, %v2915
        %v2917 = vcombine.high %v2916, %v2916
        %v2919 = vunpack.c.l.s4 1966171168
        %v2920 = vunpack.c.0.s8 %v2919
        %v2921 = vlaneseq
        %v2922 = vshrl.u32 %v2921, 7
        %v2923 = vsub.s32 %v2920, %v2922
        %v2924 = vrot.slane %v2916, %v2923
        %v2926 = vunpack.c.l.s4 1966171168
        %v2927 = vunpack.c.0.s8 %v2926
        %v2928 = vlaneseq
        %v2929 = vshrl.u32 %v2928, 7
        %v2930 = vsub.s32 %v2927, %v2929
        %v2931 = vrot.slane %v2917, %v2930
        %v2932 = vcombine.high %v2924, %v2924
        %v2933 = vcombine.low %v2665, %v2520
        %v2935 = vunpack.c.l.s4 1966171168
        %v2936 = vunpack.c.0.s8 %v2935
        %v2937 = vlaneseq
        %v2938 = vshrl.u32 %v2937, 7
        %v2939 = vsub.s32 %v2936, %v2938
        %v2940 = vrot.slane %v2933, %v2939
        %v2941 = vcombine.high %v2940, %v2940
        %v2943 = vunpack.c.l.s4 1966171168
        %v2944 = vunpack.c.0.s8 %v2943
        %v2945 = vlaneseq
        %v2946 = vshrl.u32 %v2945, 7
        %v2947 = vsub.s32 %v2944, %v2946
        %v2948 = vrot.slane %v2940, %v2947
        %v2950 = vunpack.c.l.s4 1966171168
        %v2951 = vunpack.c.0.s8 %v2950
        %v2952 = vlaneseq
        %v2953 = vshrl.u32 %v2952, 7
        %v2954 = vsub.s32 %v2951, %v2953
        %v2955 = vrot.slane %v2941, %v2954
        %v2956 = vcombine.high %v2948, %v2948
        %v2957 = vcombine.low %v2666, %v2521
        %v2959 = vunpack.c.l.s4 1966171168
        %v2960 = vunpack.c.0.s8 %v2959
        %v2961 = vlaneseq
        %v2962 = vshrl.u32 %v2961, 7
        %v2963 = vsub.s32 %v2960, %v2962
        %v2964 = vrot.slane %v2957, %v2963
        %v2965 = vcombine.high %v2964, %v2964
        %v2967 = vunpack.c.l.s4 1966171168
        %v2968 = vunpack.c.0.s8 %v2967
        %v2969 = vlaneseq
        %v2970 = vshrl.u32 %v2969, 7
        %v2971 = vsub.s32 %v2968, %v2970
        %v2972 = vrot.slane %v2964, %v2971
        %v2974 = vunpack.c.l.s4 1966171168
        %v2975 = vunpack.c.0.s8 %v2974
        %v2976 = vlaneseq
        %v2977 = vshrl.u32 %v2976, 7
        %v2978 = vsub.s32 %v2975, %v2977
        %v2979 = vrot.slane %v2965, %v2978
        %v2980 = vcombine.high %v2972, %v2972
        %v2981 = vcombine.low %v2667, %v2689
        %v2983 = vunpack.c.l.s4 1966171168
        %v2984 = vunpack.c.0.s8 %v2983
        %v2985 = vlaneseq
        %v2986 = vshrl.u32 %v2985, 7
        %v2987 = vsub.s32 %v2984, %v2986
        %v2988 = vrot.slane %v2981, %v2987
        %v2989 = vcombine.high %v2988, %v2988
        %v2991 = vunpack.c.l.s4 1966171168
        %v2992 = vunpack.c.0.s8 %v2991
        %v2993 = vlaneseq
        %v2994 = vshrl.u32 %v2993, 7
        %v2995 = vsub.s32 %v2992, %v2994
        %v2996 = vrot.slane %v2988, %v2995
        %v2998 = vunpack.c.l.s4 1966171168
        %v2999 = vunpack.c.0.s8 %v2998
        %v3000 = vlaneseq
        %v3001 = vshrl.u32 %v3000, 7
        %v3002 = vsub.s32 %v2999, %v3001
        %v3003 = vrot.slane %v2989, %v3002
        %v3004 = vcombine.high %v2996, %v2996
        %v3005 = vcombine.low %v2668, %v2690
        %v3007 = vunpack.c.l.s4 1966171168
        %v3008 = vunpack.c.0.s8 %v3007
        %v3009 = vlaneseq
        %v3010 = vshrl.u32 %v3009, 7
        %v3011 = vsub.s32 %v3008, %v3010
        %v3012 = vrot.slane %v3005, %v3011
        %v3013 = vcombine.high %v3012, %v3012
        %v3015 = vunpack.c.l.s4 1966171168
        %v3016 = vunpack.c.0.s8 %v3015
        %v3017 = vlaneseq
        %v3018 = vshrl.u32 %v3017, 7
        %v3019 = vsub.s32 %v3016, %v3018
        %v3020 = vrot.slane %v3012, %v3019
        %v3022 = vunpack.c.l.s4 1966171168
        %v3023 = vunpack.c.0.s8 %v3022
        %v3024 = vlaneseq
        %v3025 = vshrl.u32 %v3024, 7
        %v3026 = vsub.s32 %v3023, %v3025
        %v3027 = vrot.slane %v3013, %v3026
        %v3028 = vcombine.high %v3020, %v3020
        %v3029 = vcombine.low %v2669, %v2524
        %v3031 = vunpack.c.l.s4 1966171168
        %v3032 = vunpack.c.0.s8 %v3031
        %v3033 = vlaneseq
        %v3034 = vshrl.u32 %v3033, 7
        %v3035 = vsub.s32 %v3032, %v3034
        %v3036 = vrot.slane %v3029, %v3035
        %v3037 = vcombine.high %v3036, %v3036
        %v3039 = vunpack.c.l.s4 1966171168
        %v3040 = vunpack.c.0.s8 %v3039
        %v3041 = vlaneseq
        %v3042 = vshrl.u32 %v3041, 7
        %v3043 = vsub.s32 %v3040, %v3042
        %v3044 = vrot.slane %v3036, %v3043
        %v3046 = vunpack.c.l.s4 1966171168
        %v3047 = vunpack.c.0.s8 %v3046
        %v3048 = vlaneseq
        %v3049 = vshrl.u32 %v3048, 7
        %v3050 = vsub.s32 %v3047, %v3049
        %v3051 = vrot.slane %v3037, %v3050
        %v3052 = vcombine.high %v3044, %v3044
        %v3053 = vcombine.low %v2670, %v2525
        %v3055 = vunpack.c.l.s4 1966171168
        %v3056 = vunpack.c.0.s8 %v3055
        %v3057 = vlaneseq
        %v3058 = vshrl.u32 %v3057, 7
        %v3059 = vsub.s32 %v3056, %v3058
        %v3060 = vrot.slane %v3053, %v3059
        %v3061 = vcombine.high %v3060, %v3060
        %v3063 = vunpack.c.l.s4 1966171168
        %v3064 = vunpack.c.0.s8 %v3063
        %v3065 = vlaneseq
        %v3066 = vshrl.u32 %v3065, 7
        %v3067 = vsub.s32 %v3064, %v3066
        %v3068 = vrot.slane %v3060, %v3067
        %v3070 = vunpack.c.l.s4 1966171168
        %v3071 = vunpack.c.0.s8 %v3070
        %v3072 = vlaneseq
        %v3073 = vshrl.u32 %v3072, 7
        %v3074 = vsub.s32 %v3071, %v3073
        %v3075 = vrot.slane %v3061, %v3074
        %v3076 = vcombine.high %v3068, %v3068
        %v3077 = vcombine.low %v2671, %v2526
        %v3079 = vunpack.c.l.s4 1966171168
        %v3080 = vunpack.c.0.s8 %v3079
        %v3081 = vlaneseq
        %v3082 = vshrl.u32 %v3081, 7
        %v3083 = vsub.s32 %v3080, %v3082
        %v3084 = vrot.slane %v3077, %v3083
        %v3085 = vcombine.high %v3084, %v3084
        %v3087 = vunpack.c.l.s4 1966171168
        %v3088 = vunpack.c.0.s8 %v3087
        %v3089 = vlaneseq
        %v3090 = vshrl.u32 %v3089, 7
        %v3091 = vsub.s32 %v3088, %v3090
        %v3092 = vrot.slane %v3084, %v3091
        %v3094 = vunpack.c.l.s4 1966171168
        %v3095 = vunpack.c.0.s8 %v3094
        %v3096 = vlaneseq
        %v3097 = vshrl.u32 %v3096, 7
        %v3098 = vsub.s32 %v3095, %v3097
        %v3099 = vrot.slane %v3085, %v3098
        %v3100 = vcombine.high %v3092, %v3092
        %v3101 = vcombine.low %v2672, %v2527
        %v3103 = vunpack.c.l.s4 1966171168
        %v3104 = vunpack.c.0.s8 %v3103
        %v3105 = vlaneseq
        %v3106 = vshrl.u32 %v3105, 7
        %v3107 = vsub.s32 %v3104, %v3106
        %v3108 = vrot.slane %v3101, %v3107
        %v3109 = vcombine.high %v3108, %v3108
        %v3111 = vunpack.c.l.s4 1966171168
        %v3112 = vunpack.c.0.s8 %v3111
        %v3113 = vlaneseq
        %v3114 = vshrl.u32 %v3113, 7
        %v3115 = vsub.s32 %v3112, %v3114
        %v3116 = vrot.slane %v3108, %v3115
        %v3118 = vunpack.c.l.s4 1966171168
        %v3119 = vunpack.c.0.s8 %v3118
        %v3120 = vlaneseq
        %v3121 = vshrl.u32 %v3120, 7
        %v3122 = vsub.s32 %v3119, %v3121
        %v3123 = vrot.slane %v3109, %v3122
        %v3124 = vcombine.high %v3116, %v3116
        %v3125 = vcombine.low %v2673, %v2528
        %v3127 = vunpack.c.l.s4 1966171168
        %v3128 = vunpack.c.0.s8 %v3127
        %v3129 = vlaneseq
        %v3130 = vshrl.u32 %v3129, 7
        %v3131 = vsub.s32 %v3128, %v3130
        %v3132 = vrot.slane %v3125, %v3131
        %v3133 = vcombine.high %v3132, %v3132
        %v3135 = vunpack.c.l.s4 1966171168
        %v3136 = vunpack.c.0.s8 %v3135
        %v3137 = vlaneseq
        %v3138 = vshrl.u32 %v3137, 7
        %v3139 = vsub.s32 %v3136, %v3138
        %v3140 = vrot.slane %v3132, %v3139
        %v3142 = vunpack.c.l.s4 1966171168
        %v3143 = vunpack.c.0.s8 %v3142
        %v3144 = vlaneseq
        %v3145 = vshrl.u32 %v3144, 7
        %v3146 = vsub.s32 %v3143, %v3145
        %v3147 = vrot.slane %v3133, %v3146
        %v3148 = vcombine.high %v3140, %v3140
        %v3149 = vcombine.low %v2674, %v2529
        %v3151 = vunpack.c.l.s4 1966171168
        %v3152 = vunpack.c.0.s8 %v3151
        %v3153 = vlaneseq
        %v3154 = vshrl.u32 %v3153, 7
        %v3155 = vsub.s32 %v3152, %v3154
        %v3156 = vrot.slane %v3149, %v3155
        %v3157 = vcombine.high %v3156, %v3156
        %v3159 = vunpack.c.l.s4 1966171168
        %v3160 = vunpack.c.0.s8 %v3159
        %v3161 = vlaneseq
        %v3162 = vshrl.u32 %v3161, 7
        %v3163 = vsub.s32 %v3160, %v3162
        %v3164 = vrot.slane %v3156, %v3163
        %v3166 = vunpack.c.l.s4 1966171168
        %v3167 = vunpack.c.0.s8 %v3166
        %v3168 = vlaneseq
        %v3169 = vshrl.u32 %v3168, 7
        %v3170 = vsub.s32 %v3167, %v3169
        %v3171 = vrot.slane %v3157, %v3170
        %v3172 = vcombine.high %v3164, %v3164
        %v3173 = vcombine.low %v2675, %v2530
        %v3175 = vunpack.c.l.s4 1966171168
        %v3176 = vunpack.c.0.s8 %v3175
        %v3177 = vlaneseq
        %v3178 = vshrl.u32 %v3177, 7
        %v3179 = vsub.s32 %v3176, %v3178
        %v3180 = vrot.slane %v3173, %v3179
        %v3181 = vcombine.high %v3180, %v3180
        %v3183 = vunpack.c.l.s4 1966171168
        %v3184 = vunpack.c.0.s8 %v3183
        %v3185 = vlaneseq
        %v3186 = vshrl.u32 %v3185, 7
        %v3187 = vsub.s32 %v3184, %v3186
        %v3188 = vrot.slane %v3180, %v3187
        %v3190 = vunpack.c.l.s4 1966171168
        %v3191 = vunpack.c.0.s8 %v3190
        %v3192 = vlaneseq
        %v3193 = vshrl.u32 %v3192, 7
        %v3194 = vsub.s32 %v3191, %v3193
        %v3195 = vrot.slane %v3181, %v3194
        %v3196 = vcombine.high %v3188, %v3188
        %v3197 = vcombine.low %v2676, %v2531
        %v3199 = vunpack.c.l.s4 1966171168
        %v3200 = vunpack.c.0.s8 %v3199
        %v3201 = vlaneseq
        %v3202 = vshrl.u32 %v3201, 7
        %v3203 = vsub.s32 %v3200, %v3202
        %v3204 = vrot.slane %v3197, %v3203
        %v3205 = vcombine.high %v3204, %v3204
        %v3207 = vunpack.c.l.s4 1966171168
        %v3208 = vunpack.c.0.s8 %v3207
        %v3209 = vlaneseq
        %v3210 = vshrl.u32 %v3209, 7
        %v3211 = vsub.s32 %v3208, %v3210
        %v3212 = vrot.slane %v3204, %v3211
        %v3214 = vunpack.c.l.s4 1966171168
        %v3215 = vunpack.c.0.s8 %v3214
        %v3216 = vlaneseq
        %v3217 = vshrl.u32 %v3216, 7
        %v3218 = vsub.s32 %v3215, %v3217
        %v3219 = vrot.slane %v3205, %v3218
        %v3220 = vcombine.high %v3212, %v3212
        %v3221 = vcombine.low %v2677, %v2532
        %v3223 = vunpack.c.l.s4 1966171168
        %v3224 = vunpack.c.0.s8 %v3223
        %v3225 = vlaneseq
        %v3226 = vshrl.u32 %v3225, 7
        %v3227 = vsub.s32 %v3224, %v3226
        %v3228 = vrot.slane %v3221, %v3227
        %v3229 = vcombine.high %v3228, %v3228
        %v3231 = vunpack.c.l.s4 1966171168
        %v3232 = vunpack.c.0.s8 %v3231
        %v3233 = vlaneseq
        %v3234 = vshrl.u32 %v3233, 7
        %v3235 = vsub.s32 %v3232, %v3234
        %v3236 = vrot.slane %v3228, %v3235
        %v3238 = vunpack.c.l.s4 1966171168
        %v3239 = vunpack.c.0.s8 %v3238
        %v3240 = vlaneseq
        %v3241 = vshrl.u32 %v3240, 7
        %v3242 = vsub.s32 %v3239, %v3241
        %v3243 = vrot.slane %v3229, %v3242
        %v3244 = vcombine.high %v3236, %v3236
        %v3245 = vcombine.low %v2678, %v2533
        %v3247 = vunpack.c.l.s4 1966171168
        %v3248 = vunpack.c.0.s8 %v3247
        %v3249 = vlaneseq
        %v3250 = vshrl.u32 %v3249, 7
        %v3251 = vsub.s32 %v3248, %v3250
        %v3252 = vrot.slane %v3245, %v3251
        %v3253 = vcombine.high %v3252, %v3252
        %v3255 = vunpack.c.l.s4 1966171168
        %v3256 = vunpack.c.0.s8 %v3255
        %v3257 = vlaneseq
        %v3258 = vshrl.u32 %v3257, 7
        %v3259 = vsub.s32 %v3256, %v3258
        %v3260 = vrot.slane %v3252, %v3259
        %v3262 = vunpack.c.l.s4 1966171168
        %v3263 = vunpack.c.0.s8 %v3262
        %v3264 = vlaneseq
        %v3265 = vshrl.u32 %v3264, 7
        %v3266 = vsub.s32 %v3263, %v3265
        %v3267 = vrot.slane %v3253, %v3266
        %v3268 = vcombine.high %v3260, %v3260
        %v3269 = vcombine.low %v2679, %v2691
        %v3271 = vunpack.c.l.s4 1966171168
        %v3272 = vunpack.c.0.s8 %v3271
        %v3273 = vlaneseq
        %v3274 = vshrl.u32 %v3273, 7
        %v3275 = vsub.s32 %v3272, %v3274
        %v3276 = vrot.slane %v3269, %v3275
        %v3277 = vcombine.high %v3276, %v3276
        %v3279 = vunpack.c.l.s4 1966171168
        %v3280 = vunpack.c.0.s8 %v3279
        %v3281 = vlaneseq
        %v3282 = vshrl.u32 %v3281, 7
        %v3283 = vsub.s32 %v3280, %v3282
        %v3284 = vrot.slane %v3276, %v3283
        %v3286 = vunpack.c.l.s4 1966171168
        %v3287 = vunpack.c.0.s8 %v3286
        %v3288 = vlaneseq
        %v3289 = vshrl.u32 %v3288, 7
        %v3290 = vsub.s32 %v3287, %v3289
        %v3291 = vrot.slane %v3277, %v3290
        %v3292 = vcombine.high %v3284, %v3284
        %v3293 = vcombine.low %v2680, %v2692
        %v3295 = vunpack.c.l.s4 1966171168
        %v3296 = vunpack.c.0.s8 %v3295
        %v3297 = vlaneseq
        %v3298 = vshrl.u32 %v3297, 7
        %v3299 = vsub.s32 %v3296, %v3298
        %v3300 = vrot.slane %v3293, %v3299
        %v3301 = vcombine.high %v3300, %v3300
        %v3303 = vunpack.c.l.s4 1966171168
        %v3304 = vunpack.c.0.s8 %v3303
        %v3305 = vlaneseq
        %v3306 = vshrl.u32 %v3305, 7
        %v3307 = vsub.s32 %v3304, %v3306
        %v3308 = vrot.slane %v3300, %v3307
        %v3310 = vunpack.c.l.s4 1966171168
        %v3311 = vunpack.c.0.s8 %v3310
        %v3312 = vlaneseq
        %v3313 = vshrl.u32 %v3312, 7
        %v3314 = vsub.s32 %v3311, %v3313
        %v3315 = vrot.slane %v3301, %v3314
        %v3316 = vcombine.high %v3308, %v3308
        %v3317 = vld [vmem:[%s3] sm:$0xf]
        %v3318 = vld [vmem:[%s3 + $0x4] sm:$0xf]
        %v3319 = vld [vmem:[%s3 + $0x8] sm:$0xf]
        %v3320 = vld [vmem:[%s3 + $0xc] sm:$0xf]
        %v3321 = vld [vmem:[%s3 + $0x10] sm:$0xf]
        %v3322 = vld [vmem:[%s3 + $0x14] sm:$0xf]
        %v3323 = vld [vmem:[%s3 + $0x18] sm:$0xf]
        %v3324 = vld [vmem:[%s3 + $0x1c] sm:$0xf]
        %v3325 = vld [vmem:[%s3 + $0x20] sm:$0xf]
        %v3326 = vld [vmem:[%s3 + $0x24] sm:$0xf]
        %v3327 = vld [vmem:[%s3 + $0x28] sm:$0xf]
        %v3328 = vld [vmem:[%s3 + $0x2c] sm:$0xf]
        %v3329 = vld [vmem:[%s3 + $0x30] sm:$0xf]
        %v3330 = vld [vmem:[%s3 + $0x34] sm:$0xf]
        %v3331 = vld [vmem:[%s3 + $0x38] sm:$0xf]
        %v3332 = vld [vmem:[%s3 + $0x3c] sm:$0xf]
        %v3333 = vld [vmem:[%s3 + $0x40] sm:$0xf]
        %v3334 = vld [vmem:[%s3 + $0x44] sm:$0xf]
        %v3335 = vld [vmem:[%s3 + $0x48] sm:$0xf]
        %v3336 = vld [vmem:[%s3 + $0x4c] sm:$0xf]
        %v3337 = vld [vmem:[%s3 + $0x50] sm:$0xf]
        %v3338 = vld [vmem:[%s3 + $0x54] sm:$0xf]
        %v3339 = vld [vmem:[%s3 + $0x58] sm:$0xf]
        %v3340 = vld [vmem:[%s3 + $0x5c] sm:$0xf]
        %v3341 = vld [vmem:[%s4] sm:$0x1]
        %v3343 = vlaneseq
        %v3344 = vshrl.u32 %v3343, 7
        %v3345 = vsub.s32 0, %v3344
        %v3346 = vrot.slane %v3341, %v3345
        %v3348 = vcombine.low %v2756, %v2763
        %v3349 = vcombine.low %v2764, %v2780
        %v3350 = vcombine.low %v2787, %v2788
        %v3351 = vcombine.low %v2804, %v2811
        %v3353 = vunpack.c.l.s4 1966171168
        %v3354 = vunpack.c.0.s8 %v3353
        %v3355 = vlaneseq
        %v3356 = vshrl.u32 %v3355, 7
        %v3357 = vsub.s32 %v3354, %v3356
        %v3358 = vrot.slane %v3348, %v3357
        %v3360 = vunpack.c.l.s4 1966171168
        %v3361 = vunpack.c.0.s8 %v3360
        %v3362 = vlaneseq
        %v3363 = vshrl.u32 %v3362, 7
        %v3364 = vsub.s32 %v3361, %v3363
        %v3365 = vrot.slane %v3349, %v3364
        %v3367 = vunpack.c.l.s4 1966171168
        %v3368 = vunpack.c.0.s8 %v3367
        %v3369 = vlaneseq
        %v3370 = vshrl.u32 %v3369, 7
        %v3371 = vsub.s32 %v3368, %v3370
        %v3372 = vrot.slane %v3350, %v3371
        %v3374 = vunpack.c.l.s4 1966171168
        %v3375 = vunpack.c.0.s8 %v3374
        %v3376 = vlaneseq
        %v3377 = vshrl.u32 %v3376, 7
        %v3378 = vsub.s32 %v3375, %v3377
        %v3379 = vrot.slane %v3351, %v3378
        %v3380 = vcombine.low %v3358, %v3365
        %v3381 = vcombine.high %v3358, %v3365
        %v3382 = vcombine.low %v3372, %v3379
        %v3383 = vcombine.high %v3372, %v3379
        %v3385 = vunpack.c.l.s4 1966171168
        %v3386 = vunpack.c.0.s8 %v3385
        %v3387 = vlaneseq
        %v3388 = vshrl.u32 %v3387, 7
        %v3389 = vsub.s32 %v3386, %v3388
        %v3390 = vrot.slane %v3380, %v3389
        %v3392 = vunpack.c.l.s4 1966171168
        %v3393 = vunpack.c.0.s8 %v3392
        %v3394 = vlaneseq
        %v3395 = vshrl.u32 %v3394, 7
        %v3396 = vsub.s32 %v3393, %v3395
        %v3397 = vrot.slane %v3381, %v3396
        %v3399 = vunpack.c.l.s4 1966171168
        %v3400 = vunpack.c.0.s8 %v3399
        %v3401 = vlaneseq
        %v3402 = vshrl.u32 %v3401, 7
        %v3403 = vsub.s32 %v3400, %v3402
        %v3404 = vrot.slane %v3382, %v3403
        %v3406 = vunpack.c.l.s4 1966171168
        %v3407 = vunpack.c.0.s8 %v3406
        %v3408 = vlaneseq
        %v3409 = vshrl.u32 %v3408, 7
        %v3410 = vsub.s32 %v3407, %v3409
        %v3411 = vrot.slane %v3383, %v3410
        %v3412 = vcombine.low %v3390, %v3404
        %v3413 = vcombine.low %v3397, %v3411
        %v3414 = vcombine.low %v2812, %v2828
        %v3415 = vcombine.low %v2835, %v2836
        %v3416 = vcombine.low %v2852, %v2859
        %v3417 = vcombine.low %v2860, %v2876
        %v3419 = vunpack.c.l.s4 1966171168
        %v3420 = vunpack.c.0.s8 %v3419
        %v3421 = vlaneseq
        %v3422 = vshrl.u32 %v3421, 7
        %v3423 = vsub.s32 %v3420, %v3422
        %v3424 = vrot.slane %v3414, %v3423
        %v3426 = vunpack.c.l.s4 1966171168
        %v3427 = vunpack.c.0.s8 %v3426
        %v3428 = vlaneseq
        %v3429 = vshrl.u32 %v3428, 7
        %v3430 = vsub.s32 %v3427, %v3429
        %v3431 = vrot.slane %v3415, %v3430
        %v3433 = vunpack.c.l.s4 1966171168
        %v3434 = vunpack.c.0.s8 %v3433
        %v3435 = vlaneseq
        %v3436 = vshrl.u32 %v3435, 7
        %v3437 = vsub.s32 %v3434, %v3436
        %v3438 = vrot.slane %v3416, %v3437
        %v3440 = vunpack.c.l.s4 1966171168
        %v3441 = vunpack.c.0.s8 %v3440
        %v3442 = vlaneseq
        %v3443 = vshrl.u32 %v3442, 7
        %v3444 = vsub.s32 %v3441, %v3443
        %v3445 = vrot.slane %v3417, %v3444
        %v3446 = vcombine.low %v3424, %v3431
        %v3447 = vcombine.high %v3424, %v3431
        %v3448 = vcombine.low %v3438, %v3445
        %v3449 = vcombine.high %v3438, %v3445
        %v3451 = vunpack.c.l.s4 1966171168
        %v3452 = vunpack.c.0.s8 %v3451
        %v3453 = vlaneseq
        %v3454 = vshrl.u32 %v3453, 7
        %v3455 = vsub.s32 %v3452, %v3454
        %v3456 = vrot.slane %v3446, %v3455
        %v3458 = vunpack.c.l.s4 1966171168
        %v3459 = vunpack.c.0.s8 %v3458
        %v3460 = vlaneseq
        %v3461 = vshrl.u32 %v3460, 7
        %v3462 = vsub.s32 %v3459, %v3461
        %v3463 = vrot.slane %v3447, %v3462
        %v3465 = vunpack.c.l.s4 1966171168
        %v3466 = vunpack.c.0.s8 %v3465
        %v3467 = vlaneseq
        %v3468 = vshrl.u32 %v3467, 7
        %v3469 = vsub.s32 %v3466, %v3468
        %v3470 = vrot.slane %v3448, %v3469
        %v3472 = vunpack.c.l.s4 1966171168
        %v3473 = vunpack.c.0.s8 %v3472
        %v3474 = vlaneseq
        %v3475 = vshrl.u32 %v3474, 7
        %v3476 = vsub.s32 %v3473, %v3475
        %v3477 = vrot.slane %v3449, %v3476
        %v3478 = vcombine.low %v3456, %v3470
        %v3479 = vcombine.low %v3463, %v3477
        %v3480 = vcombine.low %v2883, %v2884
        %v3481 = vcombine.low %v2900, %v2907
        %v3482 = vcombine.low %v2908, %v2924
        %v3483 = vcombine.low %v2931, %v2932
        %v3485 = vunpack.c.l.s4 1966171168
        %v3486 = vunpack.c.0.s8 %v3485
        %v3487 = vlaneseq
        %v3488 = vshrl.u32 %v3487, 7
        %v3489 = vsub.s32 %v3486, %v3488
        %v3490 = vrot.slane %v3480, %v3489
        %v3492 = vunpack.c.l.s4 1966171168
        %v3493 = vunpack.c.0.s8 %v3492
        %v3494 = vlaneseq
        %v3495 = vshrl.u32 %v3494, 7
        %v3496 = vsub.s32 %v3493, %v3495
        %v3497 = vrot.slane %v3481, %v3496
        %v3499 = vunpack.c.l.s4 1966171168
        %v3500 = vunpack.c.0.s8 %v3499
        %v3501 = vlaneseq
        %v3502 = vshrl.u32 %v3501, 7
        %v3503 = vsub.s32 %v3500, %v3502
        %v3504 = vrot.slane %v3482, %v3503
        %v3506 = vunpack.c.l.s4 1966171168
        %v3507 = vunpack.c.0.s8 %v3506
        %v3508 = vlaneseq
        %v3509 = vshrl.u32 %v3508, 7
        %v3510 = vsub.s32 %v3507, %v3509
        %v3511 = vrot.slane %v3483, %v3510
        %v3512 = vcombine.low %v3490, %v3497
        %v3513 = vcombine.high %v3490, %v3497
        %v3514 = vcombine.low %v3504, %v3511
        %v3515 = vcombine.high %v3504, %v3511
        %v3517 = vunpack.c.l.s4 1966171168
        %v3518 = vunpack.c.0.s8 %v3517
        %v3519 = vlaneseq
        %v3520 = vshrl.u32 %v3519, 7
        %v3521 = vsub.s32 %v3518, %v3520
        %v3522 = vrot.slane %v3512, %v3521
        %v3524 = vunpack.c.l.s4 1966171168
        %v3525 = vunpack.c.0.s8 %v3524
        %v3526 = vlaneseq
        %v3527 = vshrl.u32 %v3526, 7
        %v3528 = vsub.s32 %v3525, %v3527
        %v3529 = vrot.slane %v3513, %v3528
        %v3531 = vunpack.c.l.s4 1966171168
        %v3532 = vunpack.c.0.s8 %v3531
        %v3533 = vlaneseq
        %v3534 = vshrl.u32 %v3533, 7
        %v3535 = vsub.s32 %v3532, %v3534
        %v3536 = vrot.slane %v3514, %v3535
        %v3538 = vunpack.c.l.s4 1966171168
        %v3539 = vunpack.c.0.s8 %v3538
        %v3540 = vlaneseq
        %v3541 = vshrl.u32 %v3540, 7
        %v3542 = vsub.s32 %v3539, %v3541
        %v3543 = vrot.slane %v3515, %v3542
        %v3544 = vcombine.low %v3522, %v3536
        %v3545 = vcombine.low %v3529, %v3543
        %v3546 = vcombine.low %v2948, %v2955
        %v3547 = vcombine.low %v2956, %v2972
        %v3548 = vcombine.low %v2979, %v2980
        %v3549 = vcombine.low %v2996, %v3003
        %v3551 = vunpack.c.l.s4 1966171168
        %v3552 = vunpack.c.0.s8 %v3551
        %v3553 = vlaneseq
        %v3554 = vshrl.u32 %v3553, 7
        %v3555 = vsub.s32 %v3552, %v3554
        %v3556 = vrot.slane %v3546, %v3555
        %v3558 = vunpack.c.l.s4 1966171168
        %v3559 = vunpack.c.0.s8 %v3558
        %v3560 = vlaneseq
        %v3561 = vshrl.u32 %v3560, 7
        %v3562 = vsub.s32 %v3559, %v3561
        %v3563 = vrot.slane %v3547, %v3562
        %v3565 = vunpack.c.l.s4 1966171168
        %v3566 = vunpack.c.0.s8 %v3565
        %v3567 = vlaneseq
        %v3568 = vshrl.u32 %v3567, 7
        %v3569 = vsub.s32 %v3566, %v3568
        %v3570 = vrot.slane %v3548, %v3569
        %v3572 = vunpack.c.l.s4 1966171168
        %v3573 = vunpack.c.0.s8 %v3572
        %v3574 = vlaneseq
        %v3575 = vshrl.u32 %v3574, 7
        %v3576 = vsub.s32 %v3573, %v3575
        %v3577 = vrot.slane %v3549, %v3576
        %v3578 = vcombine.low %v3556, %v3563
        %v3579 = vcombine.high %v3556, %v3563
        %v3580 = vcombine.low %v3570, %v3577
        %v3581 = vcombine.high %v3570, %v3577
        %v3583 = vunpack.c.l.s4 1966171168
        %v3584 = vunpack.c.0.s8 %v3583
        %v3585 = vlaneseq
        %v3586 = vshrl.u32 %v3585, 7
        %v3587 = vsub.s32 %v3584, %v3586
        %v3588 = vrot.slane %v3578, %v3587
        %v3590 = vunpack.c.l.s4 1966171168
        %v3591 = vunpack.c.0.s8 %v3590
        %v3592 = vlaneseq
        %v3593 = vshrl.u32 %v3592, 7
        %v3594 = vsub.s32 %v3591, %v3593
        %v3595 = vrot.slane %v3579, %v3594
        %v3597 = vunpack.c.l.s4 1966171168
        %v3598 = vunpack.c.0.s8 %v3597
        %v3599 = vlaneseq
        %v3600 = vshrl.u32 %v3599, 7
        %v3601 = vsub.s32 %v3598, %v3600
        %v3602 = vrot.slane %v3580, %v3601
        %v3604 = vunpack.c.l.s4 1966171168
        %v3605 = vunpack.c.0.s8 %v3604
        %v3606 = vlaneseq
        %v3607 = vshrl.u32 %v3606, 7
        %v3608 = vsub.s32 %v3605, %v3607
        %v3609 = vrot.slane %v3581, %v3608
        %v3610 = vcombine.low %v3588, %v3602
        %v3611 = vcombine.low %v3595, %v3609
        %v3612 = vcombine.low %v3004, %v3020
        %v3613 = vcombine.low %v3027, %v3028
        %v3614 = vcombine.low %v3044, %v3051
        %v3615 = vcombine.low %v3052, %v3068
        %v3617 = vunpack.c.l.s4 1966171168
        %v3618 = vunpack.c.0.s8 %v3617
        %v3619 = vlaneseq
        %v3620 = vshrl.u32 %v3619, 7
        %v3621 = vsub.s32 %v3618, %v3620
        %v3622 = vrot.slane %v3612, %v3621
        %v3624 = vunpack.c.l.s4 1966171168
        %v3625 = vunpack.c.0.s8 %v3624
        %v3626 = vlaneseq
        %v3627 = vshrl.u32 %v3626, 7
        %v3628 = vsub.s32 %v3625, %v3627
        %v3629 = vrot.slane %v3613, %v3628
        %v3631 = vunpack.c.l.s4 1966171168
        %v3632 = vunpack.c.0.s8 %v3631
        %v3633 = vlaneseq
        %v3634 = vshrl.u32 %v3633, 7
        %v3635 = vsub.s32 %v3632, %v3634
        %v3636 = vrot.slane %v3614, %v3635
        %v3638 = vunpack.c.l.s4 1966171168
        %v3639 = vunpack.c.0.s8 %v3638
        %v3640 = vlaneseq
        %v3641 = vshrl.u32 %v3640, 7
        %v3642 = vsub.s32 %v3639, %v3641
        %v3643 = vrot.slane %v3615, %v3642
        %v3644 = vcombine.low %v3622, %v3629
        %v3645 = vcombine.high %v3622, %v3629
        %v3646 = vcombine.low %v3636, %v3643
        %v3647 = vcombine.high %v3636, %v3643
        %v3649 = vunpack.c.l.s4 1966171168
        %v3650 = vunpack.c.0.s8 %v3649
        %v3651 = vlaneseq
        %v3652 = vshrl.u32 %v3651, 7
        %v3653 = vsub.s32 %v3650, %v3652
        %v3654 = vrot.slane %v3644, %v3653
        %v3656 = vunpack.c.l.s4 1966171168
        %v3657 = vunpack.c.0.s8 %v3656
        %v3658 = vlaneseq
        %v3659 = vshrl.u32 %v3658, 7
        %v3660 = vsub.s32 %v3657, %v3659
        %v3661 = vrot.slane %v3645, %v3660
        %v3663 = vunpack.c.l.s4 1966171168
        %v3664 = vunpack.c.0.s8 %v3663
        %v3665 = vlaneseq
        %v3666 = vshrl.u32 %v3665, 7
        %v3667 = vsub.s32 %v3664, %v3666
        %v3668 = vrot.slane %v3646, %v3667
        %v3670 = vunpack.c.l.s4 1966171168
        %v3671 = vunpack.c.0.s8 %v3670
        %v3672 = vlaneseq
        %v3673 = vshrl.u32 %v3672, 7
        %v3674 = vsub.s32 %v3671, %v3673
        %v3675 = vrot.slane %v3647, %v3674
        %v3676 = vcombine.low %v3654, %v3668
        %v3677 = vcombine.low %v3661, %v3675
        %v3678 = vcombine.low %v3075, %v3076
        %v3679 = vcombine.low %v3092, %v3099
        %v3680 = vcombine.low %v3100, %v3116
        %v3681 = vcombine.low %v3123, %v3124
        %v3683 = vunpack.c.l.s4 1966171168
        %v3684 = vunpack.c.0.s8 %v3683
        %v3685 = vlaneseq
        %v3686 = vshrl.u32 %v3685, 7
        %v3687 = vsub.s32 %v3684, %v3686
        %v3688 = vrot.slane %v3678, %v3687
        %v3690 = vunpack.c.l.s4 1966171168
        %v3691 = vunpack.c.0.s8 %v3690
        %v3692 = vlaneseq
        %v3693 = vshrl.u32 %v3692, 7
        %v3694 = vsub.s32 %v3691, %v3693
        %v3695 = vrot.slane %v3679, %v3694
        %v3697 = vunpack.c.l.s4 1966171168
        %v3698 = vunpack.c.0.s8 %v3697
        %v3699 = vlaneseq
        %v3700 = vshrl.u32 %v3699, 7
        %v3701 = vsub.s32 %v3698, %v3700
        %v3702 = vrot.slane %v3680, %v3701
        %v3704 = vunpack.c.l.s4 1966171168
        %v3705 = vunpack.c.0.s8 %v3704
        %v3706 = vlaneseq
        %v3707 = vshrl.u32 %v3706, 7
        %v3708 = vsub.s32 %v3705, %v3707
        %v3709 = vrot.slane %v3681, %v3708
        %v3710 = vcombine.low %v3688, %v3695
        %v3711 = vcombine.high %v3688, %v3695
        %v3712 = vcombine.low %v3702, %v3709
        %v3713 = vcombine.high %v3702, %v3709
        %v3715 = vunpack.c.l.s4 1966171168
        %v3716 = vunpack.c.0.s8 %v3715
        %v3717 = vlaneseq
        %v3718 = vshrl.u32 %v3717, 7
        %v3719 = vsub.s32 %v3716, %v3718
        %v3720 = vrot.slane %v3710, %v3719
        %v3722 = vunpack.c.l.s4 1966171168
        %v3723 = vunpack.c.0.s8 %v3722
        %v3724 = vlaneseq
        %v3725 = vshrl.u32 %v3724, 7
        %v3726 = vsub.s32 %v3723, %v3725
        %v3727 = vrot.slane %v3711, %v3726
        %v3729 = vunpack.c.l.s4 1966171168
        %v3730 = vunpack.c.0.s8 %v3729
        %v3731 = vlaneseq
        %v3732 = vshrl.u32 %v3731, 7
        %v3733 = vsub.s32 %v3730, %v3732
        %v3734 = vrot.slane %v3712, %v3733
        %v3736 = vunpack.c.l.s4 1966171168
        %v3737 = vunpack.c.0.s8 %v3736
        %v3738 = vlaneseq
        %v3739 = vshrl.u32 %v3738, 7
        %v3740 = vsub.s32 %v3737, %v3739
        %v3741 = vrot.slane %v3713, %v3740
        %v3742 = vcombine.low %v3720, %v3734
        %v3743 = vcombine.low %v3727, %v3741
        %v3744 = vcombine.low %v3140, %v3147
        %v3745 = vcombine.low %v3148, %v3164
        %v3746 = vcombine.low %v3171, %v3172
        %v3747 = vcombine.low %v3188, %v3195
        %v3749 = vunpack.c.l.s4 1966171168
        %v3750 = vunpack.c.0.s8 %v3749
        %v3751 = vlaneseq
        %v3752 = vshrl.u32 %v3751, 7
        %v3753 = vsub.s32 %v3750, %v3752
        %v3754 = vrot.slane %v3744, %v3753
        %v3756 = vunpack.c.l.s4 1966171168
        %v3757 = vunpack.c.0.s8 %v3756
        %v3758 = vlaneseq
        %v3759 = vshrl.u32 %v3758, 7
        %v3760 = vsub.s32 %v3757, %v3759
        %v3761 = vrot.slane %v3745, %v3760
        %v3763 = vunpack.c.l.s4 1966171168
        %v3764 = vunpack.c.0.s8 %v3763
        %v3765 = vlaneseq
        %v3766 = vshrl.u32 %v3765, 7
        %v3767 = vsub.s32 %v3764, %v3766
        %v3768 = vrot.slane %v3746, %v3767
        %v3770 = vunpack.c.l.s4 1966171168
        %v3771 = vunpack.c.0.s8 %v3770
        %v3772 = vlaneseq
        %v3773 = vshrl.u32 %v3772, 7
        %v3774 = vsub.s32 %v3771, %v3773
        %v3775 = vrot.slane %v3747, %v3774
        %v3776 = vcombine.low %v3754, %v3761
        %v3777 = vcombine.high %v3754, %v3761
        %v3778 = vcombine.low %v3768, %v3775
        %v3779 = vcombine.high %v3768, %v3775
        %v3781 = vunpack.c.l.s4 1966171168
        %v3782 = vunpack.c.0.s8 %v3781
        %v3783 = vlaneseq
        %v3784 = vshrl.u32 %v3783, 7
        %v3785 = vsub.s32 %v3782, %v3784
        %v3786 = vrot.slane %v3776, %v3785
        %v3788 = vunpack.c.l.s4 1966171168
        %v3789 = vunpack.c.0.s8 %v3788
        %v3790 = vlaneseq
        %v3791 = vshrl.u32 %v3790, 7
        %v3792 = vsub.s32 %v3789, %v3791
        %v3793 = vrot.slane %v3777, %v3792
        %v3795 = vunpack.c.l.s4 1966171168
        %v3796 = vunpack.c.0.s8 %v3795
        %v3797 = vlaneseq
        %v3798 = vshrl.u32 %v3797, 7
        %v3799 = vsub.s32 %v3796, %v3798
        %v3800 = vrot.slane %v3778, %v3799
        %v3802 = vunpack.c.l.s4 1966171168
        %v3803 = vunpack.c.0.s8 %v3802
        %v3804 = vlaneseq
        %v3805 = vshrl.u32 %v3804, 7
        %v3806 = vsub.s32 %v3803, %v3805
        %v3807 = vrot.slane %v3779, %v3806
        %v3808 = vcombine.low %v3786, %v3800
        %v3809 = vcombine.low %v3793, %v3807
        %v3810 = vcombine.low %v3196, %v3212
        %v3811 = vcombine.low %v3219, %v3220
        %v3812 = vcombine.low %v3236, %v3243
        %v3813 = vcombine.low %v3244, %v3260
        %v3815 = vunpack.c.l.s4 1966171168
        %v3816 = vunpack.c.0.s8 %v3815
        %v3817 = vlaneseq
        %v3818 = vshrl.u32 %v3817, 7
        %v3819 = vsub.s32 %v3816, %v3818
        %v3820 = vrot.slane %v3810, %v3819
        %v3822 = vunpack.c.l.s4 1966171168
        %v3823 = vunpack.c.0.s8 %v3822
        %v3824 = vlaneseq
        %v3825 = vshrl.u32 %v3824, 7
        %v3826 = vsub.s32 %v3823, %v3825
        %v3827 = vrot.slane %v3811, %v3826
        %v3829 = vunpack.c.l.s4 1966171168
        %v3830 = vunpack.c.0.s8 %v3829
        %v3831 = vlaneseq
        %v3832 = vshrl.u32 %v3831, 7
        %v3833 = vsub.s32 %v3830, %v3832
        %v3834 = vrot.slane %v3812, %v3833
        %v3836 = vunpack.c.l.s4 1966171168
        %v3837 = vunpack.c.0.s8 %v3836
        %v3838 = vlaneseq
        %v3839 = vshrl.u32 %v3838, 7
        %v3840 = vsub.s32 %v3837, %v3839
        %v3841 = vrot.slane %v3813, %v3840
        %v3842 = vcombine.low %v3820, %v3827
        %v3843 = vcombine.high %v3820, %v3827
        %v3844 = vcombine.low %v3834, %v3841
        %v3845 = vcombine.high %v3834, %v3841
        %v3847 = vunpack.c.l.s4 1966171168
        %v3848 = vunpack.c.0.s8 %v3847
        %v3849 = vlaneseq
        %v3850 = vshrl.u32 %v3849, 7
        %v3851 = vsub.s32 %v3848, %v3850
        %v3852 = vrot.slane %v3842, %v3851
        %v3854 = vunpack.c.l.s4 1966171168
        %v3855 = vunpack.c.0.s8 %v3854
        %v3856 = vlaneseq
        %v3857 = vshrl.u32 %v3856, 7
        %v3858 = vsub.s32 %v3855, %v3857
        %v3859 = vrot.slane %v3843, %v3858
        %v3861 = vunpack.c.l.s4 1966171168
        %v3862 = vunpack.c.0.s8 %v3861
        %v3863 = vlaneseq
        %v3864 = vshrl.u32 %v3863, 7
        %v3865 = vsub.s32 %v3862, %v3864
        %v3866 = vrot.slane %v3844, %v3865
        %v3868 = vunpack.c.l.s4 1966171168
        %v3869 = vunpack.c.0.s8 %v3868
        %v3870 = vlaneseq
        %v3871 = vshrl.u32 %v3870, 7
        %v3872 = vsub.s32 %v3869, %v3871
        %v3873 = vrot.slane %v3845, %v3872
        %v3874 = vcombine.low %v3852, %v3866
        %v3875 = vcombine.low %v3859, %v3873
        %v3876 = vcombine.low %v3267, %v3268
        %v3877 = vcombine.low %v3284, %v3291
        %v3878 = vcombine.low %v3292, %v3308
        %v3879 = vcombine.low %v3315, %v3316
        %v3881 = vunpack.c.l.s4 1966171168
        %v3882 = vunpack.c.0.s8 %v3881
        %v3883 = vlaneseq
        %v3884 = vshrl.u32 %v3883, 7
        %v3885 = vsub.s32 %v3882, %v3884
        %v3886 = vrot.slane %v3876, %v3885
        %v3888 = vunpack.c.l.s4 1966171168
        %v3889 = vunpack.c.0.s8 %v3888
        %v3890 = vlaneseq
        %v3891 = vshrl.u32 %v3890, 7
        %v3892 = vsub.s32 %v3889, %v3891
        %v3893 = vrot.slane %v3877, %v3892
        %v3895 = vunpack.c.l.s4 1966171168
        %v3896 = vunpack.c.0.s8 %v3895
        %v3897 = vlaneseq
        %v3898 = vshrl.u32 %v3897, 7
        %v3899 = vsub.s32 %v3896, %v3898
        %v3900 = vrot.slane %v3878, %v3899
        %v3902 = vunpack.c.l.s4 1966171168
        %v3903 = vunpack.c.0.s8 %v3902
        %v3904 = vlaneseq
        %v3905 = vshrl.u32 %v3904, 7
        %v3906 = vsub.s32 %v3903, %v3905
        %v3907 = vrot.slane %v3879, %v3906
        %v3908 = vcombine.low %v3886, %v3893
        %v3909 = vcombine.high %v3886, %v3893
        %v3910 = vcombine.low %v3900, %v3907
        %v3911 = vcombine.high %v3900, %v3907
        %v3913 = vunpack.c.l.s4 1966171168
        %v3914 = vunpack.c.0.s8 %v3913
        %v3915 = vlaneseq
        %v3916 = vshrl.u32 %v3915, 7
        %v3917 = vsub.s32 %v3914, %v3916
        %v3918 = vrot.slane %v3908, %v3917
        %v3920 = vunpack.c.l.s4 1966171168
        %v3921 = vunpack.c.0.s8 %v3920
        %v3922 = vlaneseq
        %v3923 = vshrl.u32 %v3922, 7
        %v3924 = vsub.s32 %v3921, %v3923
        %v3925 = vrot.slane %v3909, %v3924
        %v3927 = vunpack.c.l.s4 1966171168
        %v3928 = vunpack.c.0.s8 %v3927
        %v3929 = vlaneseq
        %v3930 = vshrl.u32 %v3929, 7
        %v3931 = vsub.s32 %v3928, %v3930
        %v3932 = vrot.slane %v3910, %v3931
        %v3934 = vunpack.c.l.s4 1966171168
        %v3935 = vunpack.c.0.s8 %v3934
        %v3936 = vlaneseq
        %v3937 = vshrl.u32 %v3936, 7
        %v3938 = vsub.s32 %v3935, %v3937
        %v3939 = vrot.slane %v3911, %v3938
        %v3940 = vcombine.low %v3918, %v3932
        %v3941 = vcombine.low %v3925, %v3939
        %v3975 = vunpack.c.l.b16 %v3317
        %v3976 = vunpack.c.l.b16 %v3318
        %v3977 = vunpack.c.l.b16 %v3319
        %v3978 = vunpack.c.l.b16 %v3320
        %v3979 = vunpack.c.l.b16 %v3321
        %v3980 = vunpack.c.l.b16 %v3322
        %v3981 = vunpack.c.l.b16 %v3323
        %v3982 = vunpack.c.l.b16 %v3324
        %v3983 = vunpack.c.l.b16 %v3325
        %v3984 = vunpack.c.l.b16 %v3326
        %v3985 = vunpack.c.l.b16 %v3327
        %v3986 = vunpack.c.l.b16 %v3328
        %v3987 = vunpack.c.l.b16 %v3329
        %v3988 = vunpack.c.l.b16 %v3330
        %v3989 = vunpack.c.l.b16 %v3331
        %v3990 = vunpack.c.l.b16 %v3332
        %v3991 = vunpack.c.l.b16 %v3333
        %v3992 = vunpack.c.l.b16 %v3334
        %v3993 = vunpack.c.l.b16 %v3335
        %v3994 = vunpack.c.l.b16 %v3336
        %v3995 = vunpack.c.l.b16 %v3337
        %v3996 = vunpack.c.l.b16 %v3338
        %v3997 = vunpack.c.l.b16 %v3339
        %v3998 = vunpack.c.l.b16 %v3340
        %v3999 = vpack.c.b16 %v3976, %v3975
        %v4000 = vpack.c.b16 %v3978, %v3977
        %v4001 = vpack.c.b16 %v3980, %v3979
        %v4002 = vpack.c.b16 %v3982, %v3981
        %v4003 = vpack.c.b16 %v3984, %v3983
        %v4004 = vpack.c.b16 %v3986, %v3985
        %v4005 = vpack.c.b16 %v3988, %v3987
        %v4006 = vpack.c.b16 %v3990, %v3989
        %v4007 = vpack.c.b16 %v3992, %v3991
        %v4008 = vpack.c.b16 %v3994, %v3993
        %v4009 = vpack.c.b16 %v3996, %v3995
        %v4010 = vpack.c.b16 %v3998, %v3997
        %v4024 = vsel %vm1694, %v3413, 0
        %v4027 = vsel %vm1694, %v3479, 0
        %v4030 = vsel %vm1694, %v3545, 0
        %v4033 = vsel %vm1694, %v3611, 0
        %v4036 = vsel %vm1694, %v3677, 0
        %v4039 = vsel %vm1694, %v3743, 0
        %v4042 = vsel %vm1694, %v3809, 0
        %v4045 = vsel %vm1694, %v3875, 0
        %v4048 = vsel %vm1694, %v3941, 0
        %4050 = vmatprep.subr.bf16.mxu0 0
        %4051 = vmatpush1.bf16.msra.mxu0 %v3999
        %4052 = vmatprep.subr.bf16.mxu0 0
        %4053 = vmatpush1.bf16.msra.mxu0 %v4000
        %4054 = vmatprep.subr.bf16.mxu0 0
        %4055 = vmatpush1.bf16.msra.mxu0 %v4001
        %4056 = vmatprep.subr.bf16.mxu0 0
        %4057 = vmatpush1.bf16.msra.mxu0 %v4002
        %4058 = vmatprep.subr.bf16.mxu0 0
        %4059 = vmatpush1.bf16.msra.mxu0 %v4003
        %4060 = vmatprep.subr.bf16.mxu0 0
        %4061 = vmatpush1.bf16.msra.mxu0 %v4004
        %4062 = vmatprep.subr.bf16.mxu0 0
        %4063 = vmatpush1.bf16.msra.mxu0 %v4005
        %4064 = vmatprep.subr.bf16.mxu0 0
        %4065 = vmatpush1.bf16.msra.mxu0 %v4006
        %4066 = vmatprep.subr.bf16.mxu0 0
        %4067 = vmatpush1.bf16.msra.mxu0 %v4007
        %4068 = vmatprep.subr.bf16.mxu0 0
        %4069 = vmatpush1.bf16.msra.mxu0 %v4008
        %4070 = vmatprep.subr.bf16.mxu0 0
        %4071 = vmatpush1.bf16.msra.mxu0 %v4009
        %4072 = vmatprep.subr.bf16.mxu0 0
        %4073 = vmatpush1.bf16.msra.mxu0 %v4010
        %4074 = vmatprep.subr.bf16.mxu0 0
        %4075 = vmatpush1.bf16.msra.mxu0 0
        %4076 = vmatprep.subr.bf16.mxu0 0
        %4077 = vmatpush1.bf16.msra.mxu0 0
        %4078 = vmatprep.subr.bf16.mxu0 0
        %4079 = vmatpush1.bf16.msra.mxu0 0
        %4080 = vmatprep.subr.bf16.mxu0 0
        %4081 = vmatpush1.bf16.msra.mxu0 0
        %4082 = vmatprep.mubr.bf16.mxu0 %v4024
        %4083 = vmatmul.mubr.bf16.gmra.mrb[0].mxu0 %v3412
        %v4084 = vpop.f32.mrb[0].mxu0
        %v4085 = vadd.f32 %v3346, %v4084
        %v4086 = vpop.f32.mrb[0].mxu0
        %v4087 = vpop.f32.mrb[0].mxu0
        %v4088 = vadd.f32 %v3346, %v4087
        %v4089 = vpop.f32.mrb[0].mxu0
        %4090 = vmatprep.mubr.bf16.mxu0 %v4027
        %4091 = vmatmul.mubr.bf16.gmra.mrb[0].mxu0 %v3478
        %v4092 = vpop.f32.mrb[0].mxu0
        %v4093 = vadd.f32 %v3346, %v4092
        %v4094 = vpop.f32.mrb[0].mxu0
        %v4095 = vpop.f32.mrb[0].mxu0
        %v4096 = vadd.f32 %v3346, %v4095
        %v4097 = vpop.f32.mrb[0].mxu0
        %4098 = vmatprep.mubr.bf16.mxu0 %v4030
        %4099 = vmatmul.mubr.bf16.gmra.mrb[0].mxu0 %v3544
        %v4100 = vpop.f32.mrb[0].mxu0
        %v4101 = vadd.f32 %v3346, %v4100
        %v4102 = vpop.f32.mrb[0].mxu0
        %v4103 = vpop.f32.mrb[0].mxu0
        %v4104 = vadd.f32 %v3346, %v4103
        %v4105 = vpop.f32.mrb[0].mxu0
        %4106 = vmatprep.mubr.bf16.mxu0 %v4033
        %4107 = vmatmul.mubr.bf16.gmra.mrb[0].mxu0 %v3610
        %v4108 = vpop.f32.mrb[0].mxu0
        %v4109 = vadd.f32 %v3346, %v4108
        %v4110 = vpop.f32.mrb[0].mxu0
        %v4111 = vpop.f32.mrb[0].mxu0
        %v4112 = vadd.f32 %v3346, %v4111
        %v4113 = vpop.f32.mrb[0].mxu0
        %4114 = vmatprep.mubr.bf16.mxu0 %v4036
        %4115 = vmatmul.mubr.bf16.gmra.mrb[0].mxu0 %v3676
        %v4116 = vpop.f32.mrb[0].mxu0
        %v4117 = vadd.f32 %v3346, %v4116
        %v4118 = vpop.f32.mrb[0].mxu0
        %v4119 = vpop.f32.mrb[0].mxu0
        %v4120 = vadd.f32 %v3346, %v4119
        %v4121 = vpop.f32.mrb[0].mxu0
        %4122 = vmatprep.mubr.bf16.mxu0 %v4039
        %4123 = vmatmul.mubr.bf16.gmra.mrb[0].mxu0 %v3742
        %v4124 = vpop.f32.mrb[0].mxu0
        %v4125 = vadd.f32 %v3346, %v4124
        %v4126 = vpop.f32.mrb[0].mxu0
        %v4127 = vpop.f32.mrb[0].mxu0
        %v4128 = vadd.f32 %v3346, %v4127
        %v4129 = vpop.f32.mrb[0].mxu0
        %4130 = vmatprep.mubr.bf16.mxu0 %v4042
        %4131 = vmatmul.mubr.bf16.gmra.mrb[0].mxu0 %v3808
        %v4132 = vpop.f32.mrb[0].mxu0
        %v4133 = vadd.f32 %v3346, %v4132
        %v4134 = vpop.f32.mrb[0].mxu0
        %v4135 = vpop.f32.mrb[0].mxu0
        %v4136 = vadd.f32 %v3346, %v4135
        %v4137 = vpop.f32.mrb[0].mxu0
        %4138 = vmatprep.mubr.bf16.mxu0 %v4045
        %4139 = vmatmul.mubr.bf16.gmra.mrb[0].mxu0 %v3874
        %v4140 = vpop.f32.mrb[0].mxu0
        %v4141 = vadd.f32 %v3346, %v4140
        %v4142 = vpop.f32.mrb[0].mxu0
        %v4143 = vpop.f32.mrb[0].mxu0
        %v4144 = vadd.f32 %v3346, %v4143
        %v4145 = vpop.f32.mrb[0].mxu0
        %4146 = vmatprep.mubr.bf16.mxu0 %v4048
        %4147 = vmatmul.mubr.bf16.gmra.mrb[0].mxu0 %v3940
        %v4148 = vpop.f32.mrb[0].mxu0
        %v4149 = vadd.f32 %v3346, %v4148
        %v4150 = vpop.f32.mrb[0].mxu0
        %v4151 = vpop.f32.mrb[0].mxu0
        %v4152 = vadd.f32 %v3346, %v4151
        %v4153 = vpop.f32.mrb[0].mxu0
        %4154 = vdwg.mxu0
        %v4155 = vmul.f32 %v4085, 0.1
        %v4156 = vmul.f32 %v4088, 0.1
        %v4157 = vmul.f32 %v4093, 0.1
        %v4158 = vmul.f32 %v4096, 0.1
        %v4159 = vmul.f32 %v4101, 0.1
        %v4160 = vmul.f32 %v4104, 0.1
        %v4161 = vmul.f32 %v4109, 0.1
        %v4162 = vmul.f32 %v4112, 0.1
        %v4163 = vmul.f32 %v4117, 0.1
        %v4164 = vmul.f32 %v4120, 0.1
        %v4165 = vmul.f32 %v4125, 0.1
        %v4166 = vmul.f32 %v4128, 0.1
        %v4167 = vmul.f32 %v4133, 0.1
        %v4168 = vmul.f32 %v4136, 0.1
        %v4169 = vmul.f32 %v4141, 0.1
        %v4170 = vmul.f32 %v4144, 0.1
        %v4171 = vmul.f32 %v4149, 0.1
        %v4172 = vmul.f32 %v4152, 0.1
        %v4173 = vmax.f32 %v4085, %v4155
        %v4174 = vmax.f32 %v4088, %v4156
        %v4175 = vmax.f32 %v4093, %v4157
        %v4176 = vmax.f32 %v4096, %v4158
        %v4177 = vmax.f32 %v4101, %v4159
        %v4178 = vmax.f32 %v4104, %v4160
        %v4179 = vmax.f32 %v4109, %v4161
        %v4180 = vmax.f32 %v4112, %v4162
        %v4181 = vmax.f32 %v4117, %v4163
        %v4182 = vmax.f32 %v4120, %v4164
        %v4183 = vmax.f32 %v4125, %v4165
        %v4184 = vmax.f32 %v4128, %v4166
        %v4185 = vmax.f32 %v4133, %v4167
        %v4186 = vmax.f32 %v4136, %v4168
        %v4187 = vmax.f32 %v4141, %v4169
        %v4188 = vmax.f32 %v4144, %v4170
        %v4189 = vmax.f32 %v4149, %v4171
        %v4190 = vmax.f32 %v4152, %v4172
        %v4209 = vcombine.high %v4173, %v4173
        %v4211 = vunpack.c.l.s4 1983009808
        %v4212 = vunpack.c.0.s8 %v4211
        %v4213 = vlaneseq
        %v4214 = vshrl.u32 %v4213, 7
        %v4215 = vsub.s32 %v4212, %v4214
        %v4216 = vrot.slane %v4173, %v4215
        %v4218 = vunpack.c.l.s4 1983009808
        %v4219 = vunpack.c.0.s8 %v4218
        %v4220 = vlaneseq
        %v4221 = vshrl.u32 %v4220, 7
        %v4222 = vsub.s32 %v4219, %v4221
        %v4223 = vrot.slane %v4209, %v4222
        %v4224 = vcombine.high %v4216, %v4216
        %v4225 = vcombine.high %v4223, %v4223
        %v4226 = vcombine.high %v4174, %v4174
        %v4228 = vunpack.c.l.s4 1983009808
        %v4229 = vunpack.c.0.s8 %v4228
        %v4230 = vlaneseq
        %v4231 = vshrl.u32 %v4230, 7
        %v4232 = vsub.s32 %v4229, %v4231
        %v4233 = vrot.slane %v4174, %v4232
        %v4235 = vunpack.c.l.s4 1983009808
        %v4236 = vunpack.c.0.s8 %v4235
        %v4237 = vlaneseq
        %v4238 = vshrl.u32 %v4237, 7
        %v4239 = vsub.s32 %v4236, %v4238
        %v4240 = vrot.slane %v4226, %v4239
        %v4241 = vcombine.high %v4233, %v4233
        %v4242 = vcombine.high %v4240, %v4240
        %v4243 = vcombine.high %v4175, %v4175
        %v4245 = vunpack.c.l.s4 1983009808
        %v4246 = vunpack.c.0.s8 %v4245
        %v4247 = vlaneseq
        %v4248 = vshrl.u32 %v4247, 7
        %v4249 = vsub.s32 %v4246, %v4248
        %v4250 = vrot.slane %v4175, %v4249
        %v4252 = vunpack.c.l.s4 1983009808
        %v4253 = vunpack.c.0.s8 %v4252
        %v4254 = vlaneseq
        %v4255 = vshrl.u32 %v4254, 7
        %v4256 = vsub.s32 %v4253, %v4255
        %v4257 = vrot.slane %v4243, %v4256
        %v4258 = vcombine.high %v4250, %v4250
        %v4259 = vcombine.high %v4257, %v4257
        %v4260 = vcombine.high %v4176, %v4176
        %v4262 = vunpack.c.l.s4 1983009808
        %v4263 = vunpack.c.0.s8 %v4262
        %v4264 = vlaneseq
        %v4265 = vshrl.u32 %v4264, 7
        %v4266 = vsub.s32 %v4263, %v4265
        %v4267 = vrot.slane %v4176, %v4266
        %v4269 = vunpack.c.l.s4 1983009808
        %v4270 = vunpack.c.0.s8 %v4269
        %v4271 = vlaneseq
        %v4272 = vshrl.u32 %v4271, 7
        %v4273 = vsub.s32 %v4270, %v4272
        %v4274 = vrot.slane %v4260, %v4273
        %v4275 = vcombine.high %v4267, %v4267
        %v4276 = vcombine.high %v4274, %v4274
        %v4277 = vcombine.high %v4177, %v4177
        %v4279 = vunpack.c.l.s4 1983009808
        %v4280 = vunpack.c.0.s8 %v4279
        %v4281 = vlaneseq
        %v4282 = vshrl.u32 %v4281, 7
        %v4283 = vsub.s32 %v4280, %v4282
        %v4284 = vrot.slane %v4177, %v4283
        %v4286 = vunpack.c.l.s4 1983009808
        %v4287 = vunpack.c.0.s8 %v4286
        %v4288 = vlaneseq
        %v4289 = vshrl.u32 %v4288, 7
        %v4290 = vsub.s32 %v4287, %v4289
        %v4291 = vrot.slane %v4277, %v4290
        %v4292 = vcombine.high %v4284, %v4284
        %v4293 = vcombine.high %v4291, %v4291
        %v4294 = vcombine.high %v4178, %v4178
        %v4296 = vunpack.c.l.s4 1983009808
        %v4297 = vunpack.c.0.s8 %v4296
        %v4298 = vlaneseq
        %v4299 = vshrl.u32 %v4298, 7
        %v4300 = vsub.s32 %v4297, %v4299
        %v4301 = vrot.slane %v4178, %v4300
        %v4303 = vunpack.c.l.s4 1983009808
        %v4304 = vunpack.c.0.s8 %v4303
        %v4305 = vlaneseq
        %v4306 = vshrl.u32 %v4305, 7
        %v4307 = vsub.s32 %v4304, %v4306
        %v4308 = vrot.slane %v4294, %v4307
        %v4309 = vcombine.high %v4301, %v4301
        %v4310 = vcombine.high %v4308, %v4308
        %v4311 = vcombine.high %v4179, %v4179
        %v4313 = vunpack.c.l.s4 1983009808
        %v4314 = vunpack.c.0.s8 %v4313
        %v4315 = vlaneseq
        %v4316 = vshrl.u32 %v4315, 7
        %v4317 = vsub.s32 %v4314, %v4316
        %v4318 = vrot.slane %v4179, %v4317
        %v4320 = vunpack.c.l.s4 1983009808
        %v4321 = vunpack.c.0.s8 %v4320
        %v4322 = vlaneseq
        %v4323 = vshrl.u32 %v4322, 7
        %v4324 = vsub.s32 %v4321, %v4323
        %v4325 = vrot.slane %v4311, %v4324
        %v4326 = vcombine.high %v4318, %v4318
        %v4327 = vcombine.high %v4325, %v4325
        %v4328 = vcombine.high %v4180, %v4180
        %v4330 = vunpack.c.l.s4 1983009808
        %v4331 = vunpack.c.0.s8 %v4330
        %v4332 = vlaneseq
        %v4333 = vshrl.u32 %v4332, 7
        %v4334 = vsub.s32 %v4331, %v4333
        %v4335 = vrot.slane %v4180, %v4334
        %v4337 = vunpack.c.l.s4 1983009808
        %v4338 = vunpack.c.0.s8 %v4337
        %v4339 = vlaneseq
        %v4340 = vshrl.u32 %v4339, 7
        %v4341 = vsub.s32 %v4338, %v4340
        %v4342 = vrot.slane %v4328, %v4341
        %v4343 = vcombine.high %v4335, %v4335
        %v4344 = vcombine.high %v4342, %v4342
        %v4345 = vcombine.high %v4181, %v4181
        %v4347 = vunpack.c.l.s4 1983009808
        %v4348 = vunpack.c.0.s8 %v4347
        %v4349 = vlaneseq
        %v4350 = vshrl.u32 %v4349, 7
        %v4351 = vsub.s32 %v4348, %v4350
        %v4352 = vrot.slane %v4181, %v4351
        %v4354 = vunpack.c.l.s4 1983009808
        %v4355 = vunpack.c.0.s8 %v4354
        %v4356 = vlaneseq
        %v4357 = vshrl.u32 %v4356, 7
        %v4358 = vsub.s32 %v4355, %v4357
        %v4359 = vrot.slane %v4345, %v4358
        %v4360 = vcombine.high %v4352, %v4352
        %v4361 = vcombine.high %v4359, %v4359
        %v4362 = vcombine.high %v4182, %v4182
        %v4364 = vunpack.c.l.s4 1983009808
        %v4365 = vunpack.c.0.s8 %v4364
        %v4366 = vlaneseq
        %v4367 = vshrl.u32 %v4366, 7
        %v4368 = vsub.s32 %v4365, %v4367
        %v4369 = vrot.slane %v4182, %v4368
        %v4371 = vunpack.c.l.s4 1983009808
        %v4372 = vunpack.c.0.s8 %v4371
        %v4373 = vlaneseq
        %v4374 = vshrl.u32 %v4373, 7
        %v4375 = vsub.s32 %v4372, %v4374
        %v4376 = vrot.slane %v4362, %v4375
        %v4377 = vcombine.high %v4369, %v4369
        %v4378 = vcombine.high %v4376, %v4376
        %v4379 = vcombine.high %v4183, %v4183
        %v4381 = vunpack.c.l.s4 1983009808
        %v4382 = vunpack.c.0.s8 %v4381
        %v4383 = vlaneseq
        %v4384 = vshrl.u32 %v4383, 7
        %v4385 = vsub.s32 %v4382, %v4384
        %v4386 = vrot.slane %v4183, %v4385
        %v4388 = vunpack.c.l.s4 1983009808
        %v4389 = vunpack.c.0.s8 %v4388
        %v4390 = vlaneseq
        %v4391 = vshrl.u32 %v4390, 7
        %v4392 = vsub.s32 %v4389, %v4391
        %v4393 = vrot.slane %v4379, %v4392
        %v4394 = vcombine.high %v4386, %v4386
        %v4395 = vcombine.high %v4393, %v4393
        %v4396 = vcombine.high %v4184, %v4184
        %v4398 = vunpack.c.l.s4 1983009808
        %v4399 = vunpack.c.0.s8 %v4398
        %v4400 = vlaneseq
        %v4401 = vshrl.u32 %v4400, 7
        %v4402 = vsub.s32 %v4399, %v4401
        %v4403 = vrot.slane %v4184, %v4402
        %v4405 = vunpack.c.l.s4 1983009808
        %v4406 = vunpack.c.0.s8 %v4405
        %v4407 = vlaneseq
        %v4408 = vshrl.u32 %v4407, 7
        %v4409 = vsub.s32 %v4406, %v4408
        %v4410 = vrot.slane %v4396, %v4409
        %v4411 = vcombine.high %v4403, %v4403
        %v4412 = vcombine.high %v4410, %v4410
        %v4413 = vcombine.high %v4185, %v4185
        %v4415 = vunpack.c.l.s4 1983009808
        %v4416 = vunpack.c.0.s8 %v4415
        %v4417 = vlaneseq
        %v4418 = vshrl.u32 %v4417, 7
        %v4419 = vsub.s32 %v4416, %v4418
        %v4420 = vrot.slane %v4185, %v4419
        %v4422 = vunpack.c.l.s4 1983009808
        %v4423 = vunpack.c.0.s8 %v4422
        %v4424 = vlaneseq
        %v4425 = vshrl.u32 %v4424, 7
        %v4426 = vsub.s32 %v4423, %v4425
        %v4427 = vrot.slane %v4413, %v4426
        %v4428 = vcombine.high %v4420, %v4420
        %v4429 = vcombine.high %v4427, %v4427
        %v4430 = vcombine.high %v4186, %v4186
        %v4432 = vunpack.c.l.s4 1983009808
        %v4433 = vunpack.c.0.s8 %v4432
        %v4434 = vlaneseq
        %v4435 = vshrl.u32 %v4434, 7
        %v4436 = vsub.s32 %v4433, %v4435
        %v4437 = vrot.slane %v4186, %v4436
        %v4439 = vunpack.c.l.s4 1983009808
        %v4440 = vunpack.c.0.s8 %v4439
        %v4441 = vlaneseq
        %v4442 = vshrl.u32 %v4441, 7
        %v4443 = vsub.s32 %v4440, %v4442
        %v4444 = vrot.slane %v4430, %v4443
        %v4445 = vcombine.high %v4437, %v4437
        %v4446 = vcombine.high %v4444, %v4444
        %v4447 = vcombine.high %v4187, %v4187
        %v4449 = vunpack.c.l.s4 1983009808
        %v4450 = vunpack.c.0.s8 %v4449
        %v4451 = vlaneseq
        %v4452 = vshrl.u32 %v4451, 7
        %v4453 = vsub.s32 %v4450, %v4452
        %v4454 = vrot.slane %v4187, %v4453
        %v4456 = vunpack.c.l.s4 1983009808
        %v4457 = vunpack.c.0.s8 %v4456
        %v4458 = vlaneseq
        %v4459 = vshrl.u32 %v4458, 7
        %v4460 = vsub.s32 %v4457, %v4459
        %v4461 = vrot.slane %v4447, %v4460
        %v4462 = vcombine.high %v4454, %v4454
        %v4463 = vcombine.high %v4461, %v4461
        %v4464 = vcombine.high %v4188, %v4188
        %v4466 = vunpack.c.l.s4 1983009808
        %v4467 = vunpack.c.0.s8 %v4466
        %v4468 = vlaneseq
        %v4469 = vshrl.u32 %v4468, 7
        %v4470 = vsub.s32 %v4467, %v4469
        %v4471 = vrot.slane %v4188, %v4470
        %v4473 = vunpack.c.l.s4 1983009808
        %v4474 = vunpack.c.0.s8 %v4473
        %v4475 = vlaneseq
        %v4476 = vshrl.u32 %v4475, 7
        %v4477 = vsub.s32 %v4474, %v4476
        %v4478 = vrot.slane %v4464, %v4477
        %v4479 = vcombine.high %v4471, %v4471
        %v4480 = vcombine.high %v4478, %v4478
        %v4481 = vcombine.high %v4189, %v4189
        %v4483 = vunpack.c.l.s4 1983009808
        %v4484 = vunpack.c.0.s8 %v4483
        %v4485 = vlaneseq
        %v4486 = vshrl.u32 %v4485, 7
        %v4487 = vsub.s32 %v4484, %v4486
        %v4488 = vrot.slane %v4189, %v4487
        %v4490 = vunpack.c.l.s4 1983009808
        %v4491 = vunpack.c.0.s8 %v4490
        %v4492 = vlaneseq
        %v4493 = vshrl.u32 %v4492, 7
        %v4494 = vsub.s32 %v4491, %v4493
        %v4495 = vrot.slane %v4481, %v4494
        %v4496 = vcombine.high %v4488, %v4488
        %v4497 = vcombine.high %v4495, %v4495
        %v4498 = vcombine.high %v4190, %v4190
        %v4500 = vunpack.c.l.s4 1983009808
        %v4501 = vunpack.c.0.s8 %v4500
        %v4502 = vlaneseq
        %v4503 = vshrl.u32 %v4502, 7
        %v4504 = vsub.s32 %v4501, %v4503
        %v4505 = vrot.slane %v4190, %v4504
        %v4507 = vunpack.c.l.s4 1983009808
        %v4508 = vunpack.c.0.s8 %v4507
        %v4509 = vlaneseq
        %v4510 = vshrl.u32 %v4509, 7
        %v4511 = vsub.s32 %v4508, %v4510
        %v4512 = vrot.slane %v4498, %v4511
        %v4513 = vcombine.high %v4505, %v4505
        %v4514 = vcombine.high %v4512, %v4512
        %vm4587 = vcmask 517120
        %v4588 = vsel %vm4587, %v4216, -inf
        %v4589 = vsel %vm4587, %v4225, -inf
        %v4590 = vmax.f32 %v4588, %v4589
        %v4591 = vsel %vm4587, %v4224, -inf
        %v4592 = vsel %vm4587, %v4233, -inf
        %v4593 = vmax.f32 %v4591, %v4592
        %v4594 = vsel %vm4587, %v4223, -inf
        %v4595 = vsel %vm4587, %v4241, -inf
        %v4596 = vmax.f32 %v4594, %v4595
        %v4597 = vsel %vm4587, %v4240, -inf
        %v4598 = vsel %vm4587, %v4258, -inf
        %v4599 = vmax.f32 %v4597, %v4598
        %v4600 = vsel %vm4587, %v4242, -inf
        %v4601 = vsel %vm4587, %v4257, -inf
        %v4602 = vmax.f32 %v4600, %v4601
        %v4603 = vsel %vm4587, %v4250, -inf
        %v4604 = vsel %vm4587, %v4259, -inf
        %v4605 = vmax.f32 %v4603, %v4604
        %v4606 = vsel %vm4587, %v4267, -inf
        %v4607 = vsel %vm4587, %v4276, -inf
        %v4608 = vmax.f32 %v4606, %v4607
        %v4609 = vsel %vm4587, %v4275, -inf
        %v4610 = vsel %vm4587, %v4284, -inf
        %v4611 = vmax.f32 %v4609, %v4610
        %v4612 = vsel %vm4587, %v4274, -inf
        %v4613 = vsel %vm4587, %v4292, -inf
        %v4614 = vmax.f32 %v4612, %v4613
        %v4615 = vsel %vm4587, %v4291, -inf
        %v4616 = vsel %vm4587, %v4309, -inf
        %v4617 = vmax.f32 %v4615, %v4616
        %v4618 = vsel %vm4587, %v4293, -inf
        %v4619 = vsel %vm4587, %v4308, -inf
        %v4620 = vmax.f32 %v4618, %v4619
        %v4621 = vsel %vm4587, %v4301, -inf
        %v4622 = vsel %vm4587, %v4310, -inf
        %v4623 = vmax.f32 %v4621, %v4622
        %v4624 = vsel %vm4587, %v4318, -inf
        %v4625 = vsel %vm4587, %v4327, -inf
        %v4626 = vmax.f32 %v4624, %v4625
        %v4627 = vsel %vm4587, %v4326, -inf
        %v4628 = vsel %vm4587, %v4335, -inf
        %v4629 = vmax.f32 %v4627, %v4628
        %v4630 = vsel %vm4587, %v4325, -inf
        %v4631 = vsel %vm4587, %v4343, -inf
        %v4632 = vmax.f32 %v4630, %v4631
        %v4633 = vsel %vm4587, %v4342, -inf
        %v4634 = vsel %vm4587, %v4360, -inf
        %v4635 = vmax.f32 %v4633, %v4634
        %v4636 = vsel %vm4587, %v4344, -inf
        %v4637 = vsel %vm4587, %v4359, -inf
        %v4638 = vmax.f32 %v4636, %v4637
        %v4639 = vsel %vm4587, %v4352, -inf
        %v4640 = vsel %vm4587, %v4361, -inf
        %v4641 = vmax.f32 %v4639, %v4640
        %v4642 = vsel %vm4587, %v4369, -inf
        %v4643 = vsel %vm4587, %v4378, -inf
        %v4644 = vmax.f32 %v4642, %v4643
        %v4645 = vsel %vm4587, %v4377, -inf
        %v4646 = vsel %vm4587, %v4386, -inf
        %v4647 = vmax.f32 %v4645, %v4646
        %v4648 = vsel %vm4587, %v4376, -inf
        %v4649 = vsel %vm4587, %v4394, -inf
        %v4650 = vmax.f32 %v4648, %v4649
        %v4651 = vsel %vm4587, %v4393, -inf
        %v4652 = vsel %vm4587, %v4411, -inf
        %v4653 = vmax.f32 %v4651, %v4652
        %v4654 = vsel %vm4587, %v4395, -inf
        %v4655 = vsel %vm4587, %v4410, -inf
        %v4656 = vmax.f32 %v4654, %v4655
        %v4657 = vsel %vm4587, %v4403, -inf
        %v4658 = vsel %vm4587, %v4412, -inf
        %v4659 = vmax.f32 %v4657, %v4658
        %v4660 = vsel %vm4587, %v4420, -inf
        %v4661 = vsel %vm4587, %v4429, -inf
        %v4662 = vmax.f32 %v4660, %v4661
        %v4663 = vsel %vm4587, %v4428, -inf
        %v4664 = vsel %vm4587, %v4437, -inf
        %v4665 = vmax.f32 %v4663, %v4664
        %v4666 = vsel %vm4587, %v4427, -inf
        %v4667 = vsel %vm4587, %v4445, -inf
        %v4668 = vmax.f32 %v4666, %v4667
        %v4669 = vsel %vm4587, %v4444, -inf
        %v4670 = vsel %vm4587, %v4462, -inf
        %v4671 = vmax.f32 %v4669, %v4670
        %v4672 = vsel %vm4587, %v4446, -inf
        %v4673 = vsel %vm4587, %v4461, -inf
        %v4674 = vmax.f32 %v4672, %v4673
        %v4675 = vsel %vm4587, %v4454, -inf
        %v4676 = vsel %vm4587, %v4463, -inf
        %v4677 = vmax.f32 %v4675, %v4676
        %v4678 = vsel %vm4587, %v4471, -inf
        %v4679 = vsel %vm4587, %v4480, -inf
        %v4680 = vmax.f32 %v4678, %v4679
        %v4681 = vsel %vm4587, %v4479, -inf
        %v4682 = vsel %vm4587, %v4488, -inf
        %v4683 = vmax.f32 %v4681, %v4682
        %v4684 = vsel %vm4587, %v4478, -inf
        %v4685 = vsel %vm4587, %v4496, -inf
        %v4686 = vmax.f32 %v4684, %v4685
        %v4687 = vsel %vm4587, %v4495, -inf
        %v4688 = vsel %vm4587, %v4513, -inf
        %v4689 = vmax.f32 %v4687, %v4688
        %v4690 = vsel %vm4587, %v4497, -inf
        %v4691 = vsel %vm4587, %v4512, -inf
        %v4692 = vmax.f32 %v4690, %v4691
        %v4693 = vsel %vm4587, %v4505, -inf
        %v4694 = vsel %vm4587, %v4514, -inf
        %v4695 = vmax.f32 %v4693, %v4694
        %4732 = vrot.lane.b32.xlu0 %v4590, 96
        %v4733 = vpop.permute.xlu0 %4732
        %4734 = vrot.lane.b32.xlu0 %v4593, 96
        %v4735 = vpop.permute.xlu0 %4734
        %4736 = vrot.lane.b32.xlu0 %v4596, 96
        %v4737 = vpop.permute.xlu0 %4736
        %4738 = vrot.lane.b32.xlu0 %v4599, 96
        %v4739 = vpop.permute.xlu0 %4738
        %4740 = vrot.lane.b32.xlu0 %v4602, 96
        %v4741 = vpop.permute.xlu0 %4740
        %4742 = vrot.lane.b32.xlu0 %v4605, 96
        %v4743 = vpop.permute.xlu0 %4742
        %4744 = vrot.lane.b32.xlu0 %v4608, 96
        %v4745 = vpop.permute.xlu0 %4744
        %4746 = vrot.lane.b32.xlu0 %v4611, 96
        %v4747 = vpop.permute.xlu0 %4746
        %4748 = vrot.lane.b32.xlu0 %v4614, 96
        %v4749 = vpop.permute.xlu0 %4748
        %4750 = vrot.lane.b32.xlu0 %v4617, 96
        %v4751 = vpop.permute.xlu0 %4750
        %4752 = vrot.lane.b32.xlu0 %v4620, 96
        %v4753 = vpop.permute.xlu0 %4752
        %4754 = vrot.lane.b32.xlu0 %v4623, 96
        %v4755 = vpop.permute.xlu0 %4754
        %4756 = vrot.lane.b32.xlu0 %v4626, 96
        %v4757 = vpop.permute.xlu0 %4756
        %4758 = vrot.lane.b32.xlu0 %v4629, 96
        %v4759 = vpop.permute.xlu0 %4758
        %4760 = vrot.lane.b32.xlu0 %v4632, 96
        %v4761 = vpop.permute.xlu0 %4760
        %4762 = vrot.lane.b32.xlu0 %v4635, 96
        %v4763 = vpop.permute.xlu0 %4762
        %4764 = vrot.lane.b32.xlu0 %v4638, 96
        %v4765 = vpop.permute.xlu0 %4764
        %4766 = vrot.lane.b32.xlu0 %v4641, 96
        %v4767 = vpop.permute.xlu0 %4766
        %4768 = vrot.lane.b32.xlu0 %v4644, 96
        %v4769 = vpop.permute.xlu0 %4768
        %4770 = vrot.lane.b32.xlu0 %v4647, 96
        %v4771 = vpop.permute.xlu0 %4770
        %4772 = vrot.lane.b32.xlu0 %v4650, 96
        %v4773 = vpop.permute.xlu0 %4772
        %4774 = vrot.lane.b32.xlu0 %v4653, 96
        %v4775 = vpop.permute.xlu0 %4774
        %4776 = vrot.lane.b32.xlu0 %v4656, 96
        %v4777 = vpop.permute.xlu0 %4776
        %4778 = vrot.lane.b32.xlu0 %v4659, 96
        %v4779 = vpop.permute.xlu0 %4778
        %4780 = vrot.lane.b32.xlu0 %v4662, 96
        %v4781 = vpop.permute.xlu0 %4780
        %4782 = vrot.lane.b32.xlu0 %v4665, 96
        %v4783 = vpop.permute.xlu0 %4782
        %4784 = vrot.lane.b32.xlu0 %v4668, 96
        %v4785 = vpop.permute.xlu0 %4784
        %4786 = vrot.lane.b32.xlu0 %v4671, 96
        %v4787 = vpop.permute.xlu0 %4786
        %4788 = vrot.lane.b32.xlu0 %v4674, 96
        %v4789 = vpop.permute.xlu0 %4788
        %4790 = vrot.lane.b32.xlu0 %v4677, 96
        %v4791 = vpop.permute.xlu0 %4790
        %4792 = vrot.lane.b32.xlu0 %v4680, 96
        %v4793 = vpop.permute.xlu0 %4792
        %4794 = vrot.lane.b32.xlu0 %v4683, 96
        %v4795 = vpop.permute.xlu0 %4794
        %4796 = vrot.lane.b32.xlu0 %v4686, 96
        %v4797 = vpop.permute.xlu0 %4796
        %4798 = vrot.lane.b32.xlu0 %v4689, 96
        %v4799 = vpop.permute.xlu0 %4798
        %4800 = vrot.lane.b32.xlu0 %v4692, 96
        %v4801 = vpop.permute.xlu0 %4800
        %4802 = vrot.lane.b32.xlu0 %v4695, 96
        %v4803 = vpop.permute.xlu0 %4802
        %v4840 = vmax.f32 %v4590, %v4733
        %v4841 = vmax.f32 %v4593, %v4735
        %v4842 = vmax.f32 %v4596, %v4737
        %v4843 = vmax.f32 %v4599, %v4739
        %v4844 = vmax.f32 %v4602, %v4741
        %v4845 = vmax.f32 %v4605, %v4743
        %v4846 = vmax.f32 %v4608, %v4745
        %v4847 = vmax.f32 %v4611, %v4747
        %v4848 = vmax.f32 %v4614, %v4749
        %v4849 = vmax.f32 %v4617, %v4751
        %v4850 = vmax.f32 %v4620, %v4753
        %v4851 = vmax.f32 %v4623, %v4755
        %v4852 = vmax.f32 %v4626, %v4757
        %v4853 = vmax.f32 %v4629, %v4759
        %v4854 = vmax.f32 %v4632, %v4761
        %v4855 = vmax.f32 %v4635, %v4763
        %v4856 = vmax.f32 %v4638, %v4765
        %v4857 = vmax.f32 %v4641, %v4767
        %v4858 = vmax.f32 %v4644, %v4769
        %v4859 = vmax.f32 %v4647, %v4771
        %v4860 = vmax.f32 %v4650, %v4773
        %v4861 = vmax.f32 %v4653, %v4775
        %v4862 = vmax.f32 %v4656, %v4777
        %v4863 = vmax.f32 %v4659, %v4779
        %v4864 = vmax.f32 %v4662, %v4781
        %v4865 = vmax.f32 %v4665, %v4783
        %v4866 = vmax.f32 %v4668, %v4785
        %v4867 = vmax.f32 %v4671, %v4787
        %v4868 = vmax.f32 %v4674, %v4789
        %v4869 = vmax.f32 %v4677, %v4791
        %v4870 = vmax.f32 %v4680, %v4793
        %v4871 = vmax.f32 %v4683, %v4795
        %v4872 = vmax.f32 %v4686, %v4797
        %v4873 = vmax.f32 %v4689, %v4799
        %v4874 = vmax.f32 %v4692, %v4801
        %v4875 = vmax.f32 %v4695, %v4803
        %vm4878 = vcmask 1044484
        %v4879 = vsel %vm4878, %v4840, %v4840
        %vm4880 = vcmask 1046534
        %v4881 = vsel %vm4880, %v4840, %v4879
        %v4882 = vrot.slane %v4858, 7
        %vm4883 = vcmask 1041409
        %v4884 = vsel %vm4883, %v4882, %v4881
        %vm4885 = vcmask 1043459
        %v4886 = vsel %vm4885, %v4882, %v4884
        %vm4887 = vcmask 1045509
        %v4888 = vsel %vm4887, %v4882, %v4886
        %vm4889 = vcmask 1047559
        %v4890 = vsel %vm4889, %v4882, %v4888
        %vm4892 = vcmask 254976
        %4893 = vst.msk [vmem:[#allocation2] sm:$0x3] %vm4892, %v4890
        %v4894 = vrot.slane %v4840, 1
        %v4895 = vsel %vm4878, %v4894, %v4894
        %v4896 = vsel %vm4880, %v4894, %v4895
        %v4897 = vsel %vm4883, %v4858, %v4896
        %v4898 = vsel %vm4885, %v4858, %v4897
        %v4899 = vsel %vm4887, %v4858, %v4898
        %v4900 = vsel %vm4889, %v4858, %v4899
        %4901 = vrot.lane.b32.xlu0 %v4900, 32
        %v4902 = vpop.permute.xlu0 %4901
        %vm4904 = vcmask 517376
        %4905 = vst.msk [vmem:[#allocation2] sm:$0x3] %vm4904, %v4902
        %v4908 = vsel %vm4878, %v4841, %v4841
        %v4909 = vsel %vm4880, %v4841, %v4908
        %v4910 = vrot.slane %v4859, 7
        %v4911 = vsel %vm4883, %v4910, %v4909
        %v4912 = vsel %vm4885, %v4910, %v4911
        %v4913 = vsel %vm4887, %v4910, %v4912
        %v4914 = vsel %vm4889, %v4910, %v4913
        %4915 = vrot.lane.b32.xlu0 %v4914, 64
        %v4916 = vpop.permute.xlu0 %4915
        %vm4918 = vcmask 779776
        %4919 = vst.msk [vmem:[#allocation2] sm:$0x3] %vm4918, %v4916
        %v4920 = vrot.slane %v4841, 1
        %v4921 = vsel %vm4878, %v4920, %v4920
        %v4922 = vsel %vm4880, %v4920, %v4921
        %v4923 = vsel %vm4883, %v4859, %v4922
        %v4924 = vsel %vm4885, %v4859, %v4923
        %v4925 = vsel %vm4887, %v4859, %v4924
        %v4926 = vsel %vm4889, %v4859, %v4925
        %4927 = vrot.lane.b32.xlu0 %v4926, 96
        %v4928 = vpop.permute.xlu0 %4927
        %vm4930 = vcmask 1042176
        %4931 = vst.msk [vmem:[#allocation2] sm:$0x3] %vm4930, %v4928
        %v4934 = vsel %vm4878, %v4842, %v4842
        %v4935 = vsel %vm4880, %v4842, %v4934
        %v4936 = vrot.slane %v4860, 7
        %v4937 = vsel %vm4883, %v4936, %v4935
        %v4938 = vsel %vm4885, %v4936, %v4937
        %v4939 = vsel %vm4887, %v4936, %v4938
        %v4940 = vsel %vm4889, %v4936, %v4939
        %4942 = vst.msk [vmem:[#allocation2 + $0x2] sm:$0x3] %vm4892, %v4940
        %v4943 = vrot.slane %v4842, 1
        %v4944 = vsel %vm4878, %v4943, %v4943
        %v4945 = vsel %vm4880, %v4943, %v4944
        %v4946 = vsel %vm4883, %v4860, %v4945
        %v4947 = vsel %vm4885, %v4860, %v4946
        %v4948 = vsel %vm4887, %v4860, %v4947
        %v4949 = vsel %vm4889, %v4860, %v4948
        %4950 = vrot.lane.b32.xlu0 %v4949, 32
        %v4951 = vpop.permute.xlu0 %4950
        %4953 = vst.msk [vmem:[#allocation2 + $0x2] sm:$0x3] %vm4904, %v4951
        %v4956 = vsel %vm4878, %v4843, %v4843
        %v4957 = vsel %vm4880, %v4843, %v4956
        %v4958 = vrot.slane %v4861, 7
        %v4959 = vsel %vm4883, %v4958, %v4957
        %v4960 = vsel %vm4885, %v4958, %v4959
        %v4961 = vsel %vm4887, %v4958, %v4960
        %v4962 = vsel %vm4889, %v4958, %v4961
        %4963 = vrot.lane.b32.xlu0 %v4962, 64
        %v4964 = vpop.permute.xlu0 %4963
        %4966 = vst.msk [vmem:[#allocation2 + $0x2] sm:$0x3] %vm4918, %v4964
        %v4967 = vrot.slane %v4843, 1
        %v4968 = vsel %vm4878, %v4967, %v4967
        %v4969 = vsel %vm4880, %v4967, %v4968
        %v4970 = vsel %vm4883, %v4861, %v4969
        %v4971 = vsel %vm4885, %v4861, %v4970
        %v4972 = vsel %vm4887, %v4861, %v4971
        %v4973 = vsel %vm4889, %v4861, %v4972
        %4974 = vrot.lane.b32.xlu0 %v4973, 96
        %v4975 = vpop.permute.xlu0 %4974
        %4977 = vst.msk [vmem:[#allocation2 + $0x2] sm:$0x3] %vm4930, %v4975
        %v4980 = vsel %vm4878, %v4844, %v4844
        %v4981 = vsel %vm4880, %v4844, %v4980
        %v4982 = vrot.slane %v4862, 7
        %v4983 = vsel %vm4883, %v4982, %v4981
        %v4984 = vsel %vm4885, %v4982, %v4983
        %v4985 = vsel %vm4887, %v4982, %v4984
        %v4986 = vsel %vm4889, %v4982, %v4985
        %4988 = vst.msk [vmem:[#allocation2 + $0x4] sm:$0x3] %vm4892, %v4986
        %v4989 = vrot.slane %v4844, 1
        %v4990 = vsel %vm4878, %v4989, %v4989
        %v4991 = vsel %vm4880, %v4989, %v4990
        %v4992 = vsel %vm4883, %v4862, %v4991
        %v4993 = vsel %vm4885, %v4862, %v4992
        %v4994 = vsel %vm4887, %v4862, %v4993
        %v4995 = vsel %vm4889, %v4862, %v4994
        %4996 = vrot.lane.b32.xlu0 %v4995, 32
        %v4997 = vpop.permute.xlu0 %4996
        %4999 = vst.msk [vmem:[#allocation2 + $0x4] sm:$0x3] %vm4904, %v4997
        %v5002 = vsel %vm4878, %v4845, %v4845
        %v5003 = vsel %vm4880, %v4845, %v5002
        %v5004 = vrot.slane %v4863, 7
        %v5005 = vsel %vm4883, %v5004, %v5003
        %v5006 = vsel %vm4885, %v5004, %v5005
        %v5007 = vsel %vm4887, %v5004, %v5006
        %v5008 = vsel %vm4889, %v5004, %v5007
        %5009 = vrot.lane.b32.xlu0 %v5008, 64
        %v5010 = vpop.permute.xlu0 %5009
        %5012 = vst.msk [vmem:[#allocation2 + $0x4] sm:$0x3] %vm4918, %v5010
        %v5013 = vrot.slane %v4845, 1
        %v5014 = vsel %vm4878, %v5013, %v5013
        %v5015 = vsel %vm4880, %v5013, %v5014
        %v5016 = vsel %vm4883, %v4863, %v5015
        %v5017 = vsel %vm4885, %v4863, %v5016
        %v5018 = vsel %vm4887, %v4863, %v5017
        %v5019 = vsel %vm4889, %v4863, %v5018
        %5020 = vrot.lane.b32.xlu0 %v5019, 96
        %v5021 = vpop.permute.xlu0 %5020
        %5023 = vst.msk [vmem:[#allocation2 + $0x4] sm:$0x3] %vm4930, %v5021
        %v5026 = vsel %vm4878, %v4846, %v4846
        %v5027 = vsel %vm4880, %v4846, %v5026
        %v5028 = vrot.slane %v4864, 7
        %v5029 = vsel %vm4883, %v5028, %v5027
        %v5030 = vsel %vm4885, %v5028, %v5029
        %v5031 = vsel %vm4887, %v5028, %v5030
        %v5032 = vsel %vm4889, %v5028, %v5031
        %5034 = vst.msk [vmem:[#allocation2 + $0x6] sm:$0x3] %vm4892, %v5032
        %v5035 = vrot.slane %v4846, 1
        %v5036 = vsel %vm4878, %v5035, %v5035
        %v5037 = vsel %vm4880, %v5035, %v5036
        %v5038 = vsel %vm4883, %v4864, %v5037
        %v5039 = vsel %vm4885, %v4864, %v5038
        %v5040 = vsel %vm4887, %v4864, %v5039
        %v5041 = vsel %vm4889, %v4864, %v5040
        %5042 = vrot.lane.b32.xlu0 %v5041, 32
        %v5043 = vpop.permute.xlu0 %5042
        %5045 = vst.msk [vmem:[#allocation2 + $0x6] sm:$0x3] %vm4904, %v5043
        %v5048 = vsel %vm4878, %v4847, %v4847
        %v5049 = vsel %vm4880, %v4847, %v5048
        %v5050 = vrot.slane %v4865, 7
        %v5051 = vsel %vm4883, %v5050, %v5049
        %v5052 = vsel %vm4885, %v5050, %v5051
        %v5053 = vsel %vm4887, %v5050, %v5052
        %v5054 = vsel %vm4889, %v5050, %v5053
        %5055 = vrot.lane.b32.xlu0 %v5054, 64
        %v5056 = vpop.permute.xlu0 %5055
        %5058 = vst.msk [vmem:[#allocation2 + $0x6] sm:$0x3] %vm4918, %v5056
        %v5059 = vrot.slane %v4847, 1
        %v5060 = vsel %vm4878, %v5059, %v5059
        %v5061 = vsel %vm4880, %v5059, %v5060
        %v5062 = vsel %vm4883, %v4865, %v5061
        %v5063 = vsel %vm4885, %v4865, %v5062
        %v5064 = vsel %vm4887, %v4865, %v5063
        %v5065 = vsel %vm4889, %v4865, %v5064
        %5066 = vrot.lane.b32.xlu0 %v5065, 96
        %v5067 = vpop.permute.xlu0 %5066
        %5069 = vst.msk [vmem:[#allocation2 + $0x6] sm:$0x3] %vm4930, %v5067
        %v5072 = vsel %vm4878, %v4848, %v4848
        %v5073 = vsel %vm4880, %v4848, %v5072
        %v5074 = vrot.slane %v4866, 7
        %v5075 = vsel %vm4883, %v5074, %v5073
        %v5076 = vsel %vm4885, %v5074, %v5075
        %v5077 = vsel %vm4887, %v5074, %v5076
        %v5078 = vsel %vm4889, %v5074, %v5077
        %5080 = vst.msk [vmem:[#allocation2 + $0x8] sm:$0x3] %vm4892, %v5078
        %v5081 = vrot.slane %v4848, 1
        %v5082 = vsel %vm4878, %v5081, %v5081
        %v5083 = vsel %vm4880, %v5081, %v5082
        %v5084 = vsel %vm4883, %v4866, %v5083
        %v5085 = vsel %vm4885, %v4866, %v5084
        %v5086 = vsel %vm4887, %v4866, %v5085
        %v5087 = vsel %vm4889, %v4866, %v5086
        %5088 = vrot.lane.b32.xlu0 %v5087, 32
        %v5089 = vpop.permute.xlu0 %5088
        %5091 = vst.msk [vmem:[#allocation2 + $0x8] sm:$0x3] %vm4904, %v5089
        %v5094 = vsel %vm4878, %v4849, %v4849
        %v5095 = vsel %vm4880, %v4849, %v5094
        %v5096 = vrot.slane %v4867, 7
        %v5097 = vsel %vm4883, %v5096, %v5095
        %v5098 = vsel %vm4885, %v5096, %v5097
        %v5099 = vsel %vm4887, %v5096, %v5098
        %v5100 = vsel %vm4889, %v5096, %v5099
        %5101 = vrot.lane.b32.xlu0 %v5100, 64
        %v5102 = vpop.permute.xlu0 %5101
        %5104 = vst.msk [vmem:[#allocation2 + $0x8] sm:$0x3] %vm4918, %v5102
        %v5105 = vrot.slane %v4849, 1
        %v5106 = vsel %vm4878, %v5105, %v5105
        %v5107 = vsel %vm4880, %v5105, %v5106
        %v5108 = vsel %vm4883, %v4867, %v5107
        %v5109 = vsel %vm4885, %v4867, %v5108
        %v5110 = vsel %vm4887, %v4867, %v5109
        %v5111 = vsel %vm4889, %v4867, %v5110
        %5112 = vrot.lane.b32.xlu0 %v5111, 96
        %v5113 = vpop.permute.xlu0 %5112
        %5115 = vst.msk [vmem:[#allocation2 + $0x8] sm:$0x3] %vm4930, %v5113
        %v5118 = vsel %vm4878, %v4850, %v4850
        %v5119 = vsel %vm4880, %v4850, %v5118
        %v5120 = vrot.slane %v4868, 7
        %v5121 = vsel %vm4883, %v5120, %v5119
        %v5122 = vsel %vm4885, %v5120, %v5121
        %v5123 = vsel %vm4887, %v5120, %v5122
        %v5124 = vsel %vm4889, %v5120, %v5123
        %5126 = vst.msk [vmem:[#allocation2 + $0xa] sm:$0x3] %vm4892, %v5124
        %v5127 = vrot.slane %v4850, 1
        %v5128 = vsel %vm4878, %v5127, %v5127
        %v5129 = vsel %vm4880, %v5127, %v5128
        %v5130 = vsel %vm4883, %v4868, %v5129
        %v5131 = vsel %vm4885, %v4868, %v5130
        %v5132 = vsel %vm4887, %v4868, %v5131
        %v5133 = vsel %vm4889, %v4868, %v5132
        %5134 = vrot.lane.b32.xlu0 %v5133, 32
        %v5135 = vpop.permute.xlu0 %5134
        %5137 = vst.msk [vmem:[#allocation2 + $0xa] sm:$0x3] %vm4904, %v5135
        %v5140 = vsel %vm4878, %v4851, %v4851
        %v5141 = vsel %vm4880, %v4851, %v5140
        %v5142 = vrot.slane %v4869, 7
        %v5143 = vsel %vm4883, %v5142, %v5141
        %v5144 = vsel %vm4885, %v5142, %v5143
        %v5145 = vsel %vm4887, %v5142, %v5144
        %v5146 = vsel %vm4889, %v5142, %v5145
        %5147 = vrot.lane.b32.xlu0 %v5146, 64
        %v5148 = vpop.permute.xlu0 %5147
        %5150 = vst.msk [vmem:[#allocation2 + $0xa] sm:$0x3] %vm4918, %v5148
        %v5151 = vrot.slane %v4851, 1
        %v5152 = vsel %vm4878, %v5151, %v5151
        %v5153 = vsel %vm4880, %v5151, %v5152
        %v5154 = vsel %vm4883, %v4869, %v5153
        %v5155 = vsel %vm4885, %v4869, %v5154
        %v5156 = vsel %vm4887, %v4869, %v5155
        %v5157 = vsel %vm4889, %v4869, %v5156
        %5158 = vrot.lane.b32.xlu0 %v5157, 96
        %v5159 = vpop.permute.xlu0 %5158
        %5161 = vst.msk [vmem:[#allocation2 + $0xa] sm:$0x3] %vm4930, %v5159
        %v5164 = vsel %vm4878, %v4852, %v4852
        %v5165 = vsel %vm4880, %v4852, %v5164
        %v5166 = vrot.slane %v4870, 7
        %v5167 = vsel %vm4883, %v5166, %v5165
        %v5168 = vsel %vm4885, %v5166, %v5167
        %v5169 = vsel %vm4887, %v5166, %v5168
        %v5170 = vsel %vm4889, %v5166, %v5169
        %5172 = vst.msk [vmem:[#allocation2 + $0xc] sm:$0x3] %vm4892, %v5170
        %v5173 = vrot.slane %v4852, 1
        %v5174 = vsel %vm4878, %v5173, %v5173
        %v5175 = vsel %vm4880, %v5173, %v5174
        %v5176 = vsel %vm4883, %v4870, %v5175
        %v5177 = vsel %vm4885, %v4870, %v5176
        %v5178 = vsel %vm4887, %v4870, %v5177
        %v5179 = vsel %vm4889, %v4870, %v5178
        %5180 = vrot.lane.b32.xlu0 %v5179, 32
        %v5181 = vpop.permute.xlu0 %5180
        %5183 = vst.msk [vmem:[#allocation2 + $0xc] sm:$0x3] %vm4904, %v5181
        %v5186 = vsel %vm4878, %v4853, %v4853
        %v5187 = vsel %vm4880, %v4853, %v5186
        %v5188 = vrot.slane %v4871, 7
        %v5189 = vsel %vm4883, %v5188, %v5187
        %v5190 = vsel %vm4885, %v5188, %v5189
        %v5191 = vsel %vm4887, %v5188, %v5190
        %v5192 = vsel %vm4889, %v5188, %v5191
        %5193 = vrot.lane.b32.xlu0 %v5192, 64
        %v5194 = vpop.permute.xlu0 %5193
        %5196 = vst.msk [vmem:[#allocation2 + $0xc] sm:$0x3] %vm4918, %v5194
        %v5197 = vrot.slane %v4853, 1
        %v5198 = vsel %vm4878, %v5197, %v5197
        %v5199 = vsel %vm4880, %v5197, %v5198
        %v5200 = vsel %vm4883, %v4871, %v5199
        %v5201 = vsel %vm4885, %v4871, %v5200
        %v5202 = vsel %vm4887, %v4871, %v5201
        %v5203 = vsel %vm4889, %v4871, %v5202
        %5204 = vrot.lane.b32.xlu0 %v5203, 96
        %v5205 = vpop.permute.xlu0 %5204
        %5207 = vst.msk [vmem:[#allocation2 + $0xc] sm:$0x3] %vm4930, %v5205
        %v5210 = vsel %vm4878, %v4854, %v4854
        %v5211 = vsel %vm4880, %v4854, %v5210
        %v5212 = vrot.slane %v4872, 7
        %v5213 = vsel %vm4883, %v5212, %v5211
        %v5214 = vsel %vm4885, %v5212, %v5213
        %v5215 = vsel %vm4887, %v5212, %v5214
        %v5216 = vsel %vm4889, %v5212, %v5215
        %5218 = vst.msk [vmem:[#allocation2 + $0xe] sm:$0x3] %vm4892, %v5216
        %v5219 = vrot.slane %v4854, 1
        %v5220 = vsel %vm4878, %v5219, %v5219
        %v5221 = vsel %vm4880, %v5219, %v5220
        %v5222 = vsel %vm4883, %v4872, %v5221
        %v5223 = vsel %vm4885, %v4872, %v5222
        %v5224 = vsel %vm4887, %v4872, %v5223
        %v5225 = vsel %vm4889, %v4872, %v5224
        %5226 = vrot.lane.b32.xlu0 %v5225, 32
        %v5227 = vpop.permute.xlu0 %5226
        %5229 = vst.msk [vmem:[#allocation2 + $0xe] sm:$0x3] %vm4904, %v5227
        %v5232 = vsel %vm4878, %v4855, %v4855
        %v5233 = vsel %vm4880, %v4855, %v5232
        %v5234 = vrot.slane %v4873, 7
        %v5235 = vsel %vm4883, %v5234, %v5233
        %v5236 = vsel %vm4885, %v5234, %v5235
        %v5237 = vsel %vm4887, %v5234, %v5236
        %v5238 = vsel %vm4889, %v5234, %v5237
        %5239 = vrot.lane.b32.xlu0 %v5238, 64
        %v5240 = vpop.permute.xlu0 %5239
        %5242 = vst.msk [vmem:[#allocation2 + $0xe] sm:$0x3] %vm4918, %v5240
        %v5243 = vrot.slane %v4855, 1
        %v5244 = vsel %vm4878, %v5243, %v5243
        %v5245 = vsel %vm4880, %v5243, %v5244
        %v5246 = vsel %vm4883, %v4873, %v5245
        %v5247 = vsel %vm4885, %v4873, %v5246
        %v5248 = vsel %vm4887, %v4873, %v5247
        %v5249 = vsel %vm4889, %v4873, %v5248
        %5250 = vrot.lane.b32.xlu0 %v5249, 96
        %v5251 = vpop.permute.xlu0 %5250
        %5253 = vst.msk [vmem:[#allocation2 + $0xe] sm:$0x3] %vm4930, %v5251
        %v5256 = vsel %vm4878, %v4856, %v4856
        %v5257 = vsel %vm4880, %v4856, %v5256
        %v5258 = vrot.slane %v4874, 7
        %v5259 = vsel %vm4883, %v5258, %v5257
        %v5260 = vsel %vm4885, %v5258, %v5259
        %v5261 = vsel %vm4887, %v5258, %v5260
        %v5262 = vsel %vm4889, %v5258, %v5261
        %5264 = vst.msk [vmem:[#allocation2 + $0x10] sm:$0x3] %vm4892, %v5262
        %v5265 = vrot.slane %v4856, 1
        %v5266 = vsel %vm4878, %v5265, %v5265
        %v5267 = vsel %vm4880, %v5265, %v5266
        %v5268 = vsel %vm4883, %v4874, %v5267
        %v5269 = vsel %vm4885, %v4874, %v5268
        %v5270 = vsel %vm4887, %v4874, %v5269
        %v5271 = vsel %vm4889, %v4874, %v5270
        %5272 = vrot.lane.b32.xlu0 %v5271, 32
        %v5273 = vpop.permute.xlu0 %5272
        %5275 = vst.msk [vmem:[#allocation2 + $0x10] sm:$0x3] %vm4904, %v5273
        %v5278 = vsel %vm4878, %v4857, %v4857
        %v5279 = vsel %vm4880, %v4857, %v5278
        %v5280 = vrot.slane %v4875, 7
        %v5281 = vsel %vm4883, %v5280, %v5279
        %v5282 = vsel %vm4885, %v5280, %v5281
        %v5283 = vsel %vm4887, %v5280, %v5282
        %v5284 = vsel %vm4889, %v5280, %v5283
        %5285 = vrot.lane.b32.xlu0 %v5284, 64
        %v5286 = vpop.permute.xlu0 %5285
        %5288 = vst.msk [vmem:[#allocation2 + $0x10] sm:$0x3] %vm4918, %v5286
        %v5289 = vrot.slane %v4857, 1
        %v5290 = vsel %vm4878, %v5289, %v5289
        %v5291 = vsel %vm4880, %v5289, %v5290
        %v5292 = vsel %vm4883, %v4875, %v5291
        %v5293 = vsel %vm4885, %v4875, %v5292
        %v5294 = vsel %vm4887, %v4875, %v5293
        %v5295 = vsel %vm4889, %v4875, %v5294
        %5296 = vrot.lane.b32.xlu0 %v5295, 96
        %v5297 = vpop.permute.xlu0 %5296
        %5299 = vst.msk [vmem:[#allocation2 + $0x10] sm:$0x3] %vm4930, %v5297
        %v5300 = vld [vmem:[#allocation2] sm:$0xff]
        %v5301 = vld [vmem:[#allocation2 + $0x8] sm:$0xff]
        %v5302 = vld [vmem:[#allocation2 + $0x10] sm:$0x3]
        %v5306 = vcombine.high %v5300, %v5300
        %v5308 = vunpack.c.l.s4 1983009808
        %v5309 = vunpack.c.0.s8 %v5308
        %v5310 = vlaneseq
        %v5311 = vshrl.u32 %v5310, 7
        %v5312 = vsub.s32 %v5309, %v5311
        %v5313 = vrot.slane %v5300, %v5312
        %v5315 = vunpack.c.l.s4 1983009808
        %v5316 = vunpack.c.0.s8 %v5315
        %v5317 = vlaneseq
        %v5318 = vshrl.u32 %v5317, 7
        %v5319 = vsub.s32 %v5316, %v5318
        %v5320 = vrot.slane %v5306, %v5319
        %v5321 = vcombine.high %v5313, %v5313
        %v5322 = vcombine.high %v5320, %v5320
        %v5323 = vcombine.high %v5301, %v5301
        %v5325 = vunpack.c.l.s4 1983009808
        %v5326 = vunpack.c.0.s8 %v5325
        %v5327 = vlaneseq
        %v5328 = vshrl.u32 %v5327, 7
        %v5329 = vsub.s32 %v5326, %v5328
        %v5330 = vrot.slane %v5301, %v5329
        %v5332 = vunpack.c.l.s4 1983009808
        %v5333 = vunpack.c.0.s8 %v5332
        %v5334 = vlaneseq
        %v5335 = vshrl.u32 %v5334, 7
        %v5336 = vsub.s32 %v5333, %v5335
        %v5337 = vrot.slane %v5323, %v5336
        %v5338 = vcombine.high %v5330, %v5330
        %v5339 = vcombine.high %v5337, %v5337
        %v5341 = vunpack.c.l.s4 1983009808
        %v5342 = vunpack.c.0.s8 %v5341
        %v5343 = vlaneseq
        %v5344 = vshrl.u32 %v5343, 7
        %v5345 = vsub.s32 %v5342, %v5344
        %v5346 = vrot.slane %v5302, %v5345
        %v5356 = vpack.c.bf16 %v5313, %v5313
        %v5357 = vpack.c.bf16 %v5321, %v5321
        %v5358 = vpack.c.bf16 %v5320, %v5320
        %v5359 = vpack.c.bf16 %v5322, %v5322
        %v5360 = vpack.c.bf16 %v5330, %v5330
        %v5361 = vpack.c.bf16 %v5338, %v5338
        %v5362 = vpack.c.bf16 %v5337, %v5337
        %v5363 = vpack.c.bf16 %v5339, %v5339
        %v5364 = vpack.c.bf16 %v5346, %v5346
        %v5365 = vld [vmem:[%s5] sm:$0xf]
        %v5366 = vld [vmem:[%s5 + $0x4] sm:$0xf]
        %v5367 = vld [vmem:[%s5 + $0x8] sm:$0xf]
        %v5368 = vld [vmem:[%s5 + $0xc] sm:$0xf]
        %v5369 = vld [vmem:[%s5 + $0x10] sm:$0xf]
        %v5370 = vld [vmem:[%s5 + $0x14] sm:$0xf]
        %v5371 = vld [vmem:[%s5 + $0x18] sm:$0xf]
        %v5372 = vld [vmem:[%s5 + $0x1c] sm:$0xf]
        %v5373 = vld [vmem:[%s5 + $0x20] sm:$0xf]
        %v5374 = vld [vmem:[%s5 + $0x24] sm:$0xf]
        %v5375 = vld [vmem:[%s5 + $0x28] sm:$0xf]
        %v5376 = vld [vmem:[%s5 + $0x2c] sm:$0xf]
        %v5377 = vld [vmem:[%s5 + $0x30] sm:$0xf]
        %v5378 = vld [vmem:[%s5 + $0x34] sm:$0xf]
        %v5379 = vld [vmem:[%s5 + $0x38] sm:$0xf]
        %v5380 = vld [vmem:[%s5 + $0x3c] sm:$0xf]
        %v5381 = vld [vmem:[%s5 + $0x40] sm:$0xf]
        %v5382 = vld [vmem:[%s5 + $0x44] sm:$0xf]
        %v5383 = vld [vmem:[%s5 + $0x48] sm:$0xf]
        %v5384 = vld [vmem:[%s5 + $0x4c] sm:$0xf]
        %v5385 = vld [vmem:[%s5 + $0x50] sm:$0xf]
        %v5386 = vld [vmem:[%s5 + $0x54] sm:$0xf]
        %v5387 = vld [vmem:[%s5 + $0x58] sm:$0xf]
        %v5388 = vld [vmem:[%s5 + $0x5c] sm:$0xf]
        %v5389 = vld [vmem:[%s5 + $0x60] sm:$0xf]
        %v5390 = vld [vmem:[%s5 + $0x64] sm:$0xf]
        %v5391 = vld [vmem:[%s5 + $0x68] sm:$0xf]
        %v5392 = vld [vmem:[%s5 + $0x6c] sm:$0xf]
        %v5393 = vld [vmem:[%s5 + $0x70] sm:$0xf]
        %v5394 = vld [vmem:[%s5 + $0x74] sm:$0xf]
        %v5395 = vld [vmem:[%s5 + $0x78] sm:$0xf]
        %v5396 = vld [vmem:[%s5 + $0x7c] sm:$0xf]
        %v5397 = vld [vmem:[%s5 + $0x80] sm:$0xf]
        %v5398 = vld [vmem:[%s5 + $0x84] sm:$0xf]
        %v5399 = vld [vmem:[%s5 + $0x88] sm:$0xf]
        %v5400 = vld [vmem:[%s5 + $0x8c] sm:$0xf]
        %v5401 = vld [vmem:[%s5 + $0x90] sm:$0xf]
        %v5402 = vld [vmem:[%s5 + $0x94] sm:$0xf]
        %v5403 = vld [vmem:[%s5 + $0x98] sm:$0xf]
        %v5404 = vld [vmem:[%s5 + $0x9c] sm:$0xf]
        %v5405 = vld [vmem:[%s5 + $0xa0] sm:$0xf]
        %v5406 = vld [vmem:[%s5 + $0xa4] sm:$0xf]
        %v5407 = vld [vmem:[%s5 + $0xa8] sm:$0xf]
        %v5408 = vld [vmem:[%s5 + $0xac] sm:$0xf]
        %v5409 = vld [vmem:[%s5 + $0xb0] sm:$0xf]
        %v5410 = vld [vmem:[%s5 + $0xb4] sm:$0xf]
        %v5411 = vld [vmem:[%s5 + $0xb8] sm:$0xf]
        %v5412 = vld [vmem:[%s5 + $0xbc] sm:$0xf]
        %v5413 = vld [vmem:[%s5 + $0xc0] sm:$0xf]
        %v5414 = vld [vmem:[%s5 + $0xc4] sm:$0xf]
        %v5415 = vld [vmem:[%s5 + $0xc8] sm:$0xf]
        %v5416 = vld [vmem:[%s5 + $0xcc] sm:$0xf]
        %v5417 = vld [vmem:[%s5 + $0xd0] sm:$0xf]
        %v5418 = vld [vmem:[%s5 + $0xd4] sm:$0xf]
        %v5419 = vld [vmem:[%s5 + $0xd8] sm:$0xf]
        %v5420 = vld [vmem:[%s5 + $0xdc] sm:$0xf]
        %v5421 = vld [vmem:[%s5 + $0xe0] sm:$0xf]
        %v5422 = vld [vmem:[%s5 + $0xe4] sm:$0xf]
        %v5423 = vld [vmem:[%s5 + $0xe8] sm:$0xf]
        %v5424 = vld [vmem:[%s5 + $0xec] sm:$0xf]
        %v5425 = vld [vmem:[%s5 + $0xf0] sm:$0xf]
        %v5426 = vld [vmem:[%s5 + $0xf4] sm:$0xf]
        %v5427 = vld [vmem:[%s5 + $0xf8] sm:$0xf]
        %v5428 = vld [vmem:[%s5 + $0xfc] sm:$0xf]
        %v5429 = vld [vmem:[%s5 + $0x100] sm:$0xf]
        %v5430 = vld [vmem:[%s5 + $0x104] sm:$0xf]
        %v5431 = vld [vmem:[%s5 + $0x108] sm:$0xf]
        %v5432 = vld [vmem:[%s5 + $0x10c] sm:$0xf]
        %v5433 = vld [vmem:[%s5 + $0x110] sm:$0xf]
        %v5434 = vld [vmem:[%s5 + $0x114] sm:$0xf]
        %v5435 = vld [vmem:[%s5 + $0x118] sm:$0xf]
        %v5436 = vld [vmem:[%s5 + $0x11c] sm:$0xf]
        %v5437 = vld [vmem:[%s5 + $0x120] sm:$0xf]
        %v5438 = vld [vmem:[%s5 + $0x124] sm:$0xf]
        %v5439 = vld [vmem:[%s5 + $0x128] sm:$0xf]
        %v5440 = vld [vmem:[%s5 + $0x12c] sm:$0xf]
        %v5441 = vld [vmem:[%s5 + $0x130] sm:$0xf]
        %v5442 = vld [vmem:[%s5 + $0x134] sm:$0xf]
        %v5443 = vld [vmem:[%s5 + $0x138] sm:$0xf]
        %v5444 = vld [vmem:[%s5 + $0x13c] sm:$0xf]
        %v5445 = vld [vmem:[%s5 + $0x140] sm:$0xf]
        %v5446 = vld [vmem:[%s5 + $0x144] sm:$0xf]
        %v5447 = vld [vmem:[%s5 + $0x148] sm:$0xf]
        %v5448 = vld [vmem:[%s5 + $0x14c] sm:$0xf]
        %v5449 = vld [vmem:[%s5 + $0x150] sm:$0xf]
        %v5450 = vld [vmem:[%s5 + $0x154] sm:$0xf]
        %v5451 = vld [vmem:[%s5 + $0x158] sm:$0xf]
        %v5452 = vld [vmem:[%s5 + $0x15c] sm:$0xf]
        %v5453 = vld [vmem:[%s5 + $0x160] sm:$0xf]
        %v5454 = vld [vmem:[%s5 + $0x164] sm:$0xf]
        %v5455 = vld [vmem:[%s5 + $0x168] sm:$0xf]
        %v5456 = vld [vmem:[%s5 + $0x16c] sm:$0xf]
        %v5457 = vld [vmem:[%s5 + $0x170] sm:$0xf]
        %v5458 = vld [vmem:[%s5 + $0x174] sm:$0xf]
        %v5459 = vld [vmem:[%s5 + $0x178] sm:$0xf]
        %v5460 = vld [vmem:[%s5 + $0x17c] sm:$0xf]
        %v5461 = vld [vmem:[%s5 + $0x180] sm:$0xf]
        %v5462 = vld [vmem:[%s5 + $0x184] sm:$0xf]
        %v5463 = vld [vmem:[%s5 + $0x188] sm:$0xf]
        %v5464 = vld [vmem:[%s5 + $0x18c] sm:$0xf]
        %v5465 = vld [vmem:[%s5 + $0x190] sm:$0xf]
        %v5466 = vld [vmem:[%s5 + $0x194] sm:$0xf]
        %v5467 = vld [vmem:[%s5 + $0x198] sm:$0xf]
        %v5468 = vld [vmem:[%s5 + $0x19c] sm:$0xf]
        %v5469 = vld [vmem:[%s5 + $0x1a0] sm:$0xf]
        %v5470 = vld [vmem:[%s5 + $0x1a4] sm:$0xf]
        %v5471 = vld [vmem:[%s5 + $0x1a8] sm:$0xf]
        %v5472 = vld [vmem:[%s5 + $0x1ac] sm:$0xf]
        %v5473 = vld [vmem:[%s5 + $0x1b0] sm:$0xf]
        %v5474 = vld [vmem:[%s5 + $0x1b4] sm:$0xf]
        %v5475 = vld [vmem:[%s5 + $0x1b8] sm:$0xf]
        %v5476 = vld [vmem:[%s5 + $0x1bc] sm:$0xf]
        %v5477 = vld [vmem:[%s5 + $0x1c0] sm:$0xf]
        %v5478 = vld [vmem:[%s5 + $0x1c4] sm:$0xf]
        %v5479 = vld [vmem:[%s5 + $0x1c8] sm:$0xf]
        %v5480 = vld [vmem:[%s5 + $0x1cc] sm:$0xf]
        %v5481 = vld [vmem:[%s5 + $0x1d0] sm:$0xf]
        %v5482 = vld [vmem:[%s5 + $0x1d4] sm:$0xf]
        %v5483 = vld [vmem:[%s5 + $0x1d8] sm:$0xf]
        %v5484 = vld [vmem:[%s5 + $0x1dc] sm:$0xf]
        %v5485 = vld [vmem:[%s5 + $0x1e0] sm:$0xf]
        %v5486 = vld [vmem:[%s5 + $0x1e4] sm:$0xf]
        %v5487 = vld [vmem:[%s5 + $0x1e8] sm:$0xf]
        %v5488 = vld [vmem:[%s5 + $0x1ec] sm:$0xf]
        %v5489 = vld [vmem:[%s5 + $0x1f0] sm:$0xf]
        %v5490 = vld [vmem:[%s5 + $0x1f4] sm:$0xf]
        %v5491 = vld [vmem:[%s5 + $0x1f8] sm:$0xf]
        %v5492 = vld [vmem:[%s5 + $0x1fc] sm:$0xf]
        %v5493 = vld [vmem:[%s5 + $0x200] sm:$0xf]
        %v5494 = vld [vmem:[%s5 + $0x204] sm:$0xf]
        %v5495 = vld [vmem:[%s5 + $0x208] sm:$0xf]
        %v5496 = vld [vmem:[%s5 + $0x20c] sm:$0xf]
        %v5497 = vld [vmem:[%s5 + $0x210] sm:$0xf]
        %v5498 = vld [vmem:[%s5 + $0x214] sm:$0xf]
        %v5499 = vld [vmem:[%s5 + $0x218] sm:$0xf]
        %v5500 = vld [vmem:[%s5 + $0x21c] sm:$0xf]
        %v5501 = vld [vmem:[%s5 + $0x220] sm:$0xf]
        %v5502 = vld [vmem:[%s5 + $0x224] sm:$0xf]
        %v5503 = vld [vmem:[%s5 + $0x228] sm:$0xf]
        %v5504 = vld [vmem:[%s5 + $0x22c] sm:$0xf]
        %v5505 = vld [vmem:[%s5 + $0x230] sm:$0xf]
        %v5506 = vld [vmem:[%s5 + $0x234] sm:$0xf]
        %v5507 = vld [vmem:[%s5 + $0x238] sm:$0xf]
        %v5508 = vld [vmem:[%s5 + $0x23c] sm:$0xf]
        %v5509 = vld [vmem:[%s6] sm:$0x1]
        %v5511 = vlaneseq
        %v5512 = vshrl.u32 %v5511, 7
        %v5513 = vsub.s32 0, %v5512
        %v5514 = vrot.slane %v5509, %v5513
        %v5660 = vunpack.c.l.b16 %v5365
        %v5661 = vunpack.c.l.b16 %v5366
        %v5662 = vunpack.c.l.b16 %v5367
        %v5663 = vunpack.c.l.b16 %v5368
        %v5664 = vunpack.c.l.b16 %v5369
        %v5665 = vunpack.c.l.b16 %v5370
        %v5666 = vunpack.c.l.b16 %v5371
        %v5667 = vunpack.c.l.b16 %v5372
        %v5668 = vunpack.c.l.b16 %v5373
        %v5669 = vunpack.c.l.b16 %v5374
        %v5670 = vunpack.c.l.b16 %v5375
        %v5671 = vunpack.c.l.b16 %v5376
        %v5672 = vunpack.c.l.b16 %v5377
        %v5673 = vunpack.c.l.b16 %v5378
        %v5674 = vunpack.c.l.b16 %v5379
        %v5675 = vunpack.c.l.b16 %v5380
        %v5676 = vunpack.c.l.b16 %v5381
        %v5677 = vunpack.c.l.b16 %v5382
        %v5678 = vunpack.c.l.b16 %v5383
        %v5679 = vunpack.c.l.b16 %v5384
        %v5680 = vunpack.c.l.b16 %v5385
        %v5681 = vunpack.c.l.b16 %v5386
        %v5682 = vunpack.c.l.b16 %v5387
        %v5683 = vunpack.c.l.b16 %v5388
        %v5684 = vunpack.c.l.b16 %v5389
        %v5685 = vunpack.c.l.b16 %v5390
        %v5686 = vunpack.c.l.b16 %v5391
        %v5687 = vunpack.c.l.b16 %v5392
        %v5688 = vunpack.c.l.b16 %v5393
        %v5689 = vunpack.c.l.b16 %v5394
        %v5690 = vunpack.c.l.b16 %v5395
        %v5691 = vunpack.c.l.b16 %v5396
        %v5692 = vunpack.c.l.b16 %v5397
        %v5693 = vunpack.c.l.b16 %v5398
        %v5694 = vunpack.c.l.b16 %v5399
        %v5695 = vunpack.c.l.b16 %v5400
        %v5696 = vunpack.c.l.b16 %v5401
        %v5697 = vunpack.c.l.b16 %v5402
        %v5698 = vunpack.c.l.b16 %v5403
        %v5699 = vunpack.c.l.b16 %v5404
        %v5700 = vunpack.c.l.b16 %v5405
        %v5701 = vunpack.c.l.b16 %v5406
        %v5702 = vunpack.c.l.b16 %v5407
        %v5703 = vunpack.c.l.b16 %v5408
        %v5704 = vunpack.c.l.b16 %v5409
        %v5705 = vunpack.c.l.b16 %v5410
        %v5706 = vunpack.c.l.b16 %v5411
        %v5707 = vunpack.c.l.b16 %v5412
        %v5708 = vunpack.c.l.b16 %v5413
        %v5709 = vunpack.c.l.b16 %v5414
        %v5710 = vunpack.c.l.b16 %v5415
        %v5711 = vunpack.c.l.b16 %v5416
        %v5712 = vunpack.c.l.b16 %v5417
        %v5713 = vunpack.c.l.b16 %v5418
        %v5714 = vunpack.c.l.b16 %v5419
        %v5715 = vunpack.c.l.b16 %v5420
        %v5716 = vunpack.c.l.b16 %v5421
        %v5717 = vunpack.c.l.b16 %v5422
        %v5718 = vunpack.c.l.b16 %v5423
        %v5719 = vunpack.c.l.b16 %v5424
        %v5720 = vunpack.c.l.b16 %v5425
        %v5721 = vunpack.c.l.b16 %v5426
        %v5722 = vunpack.c.l.b16 %v5427
        %v5723 = vunpack.c.l.b16 %v5428
        %v5724 = vunpack.c.l.b16 %v5429
        %v5725 = vunpack.c.l.b16 %v5430
        %v5726 = vunpack.c.l.b16 %v5431
        %v5727 = vunpack.c.l.b16 %v5432
        %v5728 = vunpack.c.l.b16 %v5433
        %v5729 = vunpack.c.l.b16 %v5434
        %v5730 = vunpack.c.l.b16 %v5435
        %v5731 = vunpack.c.l.b16 %v5436
        %v5732 = vunpack.c.l.b16 %v5437
        %v5733 = vunpack.c.l.b16 %v5438
        %v5734 = vunpack.c.l.b16 %v5439
        %v5735 = vunpack.c.l.b16 %v5440
        %v5736 = vunpack.c.l.b16 %v5441
        %v5737 = vunpack.c.l.b16 %v5442
        %v5738 = vunpack.c.l.b16 %v5443
        %v5739 = vunpack.c.l.b16 %v5444
        %v5740 = vunpack.c.l.b16 %v5445
        %v5741 = vunpack.c.l.b16 %v5446
        %v5742 = vunpack.c.l.b16 %v5447
        %v5743 = vunpack.c.l.b16 %v5448
        %v5744 = vunpack.c.l.b16 %v5449
        %v5745 = vunpack.c.l.b16 %v5450
        %v5746 = vunpack.c.l.b16 %v5451
        %v5747 = vunpack.c.l.b16 %v5452
        %v5748 = vunpack.c.l.b16 %v5453
        %v5749 = vunpack.c.l.b16 %v5454
        %v5750 = vunpack.c.l.b16 %v5455
        %v5751 = vunpack.c.l.b16 %v5456
        %v5752 = vunpack.c.l.b16 %v5457
        %v5753 = vunpack.c.l.b16 %v5458
        %v5754 = vunpack.c.l.b16 %v5459
        %v5755 = vunpack.c.l.b16 %v5460
        %v5756 = vunpack.c.l.b16 %v5461
        %v5757 = vunpack.c.l.b16 %v5462
        %v5758 = vunpack.c.l.b16 %v5463
        %v5759 = vunpack.c.l.b16 %v5464
        %v5760 = vunpack.c.l.b16 %v5465
        %v5761 = vunpack.c.l.b16 %v5466
        %v5762 = vunpack.c.l.b16 %v5467
        %v5763 = vunpack.c.l.b16 %v5468
        %v5764 = vunpack.c.l.b16 %v5469
        %v5765 = vunpack.c.l.b16 %v5470
        %v5766 = vunpack.c.l.b16 %v5471
        %v5767 = vunpack.c.l.b16 %v5472
        %v5768 = vunpack.c.l.b16 %v5473
        %v5769 = vunpack.c.l.b16 %v5474
        %v5770 = vunpack.c.l.b16 %v5475
        %v5771 = vunpack.c.l.b16 %v5476
        %v5772 = vunpack.c.l.b16 %v5477
        %v5773 = vunpack.c.l.b16 %v5478
        %v5774 = vunpack.c.l.b16 %v5479
        %v5775 = vunpack.c.l.b16 %v5480
        %v5776 = vunpack.c.l.b16 %v5481
        %v5777 = vunpack.c.l.b16 %v5482
        %v5778 = vunpack.c.l.b16 %v5483
        %v5779 = vunpack.c.l.b16 %v5484
        %v5780 = vunpack.c.l.b16 %v5485
        %v5781 = vunpack.c.l.b16 %v5486
        %v5782 = vunpack.c.l.b16 %v5487
        %v5783 = vunpack.c.l.b16 %v5488
        %v5784 = vunpack.c.l.b16 %v5489
        %v5785 = vunpack.c.l.b16 %v5490
        %v5786 = vunpack.c.l.b16 %v5491
        %v5787 = vunpack.c.l.b16 %v5492
        %v5788 = vunpack.c.l.b16 %v5493
        %v5789 = vunpack.c.l.b16 %v5494
        %v5790 = vunpack.c.l.b16 %v5495
        %v5791 = vunpack.c.l.b16 %v5496
        %v5792 = vunpack.c.l.b16 %v5497
        %v5793 = vunpack.c.l.b16 %v5498
        %v5794 = vunpack.c.l.b16 %v5499
        %v5795 = vunpack.c.l.b16 %v5500
        %v5796 = vunpack.c.l.b16 %v5501
        %v5797 = vunpack.c.l.b16 %v5502
        %v5798 = vunpack.c.l.b16 %v5503
        %v5799 = vunpack.c.l.b16 %v5504
        %v5800 = vunpack.c.l.b16 %v5505
        %v5801 = vunpack.c.l.b16 %v5506
        %v5802 = vunpack.c.l.b16 %v5507
        %v5803 = vunpack.c.l.b16 %v5508
        %v5804 = vpack.c.b16 %v5661, %v5660
        %v5805 = vpack.c.b16 %v5663, %v5662
        %v5806 = vpack.c.b16 %v5665, %v5664
        %v5807 = vpack.c.b16 %v5667, %v5666
        %v5808 = vpack.c.b16 %v5669, %v5668
        %v5809 = vpack.c.b16 %v5671, %v5670
        %v5810 = vpack.c.b16 %v5673, %v5672
        %v5811 = vpack.c.b16 %v5675, %v5674
        %v5812 = vpack.c.b16 %v5677, %v5676
        %v5813 = vpack.c.b16 %v5679, %v5678
        %v5814 = vpack.c.b16 %v5681, %v5680
        %v5815 = vpack.c.b16 %v5683, %v5682
        %v5816 = vpack.c.b16 %v5685, %v5684
        %v5817 = vpack.c.b16 %v5687, %v5686
        %v5818 = vpack.c.b16 %v5689, %v5688
        %v5819 = vpack.c.b16 %v5691, %v5690
        %v5820 = vpack.c.b16 %v5693, %v5692
        %v5821 = vpack.c.b16 %v5695, %v5694
        %v5822 = vpack.c.b16 %v5697, %v5696
        %v5823 = vpack.c.b16 %v5699, %v5698
        %v5824 = vpack.c.b16 %v5701, %v5700
        %v5825 = vpack.c.b16 %v5703, %v5702
        %v5826 = vpack.c.b16 %v5705, %v5704
        %v5827 = vpack.c.b16 %v5707, %v5706
        %v5828 = vpack.c.b16 %v5709, %v5708
        %v5829 = vpack.c.b16 %v5711, %v5710
        %v5830 = vpack.c.b16 %v5713, %v5712
        %v5831 = vpack.c.b16 %v5715, %v5714
        %v5832 = vpack.c.b16 %v5717, %v5716
        %v5833 = vpack.c.b16 %v5719, %v5718
        %v5834 = vpack.c.b16 %v5721, %v5720
        %v5835 = vpack.c.b16 %v5723, %v5722
        %v5836 = vpack.c.b16 %v5725, %v5724
        %v5837 = vpack.c.b16 %v5727, %v5726
        %v5838 = vpack.c.b16 %v5729, %v5728
        %v5839 = vpack.c.b16 %v5731, %v5730
        %v5840 = vpack.c.b16 %v5733, %v5732
        %v5841 = vpack.c.b16 %v5735, %v5734
        %v5842 = vpack.c.b16 %v5737, %v5736
        %v5843 = vpack.c.b16 %v5739, %v5738
        %v5844 = vpack.c.b16 %v5741, %v5740
        %v5845 = vpack.c.b16 %v5743, %v5742
        %v5846 = vpack.c.b16 %v5745, %v5744
        %v5847 = vpack.c.b16 %v5747, %v5746
        %v5848 = vpack.c.b16 %v5749, %v5748
        %v5849 = vpack.c.b16 %v5751, %v5750
        %v5850 = vpack.c.b16 %v5753, %v5752
        %v5851 = vpack.c.b16 %v5755, %v5754
        %v5852 = vpack.c.b16 %v5757, %v5756
        %v5853 = vpack.c.b16 %v5759, %v5758
        %v5854 = vpack.c.b16 %v5761, %v5760
        %v5855 = vpack.c.b16 %v5763, %v5762
        %v5856 = vpack.c.b16 %v5765, %v5764
        %v5857 = vpack.c.b16 %v5767, %v5766
        %v5858 = vpack.c.b16 %v5769, %v5768
        %v5859 = vpack.c.b16 %v5771, %v5770
        %v5860 = vpack.c.b16 %v5773, %v5772
        %v5861 = vpack.c.b16 %v5775, %v5774
        %v5862 = vpack.c.b16 %v5777, %v5776
        %v5863 = vpack.c.b16 %v5779, %v5778
        %v5864 = vpack.c.b16 %v5781, %v5780
        %v5865 = vpack.c.b16 %v5783, %v5782
        %v5866 = vpack.c.b16 %v5785, %v5784
        %v5867 = vpack.c.b16 %v5787, %v5786
        %v5868 = vpack.c.b16 %v5789, %v5788
        %v5869 = vpack.c.b16 %v5791, %v5790
        %v5870 = vpack.c.b16 %v5793, %v5792
        %v5871 = vpack.c.b16 %v5795, %v5794
        %v5872 = vpack.c.b16 %v5797, %v5796
        %v5873 = vpack.c.b16 %v5799, %v5798
        %v5874 = vpack.c.b16 %v5801, %v5800
        %v5875 = vpack.c.b16 %v5803, %v5802
        %5948 = vmatprep.subr.bf16.mxu0 0
        %5949 = vmatpush1.bf16.msra.mxu0 %v5804
        %5950 = vmatprep.subr.bf16.mxu0 0
        %5951 = vmatpush1.bf16.msra.mxu0 %v5805
        %5952 = vmatprep.subr.bf16.mxu0 0
        %5953 = vmatpush1.bf16.msra.mxu0 %v5806
        %5954 = vmatprep.subr.bf16.mxu0 0
        %5955 = vmatpush1.bf16.msra.mxu0 %v5807
        %5956 = vmatprep.subr.bf16.mxu0 0
        %5957 = vmatpush1.bf16.msra.mxu0 %v5808
        %5958 = vmatprep.subr.bf16.mxu0 0
        %5959 = vmatpush1.bf16.msra.mxu0 %v5809
        %5960 = vmatprep.subr.bf16.mxu0 0
        %5961 = vmatpush1.bf16.msra.mxu0 %v5810
        %5962 = vmatprep.subr.bf16.mxu0 0
        %5963 = vmatpush1.bf16.msra.mxu0 %v5811
        %5964 = vmatprep.subr.bf16.mxu0 0
        %5965 = vmatpush1.bf16.msra.mxu0 %v5812
        %5966 = vmatprep.subr.bf16.mxu0 0
        %5967 = vmatpush1.bf16.msra.mxu0 %v5813
        %5968 = vmatprep.subr.bf16.mxu0 0
        %5969 = vmatpush1.bf16.msra.mxu0 %v5814
        %5970 = vmatprep.subr.bf16.mxu0 0
        %5971 = vmatpush1.bf16.msra.mxu0 %v5815
        %5972 = vmatprep.subr.bf16.mxu0 0
        %5973 = vmatpush1.bf16.msra.mxu0 %v5816
        %5974 = vmatprep.subr.bf16.mxu0 0
        %5975 = vmatpush1.bf16.msra.mxu0 %v5817
        %5976 = vmatprep.subr.bf16.mxu0 0
        %5977 = vmatpush1.bf16.msra.mxu0 %v5818
        %5978 = vmatprep.subr.bf16.mxu0 0
        %5979 = vmatpush1.bf16.msra.mxu0 %v5819
        %5980 = vmatprep.mubr.bf16.mxu0 %v5357
        %5981 = vmatmul.mubr.bf16.gmra.mrb[0].mxu0 %v5356
        %v5982 = vpop.f32.mrb[0].mxu0
        %v5983 = vadd.f32 %v5514, %v5982
        %v5984 = vpop.f32.mrb[0].mxu0
        %v5985 = vpop.f32.mrb[0].mxu0
        %v5986 = vpop.f32.mrb[0].mxu0
        %5987 = vdwg.mxu0
        %5988 = vmatprep.subr.bf16.mxu0 0
        %5989 = vmatpush1.bf16.msra.mxu0 %v5820
        %5990 = vmatprep.subr.bf16.mxu0 0
        %5991 = vmatpush1.bf16.msra.mxu0 %v5821
        %5992 = vmatprep.subr.bf16.mxu0 0
        %5993 = vmatpush1.bf16.msra.mxu0 %v5822
        %5994 = vmatprep.subr.bf16.mxu0 0
        %5995 = vmatpush1.bf16.msra.mxu0 %v5823
        %5996 = vmatprep.subr.bf16.mxu0 0
        %5997 = vmatpush1.bf16.msra.mxu0 %v5824
        %5998 = vmatprep.subr.bf16.mxu0 0
        %5999 = vmatpush1.bf16.msra.mxu0 %v5825
        %6000 = vmatprep.subr.bf16.mxu0 0
        %6001 = vmatpush1.bf16.msra.mxu0 %v5826
        %6002 = vmatprep.subr.bf16.mxu0 0
        %6003 = vmatpush1.bf16.msra.mxu0 %v5827
        %6004 = vmatprep.subr.bf16.mxu0 0
        %6005 = vmatpush1.bf16.msra.mxu0 %v5828
        %6006 = vmatprep.subr.bf16.mxu0 0
        %6007 = vmatpush1.bf16.msra.mxu0 %v5829
        %6008 = vmatprep.subr.bf16.mxu0 0
        %6009 = vmatpush1.bf16.msra.mxu0 %v5830
        %6010 = vmatprep.subr.bf16.mxu0 0
        %6011 = vmatpush1.bf16.msra.mxu0 %v5831
        %6012 = vmatprep.subr.bf16.mxu0 0
        %6013 = vmatpush1.bf16.msra.mxu0 %v5832
        %6014 = vmatprep.subr.bf16.mxu0 0
        %6015 = vmatpush1.bf16.msra.mxu0 %v5833
        %6016 = vmatprep.subr.bf16.mxu0 0
        %6017 = vmatpush1.bf16.msra.mxu0 %v5834
        %6018 = vmatprep.subr.bf16.mxu0 0
        %6019 = vmatpush1.bf16.msra.mxu0 %v5835
        %6020 = vmatprep.mubr.bf16.mxu0 %v5359
        %6021 = vmatmul.mubr.bf16.gmra.mrb[0].mxu0 %v5358
        %v6022 = vpop.f32.mrb[0].mxu0
        %v6023 = vadd.f32 %v5983, %v6022
        %v6024 = vpop.f32.mrb[0].mxu0
        %v6025 = vpop.f32.mrb[0].mxu0
        %v6026 = vpop.f32.mrb[0].mxu0
        %6027 = vdwg.mxu0
        %6028 = vmatprep.subr.bf16.mxu0 0
        %6029 = vmatpush1.bf16.msra.mxu0 %v5836
        %6030 = vmatprep.subr.bf16.mxu0 0
        %6031 = vmatpush1.bf16.msra.mxu0 %v5837
        %6032 = vmatprep.subr.bf16.mxu0 0
        %6033 = vmatpush1.bf16.msra.mxu0 %v5838
        %6034 = vmatprep.subr.bf16.mxu0 0
        %6035 = vmatpush1.bf16.msra.mxu0 %v5839
        %6036 = vmatprep.subr.bf16.mxu0 0
        %6037 = vmatpush1.bf16.msra.mxu0 %v5840
        %6038 = vmatprep.subr.bf16.mxu0 0
        %6039 = vmatpush1.bf16.msra.mxu0 %v5841
        %6040 = vmatprep.subr.bf16.mxu0 0
        %6041 = vmatpush1.bf16.msra.mxu0 %v5842
        %6042 = vmatprep.subr.bf16.mxu0 0
        %6043 = vmatpush1.bf16.msra.mxu0 %v5843
        %6044 = vmatprep.subr.bf16.mxu0 0
        %6045 = vmatpush1.bf16.msra.mxu0 %v5844
        %6046 = vmatprep.subr.bf16.mxu0 0
        %6047 = vmatpush1.bf16.msra.mxu0 %v5845
        %6048 = vmatprep.subr.bf16.mxu0 0
        %6049 = vmatpush1.bf16.msra.mxu0 %v5846
        %6050 = vmatprep.subr.bf16.mxu0 0
        %6051 = vmatpush1.bf16.msra.mxu0 %v5847
        %6052 = vmatprep.subr.bf16.mxu0 0
        %6053 = vmatpush1.bf16.msra.mxu0 %v5848
        %6054 = vmatprep.subr.bf16.mxu0 0
        %6055 = vmatpush1.bf16.msra.mxu0 %v5849
        %6056 = vmatprep.subr.bf16.mxu0 0
        %6057 = vmatpush1.bf16.msra.mxu0 %v5850
        %6058 = vmatprep.subr.bf16.mxu0 0
        %6059 = vmatpush1.bf16.msra.mxu0 %v5851
        %6060 = vmatprep.mubr.bf16.mxu0 %v5361
        %6061 = vmatmul.mubr.bf16.gmra.mrb[0].mxu0 %v5360
        %v6062 = vpop.f32.mrb[0].mxu0
        %v6063 = vadd.f32 %v6023, %v6062
        %v6064 = vpop.f32.mrb[0].mxu0
        %v6065 = vpop.f32.mrb[0].mxu0
        %v6066 = vpop.f32.mrb[0].mxu0
        %6067 = vdwg.mxu0
        %6068 = vmatprep.subr.bf16.mxu0 0
        %6069 = vmatpush1.bf16.msra.mxu0 %v5852
        %6070 = vmatprep.subr.bf16.mxu0 0
        %6071 = vmatpush1.bf16.msra.mxu0 %v5853
        %6072 = vmatprep.subr.bf16.mxu0 0
        %6073 = vmatpush1.bf16.msra.mxu0 %v5854
        %6074 = vmatprep.subr.bf16.mxu0 0
        %6075 = vmatpush1.bf16.msra.mxu0 %v5855
        %6076 = vmatprep.subr.bf16.mxu0 0
        %6077 = vmatpush1.bf16.msra.mxu0 %v5856
        %6078 = vmatprep.subr.bf16.mxu0 0
        %6079 = vmatpush1.bf16.msra.mxu0 %v5857
        %6080 = vmatprep.subr.bf16.mxu0 0
        %6081 = vmatpush1.bf16.msra.mxu0 %v5858
        %6082 = vmatprep.subr.bf16.mxu0 0
        %6083 = vmatpush1.bf16.msra.mxu0 %v5859
        %6084 = vmatprep.subr.bf16.mxu0 0
        %6085 = vmatpush1.bf16.msra.mxu0 %v5860
        %6086 = vmatprep.subr.bf16.mxu0 0
        %6087 = vmatpush1.bf16.msra.mxu0 %v5861
        %6088 = vmatprep.subr.bf16.mxu0 0
        %6089 = vmatpush1.bf16.msra.mxu0 %v5862
        %6090 = vmatprep.subr.bf16.mxu0 0
        %6091 = vmatpush1.bf16.msra.mxu0 %v5863
        %6092 = vmatprep.subr.bf16.mxu0 0
        %6093 = vmatpush1.bf16.msra.mxu0 %v5864
        %6094 = vmatprep.subr.bf16.mxu0 0
        %6095 = vmatpush1.bf16.msra.mxu0 %v5865
        %6096 = vmatprep.subr.bf16.mxu0 0
        %6097 = vmatpush1.bf16.msra.mxu0 %v5866
        %6098 = vmatprep.subr.bf16.mxu0 0
        %6099 = vmatpush1.bf16.msra.mxu0 %v5867
        %6100 = vmatprep.mubr.bf16.mxu0 %v5363
        %6101 = vmatmul.mubr.bf16.gmra.mrb[0].mxu0 %v5362
        %v6102 = vpop.f32.mrb[0].mxu0
        %v6103 = vadd.f32 %v6063, %v6102
        %v6104 = vpop.f32.mrb[0].mxu0
        %v6105 = vpop.f32.mrb[0].mxu0
        %v6106 = vpop.f32.mrb[0].mxu0
        %6107 = vdwg.mxu0
        %6108 = vmatprep.subr.bf16.mxu0 0
        %6109 = vmatpush1.bf16.msra.mxu0 %v5868
        %6110 = vmatprep.subr.bf16.mxu0 0
        %6111 = vmatpush1.bf16.msra.mxu0 %v5869
        %6112 = vmatprep.subr.bf16.mxu0 0
        %6113 = vmatpush1.bf16.msra.mxu0 %v5870
        %6114 = vmatprep.subr.bf16.mxu0 0
        %6115 = vmatpush1.bf16.msra.mxu0 %v5871
        %6116 = vmatprep.subr.bf16.mxu0 0
        %6117 = vmatpush1.bf16.msra.mxu0 %v5872
        %6118 = vmatprep.subr.bf16.mxu0 0
        %6119 = vmatpush1.bf16.msra.mxu0 %v5873
        %6120 = vmatprep.subr.bf16.mxu0 0
        %6121 = vmatpush1.bf16.msra.mxu0 %v5874
        %6122 = vmatprep.subr.bf16.mxu0 0
        %6123 = vmatpush1.bf16.msra.mxu0 %v5875
        %6124 = vmatprep.subr.bf16.mxu0 0
        %6125 = vmatpush1.bf16.msra.mxu0 0
        %6126 = vmatprep.subr.bf16.mxu0 0
        %6127 = vmatpush1.bf16.msra.mxu0 0
        %6128 = vmatprep.subr.bf16.mxu0 0
        %6129 = vmatpush1.bf16.msra.mxu0 0
        %6130 = vmatprep.subr.bf16.mxu0 0
        %6131 = vmatpush1.bf16.msra.mxu0 0
        %6132 = vmatprep.subr.bf16.mxu0 0
        %6133 = vmatpush1.bf16.msra.mxu0 0
        %6134 = vmatprep.subr.bf16.mxu0 0
        %6135 = vmatpush1.bf16.msra.mxu0 0
        %6136 = vmatprep.subr.bf16.mxu0 0
        %6137 = vmatpush1.bf16.msra.mxu0 0
        %6138 = vmatprep.subr.bf16.mxu0 0
        %6139 = vmatpush1.bf16.msra.mxu0 0
        %6140 = vmatprep.mubr.bf16.mxu0 0
        %6141 = vmatmul.mubr.bf16.gmra.mrb[0].mxu0 %v5364
        %v6142 = vpop.f32.mrb[0].mxu0
        %v6143 = vadd.f32 %v6103, %v6142
        %v6144 = vpop.f32.mrb[0].mxu0
        %v6145 = vpop.f32.mrb[0].mxu0
        %v6146 = vpop.f32.mrb[0].mxu0
        %6147 = vdwg.mxu0
        %v6148 = vmul.f32 %v6143, 0.1
        %v6149 = vmax.f32 %v6143, %v6148
        %v6150 = vpack.c.bf16 %v6149, %v6149
        %v6151 = vld [vmem:[%s7] sm:$0xf]
        %v6152 = vld [vmem:[%s7 + $0x4] sm:$0xf]
        %v6153 = vld [vmem:[%s7 + $0x8] sm:$0xf]
        %v6154 = vld [vmem:[%s7 + $0xc] sm:$0xf]
        %v6155 = vld [vmem:[%s7 + $0x10] sm:$0xf]
        %v6156 = vld [vmem:[%s7 + $0x14] sm:$0xf]
        %v6157 = vld [vmem:[%s7 + $0x18] sm:$0xf]
        %v6158 = vld [vmem:[%s7 + $0x1c] sm:$0xf]
        %v6159 = vld [vmem:[%s7 + $0x20] sm:$0xf]
        %v6160 = vld [vmem:[%s7 + $0x24] sm:$0xf]
        %v6161 = vld [vmem:[%s7 + $0x28] sm:$0xf]
        %v6162 = vld [vmem:[%s7 + $0x2c] sm:$0xf]
        %v6163 = vld [vmem:[%s7 + $0x30] sm:$0xf]
        %v6164 = vld [vmem:[%s7 + $0x34] sm:$0xf]
        %v6165 = vld [vmem:[%s7 + $0x38] sm:$0xf]
        %v6166 = vld [vmem:[%s7 + $0x3c] sm:$0xf]
        %v6167 = vld [vmem:[%s8] sm:$0x1]
        %v6169 = vlaneseq
        %v6170 = vshrl.u32 %v6169, 7
        %v6171 = vsub.s32 0, %v6170
        %v6172 = vrot.slane %v6167, %v6171
        %v6190 = vunpack.c.l.b16 %v6151
        %v6191 = vunpack.c.l.b16 %v6152
        %v6192 = vunpack.c.l.b16 %v6153
        %v6193 = vunpack.c.l.b16 %v6154
        %v6194 = vunpack.c.l.b16 %v6155
        %v6195 = vunpack.c.l.b16 %v6156
        %v6196 = vunpack.c.l.b16 %v6157
        %v6197 = vunpack.c.l.b16 %v6158
        %v6198 = vunpack.c.l.b16 %v6159
        %v6199 = vunpack.c.l.b16 %v6160
        %v6200 = vunpack.c.l.b16 %v6161
        %v6201 = vunpack.c.l.b16 %v6162
        %v6202 = vunpack.c.l.b16 %v6163
        %v6203 = vunpack.c.l.b16 %v6164
        %v6204 = vunpack.c.l.b16 %v6165
        %v6205 = vunpack.c.l.b16 %v6166
        %v6206 = vpack.c.b16 %v6191, %v6190
        %v6207 = vpack.c.b16 %v6193, %v6192
        %v6208 = vpack.c.b16 %v6195, %v6194
        %v6209 = vpack.c.b16 %v6197, %v6196
        %v6210 = vpack.c.b16 %v6199, %v6198
        %v6211 = vpack.c.b16 %v6201, %v6200
        %v6212 = vpack.c.b16 %v6203, %v6202
        %v6213 = vpack.c.b16 %v6205, %v6204
        %6222 = vmatprep.subr.bf16.mxu0 0
        %6223 = vmatpush1.bf16.msra.mxu0 %v6206
        %6224 = vmatprep.subr.bf16.mxu0 0
        %6225 = vmatpush1.bf16.msra.mxu0 %v6207
        %6226 = vmatprep.subr.bf16.mxu0 0
        %6227 = vmatpush1.bf16.msra.mxu0 %v6208
        %6228 = vmatprep.subr.bf16.mxu0 0
        %6229 = vmatpush1.bf16.msra.mxu0 %v6209
        %6230 = vmatprep.subr.bf16.mxu0 0
        %6231 = vmatpush1.bf16.msra.mxu0 %v6210
        %6232 = vmatprep.subr.bf16.mxu0 0
        %6233 = vmatpush1.bf16.msra.mxu0 %v6211
        %6234 = vmatprep.subr.bf16.mxu0 0
        %6235 = vmatpush1.bf16.msra.mxu0 %v6212
        %6236 = vmatprep.subr.bf16.mxu0 0
        %6237 = vmatpush1.bf16.msra.mxu0 %v6213
        %6238 = vmatprep.subr.bf16.mxu0 0
        %6239 = vmatpush1.bf16.msra.mxu0 0
        %6240 = vmatprep.subr.bf16.mxu0 0
        %6241 = vmatpush1.bf16.msra.mxu0 0
        %6242 = vmatprep.subr.bf16.mxu0 0
        %6243 = vmatpush1.bf16.msra.mxu0 0
        %6244 = vmatprep.subr.bf16.mxu0 0
        %6245 = vmatpush1.bf16.msra.mxu0 0
        %6246 = vmatprep.subr.bf16.mxu0 0
        %6247 = vmatpush1.bf16.msra.mxu0 0
        %6248 = vmatprep.subr.bf16.mxu0 0
        %6249 = vmatpush1.bf16.msra.mxu0 0
        %6250 = vmatprep.subr.bf16.mxu0 0
        %6251 = vmatpush1.bf16.msra.mxu0 0
        %6252 = vmatprep.subr.bf16.mxu0 0
        %6253 = vmatpush1.bf16.msra.mxu0 0
        %6254 = vmatprep.mubr.bf16.mxu0 0
        %6255 = vmatmul.mubr.bf16.gmra.mrb[0].mxu0 %v6150
        %v6256 = vpop.f32.mrb[0].mxu0
        %v6257 = vadd.f32 %v6172, %v6256
        %v6258 = vpop.f32.mrb[0].mxu0
        %v6259 = vpop.f32.mrb[0].mxu0
        %v6260 = vpop.f32.mrb[0].mxu0
        %6261 = vdwg.mxu0
        %6262 = vst [vmem:[%s328] sm:$0x3] %v6257
        %s6263 = sand.u32 %s225, 1
        %s6264 = scalar_lea.sflag [#allocation4], %s6263
        %s6265 = sand.u32 %s225, 1
        %s6266 = smul.addr %s6265, 2
        %s6267 = scalar_lea.vmem [#allocation3], %s6266
        // Predicated region
        $region57: #{tinyvgg_forward.1} parent=55 // pred_check
          %p6268 = pneg %p235
        $region58: #{tinyvgg_forward.1} parent=55 // pred_check_branch
          %6270 = sbr.rel (%p6268) target = $region60
        $region59: #{tinyvgg_forward.1} parent=55 // pred_region
          %s6272 = ssub.s32 32, 32
          %6273 = vsyncadd %s6264, %s6272
          %s6274 = smul.addr %s23, 32
          %s6275 = scalar_lea.hbm %s9, %s6274
          %s6277 = sshll.u32 %s6267, 4
          %s6278 = int_to_ptr.vmem [resolvable:$true] %s6277
          %6280 = dma.vmem_to_hbm [thread:$0]  %s6278, 32, %s6275, %s6264
        $region60: #{tinyvgg_forward.1} parent=55 // pred_fallthru
          _
      $region56: #{tinyvgg_forward.1} parent=5 // pred_fallthru
        _
      %p6281 = scmp.le.s32.totalorder 2, %s18
      // Predicated region
      $region61: #{tinyvgg_forward.1} parent=5 // pred_check
        %p6282 = pneg %p6281
      $region62: #{tinyvgg_forward.1} parent=5 // pred_check_branch
        %6284 = sbr.rel (%p6282) target = $region64
      $region63: #{tinyvgg_forward.1} parent=5 // pred_region
        %s6285 = ssub.s32 %s18, 2
        // Predicated region
        $region65: #{tinyvgg_forward.1} parent=63 // pred_check
          %p6286 = pneg %p241
        $region66: #{tinyvgg_forward.1} parent=63 // pred_check_branch
          %6288 = sbr.rel (%p6286) target = $region68
        $region67: #{tinyvgg_forward.1} parent=63 // pred_region
          %s6289 = sand.u32 %s226, 1
          %s6290 = scalar_lea.sflag [#allocation4], %s6289
          %s6291 = sand.u32 %s226, 1
          %s6292 = smul.addr %s6291, 2
          %s6293 = scalar_lea.vmem [#allocation3], %s6292
          %6294 = dma.done %s6290, 32
        $region68: #{tinyvgg_forward.1} parent=63 // pred_fallthru
          _
      $region64: #{tinyvgg_forward.1} parent=5 // pred_fallthru
        _
    $region6: #{tinyvgg_forward.1} parent=1 // loop_footer
      %s22 = sadd.s32 1, %s18
    $region7: #{tinyvgg_forward.1} parent=1 // loop_footer_branch
      %17 = sbr.rel target = $region3
    $region8: #{tinyvgg_forward.1} parent=1 // loop_exit
      _
    %6295 = vsyncpa [#allocation4], 1
    %s6296 = scalar_lea.sflag [#allocation4], 1
    %6297 = vsyncpa %s6296, 1

</llo_original>
